<compile_context>
chip_gen: v7x
topology: tpu7x:2x2x1
jax: 0.10.0
libtpu: 0.0.40
codegen_flags: <defaults>
</compile_context>

<pallas_src>
import functools

import jax
import jax.numpy as jnp
from jax.experimental import pallas as pl
from jax.experimental.pallas import tpu as pltpu

# ---------------------------------------------------------------------------
# Model dimensions (small, consistent with StochDiff.__init__ semantics)
# ---------------------------------------------------------------------------
X_DIM = 4                     # x_dim
H_DIM = 32                    # h_dim
TE_DIM = 8                    # time-embedding width carried inside `ts`
DIFF_DIM = 16                 # diff_dim (diffusion-step embedding width)
N_LAYERS = 2                  # n_layers (LSTM layers)
DIFF_STEPS = 10               # diff_steps
BATCH = 4
SEQ = 8

# Lane layout of the packed per-step input row (ROW_DIM = 128 lanes, f32)
ROW_DIM = 128
X_OFF = 0                      # x_t                  lanes [0, 4)
TE_OFF = X_OFF + X_DIM         # time_emb             lanes [4, 12)
XN_OFF = TE_OFF + TE_DIM       # x_noisy (diffusion)  lanes [12, 16)
SE_OFF = XN_OFF + X_DIM        # diff-step embedding  lanes [16, 32)
EPS_OFF = SE_OFF + DIFF_DIM    # rsample noise        lanes [32, 64)
NZ_OFF = EPS_OFF + H_DIM       # diffusion noise      lanes [64, 68)
ROW_PAD = ROW_DIM - (NZ_OFF + X_DIM)
assert ROW_PAD >= 0

# Lane layout of the batched-precompute output (one MXU call for the whole sequence)
PRE_G0 = 0                     # LSTM layer-0 input contribution (+b_l0)   [0, 128)
PRE_ENCM = 128                 # enc_mean   x-contribution                 [128, 160)
PRE_ENCL = 160                 # enc_logvar x-contribution                 [160, 192)
PRE_DN = 192                   # denoiser row contribution (+b_dn)         [192, 196)
PRE_N = 256                    # padded to a lane-dense multiple of 128

PARAM_SHAPES = {
    # TODO(synk): FeatureAttention is not defined in the source module; stood in by a linear x_dim->h_dim.
    'wxp': (X_DIM, H_DIM), 'bxp': (1, H_DIM),
    'wpm': (H_DIM, H_DIM), 'bpm': (1, H_DIM),          # prior_mean
    'wpl': (H_DIM, H_DIM), 'bpl': (1, H_DIM),          # prior_logvar
    'wem_x': (H_DIM, H_DIM), 'wem_h': (H_DIM, H_DIM), 'bem': (1, H_DIM),   # enc_mean  (split cat)
    'wel_x': (H_DIM, H_DIM), 'wel_h': (H_DIM, H_DIM), 'bel': (1, H_DIM),   # enc_logvar (split cat)
    'wz': (H_DIM, H_DIM), 'bz': (1, H_DIM),            # z_proj (Linear + Softplus)
    # TODO(synk): AttentionNet / GaussianDiffusion.log_prob are not defined upstream;
    # approximated by one-step epsilon-prediction MSE with a linear denoiser (split cat).
    'wdn_x': (X_DIM, X_DIM), 'wdn_z': (H_DIM, X_DIM),
    'wdn_t': (TE_DIM, X_DIM), 'wdn_s': (DIFF_DIM, X_DIM), 'bdn': (1, X_DIM),
    # 2-layer LSTM (PyTorch gate order i, f, g, o); layer-0 input = [x, enc_emb, time_emb]
    'wih0_x': (X_DIM, 4 * H_DIM), 'wih0_z': (H_DIM, 4 * H_DIM), 'wih0_t': (TE_DIM, 4 * H_DIM),
    'whh0': (H_DIM, 4 * H_DIM), 'bl0': (1, 4 * H_DIM),
    'wih1': (H_DIM, 4 * H_DIM), 'whh1': (H_DIM, 4 * H_DIM), 'bl1': (1, 4 * H_DIM),
}


def init_params(key):
    keys = jax.random.split(key, len(PARAM_SHAPES))
    return {name: 0.1 * jax.random.normal(k, shp, jnp.float32)
            for (name, shp), k in zip(PARAM_SHAPES.items(), keys)}


def pack_weights(p):
    """Host-side (once) weight fusion into lane-dense matmul operands."""
    H = H_DIM
    f32 = jnp.float32

    def reorder_gates(w):
        # PyTorch LSTM gate order (i, f, g, o) -> (i, f, o, g): the kernel then applies
        # one sigmoid to a contiguous (B, 3H) slice and one tanh to (B, H).
        return jnp.concatenate(
            [w[..., 0:2 * H], w[..., 3 * H:4 * H], w[..., 2 * H:3 * H]], axis=-1)

    def rows(w, off):
        buf = jnp.zeros((ROW_DIM, w.shape[-1]), f32)
        return buf.at[off:off + w.shape[0]].set(w.astype(f32))

    # fused hidden heads: [prior_mean | prior_logvar | enc_mean_h | enc_logvar_h]
    w_hid = jnp.concatenate([p['wpm'], p['wpl'], p['wem_h'], p['wel_h']], axis=1)   # (H, 4H)
    b_hid = jnp.concatenate([p['bpm'], p['bpl'], p['bem'], p['bel']], axis=1)       # (1, 4H)

    # x_proj composed with the encoder x-heads (host-side): row -> [enc_mean_x|enc_logvar_x]
    w_encx = jnp.concatenate([p['wem_x'], p['wel_x']], axis=1)                      # (H, 2H)
    w_xp_row = rows(p['wxp'], X_OFF)                                                # (128, H)
    w_encx_row = w_xp_row @ w_encx                                                  # (128, 2H)
    b_encx = p['bxp'] @ w_encx                                                      # (1, 2H)

    # denoiser row contribution (x_noisy, time_emb, step_emb K-fused into one column block)
    w_dn_row = rows(p['wdn_x'], XN_OFF) + rows(p['wdn_t'], TE_OFF) + rows(p['wdn_s'], SE_OFF)

    # LSTM layer-0 input-row contribution (x, time_emb K-fused), gate-reordered
    w_ih0_row = rows(reorder_gates(p['wih0_x']), X_OFF) + rows(reorder_gates(p['wih0_t']), TE_OFF)

    # single N-fused weight for the batched row precompute (one MXU call for the whole sequence)
    w_pre = jnp.zeros((ROW_DIM, PRE_N), f32)
    w_pre = w_pre.at[:, PRE_G0:PRE_G0 + 4 * H].set(w_ih0_row)
    w_pre = w_pre.at[:, PRE_ENCM:PRE_ENCM + 2 * H].set(w_encx_row)
    w_pre = w_pre.at[:, PRE_DN:PRE_DN + X_DIM].set(w_dn_row)
    b_pre = jnp.zeros((1, PRE_N), f32)
    b_pre = b_pre.at[:, PRE_G0:PRE_G0 + 4 * H].set(reorder_gates(p['bl0']))
    b_pre = b_pre.at[:, PRE_ENCM:PRE_ENCM + 2 * H].set(b_encx)
    b_pre = b_pre.at[:, PRE_DN:PRE_DN + X_DIM].set(p['bdn'])

    # K-stacked recurrent gate weights ([enc_emb|h0] and [h0|h1] inputs), gate-reordered
    w_rec0 = jnp.concatenate([reorder_gates(p['wih0_z']), reorder_gates(p['whh0'])], axis=0)  # (2H,4H)
    w_rec1 = jnp.concatenate([reorder_gates(p['wih1']), reorder_gates(p['whh1'])], axis=0)    # (2H,4H)
    b_l1 = reorder_gates(p['bl1'])                                                            # (1, 4H)

    return (w_pre, b_pre, w_hid, b_hid, p['wz'], p['bz'], p['wdn_z'], w_rec0, w_rec1, b_l1)


# ---------------------------------------------------------------------------
# Kernel
# ---------------------------------------------------------------------------
def _stochdiff_kernel(
    B, T,
    # inputs (VMEM)
    packed_ref,                                   # (T*B, 128) packed per-step rows
    w_pre_ref, b_pre_ref,                         # (128, 256), (1, 256)
    w_hid_ref, b_hid_ref,                         # (H, 4H),    (1, 4H)
    w_z_ref, b_z_ref, w_dn_z_ref,                 # (H, H), (1, H), (H, X)
    w_rec0_ref, w_rec1_ref, b_l1_ref,             # (2H, 4H), (2H, 4H), (1, 4H)
    # inputs (SMEM)
    wts_ref,                                      # (2,) [kld_weight, rec_weight]
    # outputs (VMEM)
    loss_ref, kld_ref, diff_ref,
):
    f32 = jnp.float32
    H = H_DIM

    def dot(a, b):
        return jnp.dot(a, b, preferred_element_type=f32)

    # One batched, N-fused matmul hoists every row-only matmul out of the recurrence
    # (M = T*B = 32 instead of 3*T tiny latency-serial matmuls with M = B = 4).
    pre = dot(packed_ref[...], w_pre_ref[...]) + b_pre_ref[...]        # (T*B, PRE_N)

    # Small recurrent weights / biases, loaded & broadcast once (hoisted out of the loop).
    w_hid = w_hid_ref[...]
    b_hid = jnp.broadcast_to(b_hid_ref[...], (B, 4 * H))
    w_z = w_z_ref[...]
    b_z = jnp.broadcast_to(b_z_ref[...], (B, H))
    w_dn_z = w_dn_z_ref[...]
    w_rec0 = w_rec0_ref[...]
    w_rec1 = w_rec1_ref[...]
    b_l1 = jnp.broadcast_to(b_l1_ref[...], (B, 4 * H))

    def lstm_update(gates, c_prev):
        # gate columns were permuted host-side to (i, f, o, g):
        # one contiguous sigmoid over 3H lanes, one tanh over H lanes.
        sig = jax.nn.sigmoid(gates[:, 0:3 * H])
        i_g = sig[:, 0:H]
        f_g = sig[:, H:2 * H]
        o_g = sig[:, 2 * H:3 * H]
        g_g = jnp.tanh(gates[:, 3 * H:4 * H])
        c_new = f_g * c_prev + i_g * g_g
        h_new = o_g * jnp.tanh(c_new)
        return h_new, c_new

    # LSTM state carried as values; losses accumulated element-wise (reduced once at the end).
    h0 = jnp.zeros((B, H), f32)
    c0 = jnp.zeros((B, H), f32)
    h1 = jnp.zeros((B, H), f32)
    c1 = jnp.zeros((B, H), f32)
    kld_vec = jnp.zeros((B, H), f32)
    diff_vec = jnp.zeros((B, X_DIM), f32)

    # Fully-unrolled recurrence over the (small, static) sequence length.
    for t in range(T):
        r0 = t * B
        pre_t = pre[r0:r0 + B, :]                              # (B, PRE_N) per-step precompute

        # prior / encoder heads conditioned on the PREVIOUS step state (matches reference order)
        hidden = h1 + c1                                       # h[-1] + c[-1]
        hid_out = dot(hidden, w_hid) + b_hid                   # [prior_m|prior_lv|enc_m_h|enc_lv_h]
        prior_mean = hid_out[:, 0:H]
        prior_logvar = hid_out[:, H:2 * H]
        enc_mean = hid_out[:, 2 * H:3 * H] + pre_t[:, PRE_ENCM:PRE_ENCM + H]
        enc_logvar = hid_out[:, 3 * H:4 * H] + pre_t[:, PRE_ENCL:PRE_ENCL + H]

        # reparameterized sample + z projection (Linear + Softplus)
        eps_t = packed_ref[r0:r0 + B, EPS_OFF:EPS_OFF + H]
        enc_z = enc_mean + jnp.exp(0.5 * enc_logvar) * eps_t
        enc_emb = jax.nn.softplus(dot(enc_z, w_z) + b_z)

        # kld_gaussian(enc_mean, enc_logvar, prior_mean, prior_logvar), divide-free form,
        # accumulated element-wise; the cross-lane mean happens once after the loop.
        dlv = enc_logvar - prior_logvar
        dmu = enc_mean - prior_mean
        kld_vec = kld_vec + (
            -0.5 * dlv + 0.5 * (jnp.exp(dlv) + dmu * dmu * jnp.exp(-prior_logvar)) - 0.5)

        # diffusion.log_prob stand-in: one-step epsilon-prediction MSE.
        noise_t = packed_ref[r0:r0 + B, NZ_OFF:NZ_OFF + X_DIM]
        pred_noise = pre_t[:, PRE_DN:PRE_DN + X_DIM] + dot(enc_emb, w_dn_z)
        d = pred_noise - noise_t
        diff_vec = diff_vec + d * d

        # 2-layer LSTM, one step; K-fused recurrent matmuls (input-row part is in pre_t).
        gates0 = pre_t[:, PRE_G0:PRE_G0 + 4 * H] + dot(
            jnp.concatenate([enc_emb, h0], axis=1), w_rec0)
        h0, c0 = lstm_update(gates0, c0)
        gates1 = dot(jnp.concatenate([h0, h1], axis=1), w_rec1) + b_l1
        h1, c1 = lstm_update(gates1, c1)

    # single cross-lane reduction + scalar epilogue; the three (1,1) outputs are written once.
    kw = wts_ref[0]
    rw = wts_ref[1]
    kld = jnp.sum(kld_vec) * (1.0 / float(B * H))
    diff = jnp.sum(diff_vec) * (1.0 / float(B * X_DIM))
    loss = (kld * kw + diff * rw) * (1.0 / float(T))
    loss_ref[...] = jnp.zeros_like(loss_ref) + loss
    kld_ref[...] = jnp.zeros_like(kld_ref) + kld          # raw sum over T (as in the reference)
    diff_ref[...] = jnp.zeros_like(diff_ref) + diff       # raw sum over T (as in the reference)


# ---------------------------------------------------------------------------
# Wrapper
# ---------------------------------------------------------------------------
def stochdiff_forward(ts, kld_weight, rec_weight, params, noise_key):
    """ts: (B, T, X_DIM + TE_DIM) batch-major (as in PyTorch).  Returns (loss, kld, diff)."""
    B, T, _ = ts.shape

    # time-major per-step tensors, flattened to (T*B, .) for the batched precompute
    x = jnp.transpose(ts[:, :, :X_DIM], (1, 0, 2)).astype(jnp.float32)      # (T, B, X)
    temb = jnp.transpose(ts[:, :, X_DIM:], (1, 0, 2)).astype(jnp.float32)   # (T, B, TE)

    k1, k2 = jax.random.split(noise_key)
    eps = jax.random.normal(k1, (T, B, H_DIM), jnp.float32)       # rsample noise
    dnoise = jax.random.normal(k2, (T, B, X_DIM), jnp.float32)    # diffusion noise

    # diffusion schedule (linear betas); one diffusion timestep per sequence step
    betas = jnp.linspace(1e-4, 0.1, DIFF_STEPS, dtype=jnp.float32)
    alpha_bar = jnp.cumprod(1.0 - betas)
    tau = jnp.arange(T) % DIFF_STEPS
    sqrt_ab = jnp.sqrt(alpha_bar[tau]).astype(jnp.float32)            # (T,)
    sqrt_1mab = jnp.sqrt(1.0 - alpha_bar[tau]).astype(jnp.float32)    # (T,)
    x_noisy = sqrt_ab[:, None, None] * x + sqrt_1mab[:, None, None] * dnoise

    # sinusoidal diffusion-step embedding, broadcast over batch
    half = DIFF_DIM // 2
    freqs = jnp.exp(-jnp.log(10000.0) * jnp.arange(half, dtype=jnp.float32) / half)
    ang = tau.astype(jnp.float32)[:, None] * freqs[None, :]
    semb = jnp.concatenate([jnp.sin(ang), jnp.cos(ang)], axis=-1)         # (T, DIFF_DIM)
    semb = jnp.broadcast_to(semb[:, None, :], (T, B, DIFF_DIM)).astype(jnp.float32)

    # one lane-dense (T*B, 128) input slab for the whole sequence, built with ONE concat
    tb = T * B
    packed = jnp.concatenate([
        x.reshape(tb, X_DIM),
        temb.reshape(tb, TE_DIM),
        x_noisy.reshape(tb, X_DIM),
        semb.reshape(tb, DIFF_DIM),
        eps.reshape(tb, H_DIM),
        dnoise.reshape(tb, X_DIM),
        jnp.zeros((tb, ROW_PAD), jnp.float32),
    ], axis=-1)

    fused = pack_weights(params)
    wts = jnp.array([kld_weight, rec_weight], jnp.float32)            # (2,) -> SMEM

    vm = pl.BlockSpec(memory_space=pltpu.MemorySpace.VMEM)
    sm = pl.BlockSpec(memory_space=pltpu.MemorySpace.SMEM)
    out_shape = tuple(jax.ShapeDtypeStruct((1, 1), jnp.float32) for _ in range(3))

    kernel = functools.partial(_stochdiff_kernel, B, T)
    loss, kld, diff = pl.pallas_call(
        kernel,
        out_shape=out_shape,
        in_specs=[vm] * (1 + len(fused)) + [sm],
        out_specs=(vm, vm, vm),
    )(packed, *fused, wts)

    return loss[0, 0], kld[0, 0], diff[0, 0]


if __name__ == "__main__":
    key = jax.random.PRNGKey(0)
    pkey, dkey, nkey = jax.random.split(key, 3)

    params = init_params(pkey)
    ts = jax.random.normal(dkey, (BATCH, SEQ, X_DIM + TE_DIM), jnp.float32)

    loss, kld, diff = stochdiff_forward(ts, 1.0, 1.0, params, nkey)
    (loss, kld, diff) = jax.block_until_ready((loss, kld, diff))

    assert bool(jnp.isfinite(loss)) and bool(jnp.isfinite(kld)) and bool(jnp.isfinite(diff)), \
        (loss, kld, diff)
    print("KERNEL_OK")
</pallas_src>

<mosaic_0001>
module attributes {stable_mosaic.version = 11 : i64} {
  func.func @_stochdiff_kernel(%arg0: memref<32x128xf32, #tpu.memory_space<vmem>>, %arg1: memref<128x256xf32, #tpu.memory_space<vmem>>, %arg2: memref<1x256xf32, #tpu.memory_space<vmem>>, %arg3: memref<32x128xf32, #tpu.memory_space<vmem>>, %arg4: memref<1x128xf32, #tpu.memory_space<vmem>>, %arg5: memref<32x32xf32, #tpu.memory_space<vmem>>, %arg6: memref<1x32xf32, #tpu.memory_space<vmem>>, %arg7: memref<32x4xf32, #tpu.memory_space<vmem>>, %arg8: memref<64x128xf32, #tpu.memory_space<vmem>>, %arg9: memref<64x128xf32, #tpu.memory_space<vmem>>, %arg10: memref<1x128xf32, #tpu.memory_space<vmem>>, %arg11: memref<2xf32, #tpu.memory_space<smem>>, %arg12: memref<1x1xf32, #tpu.memory_space<vmem>>, %arg13: memref<1x1xf32, #tpu.memory_space<vmem>>, %arg14: memref<1x1xf32, #tpu.memory_space<vmem>>) attributes {dimension_semantics = [], scalar_prefetch = 0 : i64, scratch_operands = 0 : i64, tpu.core_type = #tpu.core_type<tc>} {
    %c0 = arith.constant 0 : index
    %c0_0 = arith.constant 0 : index
    %0 = vector.load %arg0[%c0, %c0_0] : memref<32x128xf32, #tpu.memory_space<vmem>>, vector<32x128xf32>
    %c0_1 = arith.constant 0 : index
    %c0_2 = arith.constant 0 : index
    %1 = vector.load %arg1[%c0_1, %c0_2] : memref<128x256xf32, #tpu.memory_space<vmem>>, vector<128x256xf32>
    %cst = arith.constant dense<0.000000e+00> : vector<32x256xf32>
    %2 = tpu.matmul %0, %1, %cst {dimension_numbers = #tpu.dot_dimension_numbers<[1], [0], [0], [1], [0, 0, 1, 1], [], []>} : vector<32x128xf32>, vector<128x256xf32>, vector<32x256xf32> -> vector<32x256xf32>
    %c0_3 = arith.constant 0 : index
    %c0_4 = arith.constant 0 : index
    %3 = vector.load %arg2[%c0_3, %c0_4] : memref<1x256xf32, #tpu.memory_space<vmem>>, vector<1x256xf32>
    %4 = vector.broadcast %3 : vector<1x256xf32> to vector<32x256xf32>
    %5 = arith.addf %2, %4 : vector<32x256xf32>
    %c0_5 = arith.constant 0 : index
    %c0_6 = arith.constant 0 : index
    %6 = vector.load %arg3[%c0_5, %c0_6] : memref<32x128xf32, #tpu.memory_space<vmem>>, vector<32x128xf32>
    %c0_7 = arith.constant 0 : index
    %c0_8 = arith.constant 0 : index
    %7 = vector.load %arg4[%c0_7, %c0_8] : memref<1x128xf32, #tpu.memory_space<vmem>>, vector<1x128xf32>
    %8 = vector.shape_cast %7 : vector<1x128xf32> to vector<1x128xf32>
    %9 = vector.broadcast %8 : vector<1x128xf32> to vector<4x128xf32>
    %c0_9 = arith.constant 0 : index
    %c0_10 = arith.constant 0 : index
    %10 = vector.load %arg5[%c0_9, %c0_10] : memref<32x32xf32, #tpu.memory_space<vmem>>, vector<32x32xf32>
    %c0_11 = arith.constant 0 : index
    %c0_12 = arith.constant 0 : index
    %11 = vector.load %arg6[%c0_11, %c0_12] : memref<1x32xf32, #tpu.memory_space<vmem>>, vector<1x32xf32>
    %12 = vector.shape_cast %11 : vector<1x32xf32> to vector<1x32xf32>
    %13 = vector.broadcast %12 : vector<1x32xf32> to vector<4x32xf32>
    %c0_13 = arith.constant 0 : index
    %c0_14 = arith.constant 0 : index
    %14 = vector.load %arg7[%c0_13, %c0_14] : memref<32x4xf32, #tpu.memory_space<vmem>>, vector<32x4xf32>
    %c0_15 = arith.constant 0 : index
    %c0_16 = arith.constant 0 : index
    %15 = vector.load %arg8[%c0_15, %c0_16] : memref<64x128xf32, #tpu.memory_space<vmem>>, vector<64x128xf32>
    %c0_17 = arith.constant 0 : index
    %c0_18 = arith.constant 0 : index
    %16 = vector.load %arg9[%c0_17, %c0_18] : memref<64x128xf32, #tpu.memory_space<vmem>>, vector<64x128xf32>
    %c0_19 = arith.constant 0 : index
    %c0_20 = arith.constant 0 : index
    %17 = vector.load %arg10[%c0_19, %c0_20] : memref<1x128xf32, #tpu.memory_space<vmem>>, vector<1x128xf32>
    %18 = vector.shape_cast %17 : vector<1x128xf32> to vector<1x128xf32>
    %19 = vector.broadcast %18 : vector<1x128xf32> to vector<4x128xf32>
    %cst_21 = arith.constant 0.000000e+00 : f32
    %20 = vector.broadcast %cst_21 : f32 to vector<4x32xf32>
    %cst_22 = arith.constant 0.000000e+00 : f32
    %21 = vector.broadcast %cst_22 : f32 to vector<4x32xf32>
    %cst_23 = arith.constant 0.000000e+00 : f32
    %22 = vector.broadcast %cst_23 : f32 to vector<4x32xf32>
    %cst_24 = arith.constant 0.000000e+00 : f32
    %23 = vector.broadcast %cst_24 : f32 to vector<4x32xf32>
    %cst_25 = arith.constant 0.000000e+00 : f32
    %24 = vector.broadcast %cst_25 : f32 to vector<4x32xf32>
    %cst_26 = arith.constant 0.000000e+00 : f32
    %25 = vector.broadcast %cst_26 : f32 to vector<4x4xf32>
    %26 = vector.extract_strided_slice %5 {offsets = [0, 0], sizes = [4, 256], strides = [1, 1]} : vector<32x256xf32> to vector<4x256xf32>
    %27 = arith.addf %22, %23 : vector<4x32xf32>
    %cst_27 = arith.constant dense<0.000000e+00> : vector<4x128xf32>
    %28 = tpu.matmul %27, %6, %cst_27 {dimension_numbers = #tpu.dot_dimension_numbers<[1], [0], [0], [1], [0, 0, 1, 1], [], []>} : vector<4x32xf32>, vector<32x128xf32>, vector<4x128xf32> -> vector<4x128xf32>
    %29 = arith.addf %28, %9 : vector<4x128xf32>
    %30 = vector.extract_strided_slice %29 {offsets = [0, 0], sizes = [4, 32], strides = [1, 1]} : vector<4x128xf32> to vector<4x32xf32>
    %31 = vector.extract_strided_slice %29 {offsets = [0, 32], sizes = [4, 32], strides = [1, 1]} : vector<4x128xf32> to vector<4x32xf32>
    %32 = vector.extract_strided_slice %29 {offsets = [0, 64], sizes = [4, 32], strides = [1, 1]} : vector<4x128xf32> to vector<4x32xf32>
    %33 = vector.extract_strided_slice %26 {offsets = [0, 128], sizes = [4, 32], strides = [1, 1]} : vector<4x256xf32> to vector<4x32xf32>
    %34 = arith.addf %32, %33 : vector<4x32xf32>
    %35 = vector.extract_strided_slice %29 {offsets = [0, 96], sizes = [4, 32], strides = [1, 1]} : vector<4x128xf32> to vector<4x32xf32>
    %36 = vector.extract_strided_slice %26 {offsets = [0, 160], sizes = [4, 32], strides = [1, 1]} : vector<4x256xf32> to vector<4x32xf32>
    %37 = arith.addf %35, %36 : vector<4x32xf32>
    %c0_28 = arith.constant 0 : index
    %c32 = arith.constant 32 : index
    %38 = vector.load %arg0[%c0_28, %c32] : memref<32x128xf32, #tpu.memory_space<vmem>>, vector<4x32xf32>
    %cst_29 = arith.constant 5.000000e-01 : f32
    %39 = vector.broadcast %cst_29 : f32 to vector<4x32xf32>
    %40 = arith.mulf %39, %37 : vector<4x32xf32>
    %41 = math.exp %40 : vector<4x32xf32>
    %42 = arith.mulf %41, %38 : vector<4x32xf32>
    %43 = arith.addf %34, %42 : vector<4x32xf32>
    %cst_30 = arith.constant dense<0.000000e+00> : vector<4x32xf32>
    %44 = tpu.matmul %43, %10, %cst_30 {dimension_numbers = #tpu.dot_dimension_numbers<[1], [0], [0], [1], [0, 0, 1, 1], [], []>} : vector<4x32xf32>, vector<32x32xf32>, vector<4x32xf32> -> vector<4x32xf32>
    %45 = arith.addf %44, %13 : vector<4x32xf32>
    %cst_31 = arith.constant 0.000000e+00 : f32
    %46 = vector.broadcast %cst_31 : f32 to vector<4x32xf32>
    %47 = arith.maximumf %45, %46 : vector<4x32xf32>
    %48 = vector.broadcast %cst_31 : f32 to vector<4x32xf32>
    %49 = arith.subf %45, %48 : vector<4x32xf32>
    %50 = arith.cmpf one, %49, %49 : vector<4x32xf32>
    %51 = vector.broadcast %cst_31 : f32 to vector<4x32xf32>
    %52 = arith.addf %45, %51 : vector<4x32xf32>
    %53 = math.absf %49 : vector<4x32xf32>
    %cst_32 = arith.constant 0.000000e+00 : f32
    %54 = vector.broadcast %cst_32 : f32 to vector<4x32xf32>
    %55 = arith.subf %54, %53 : vector<4x32xf32>
    %56 = math.exp %55 : vector<4x32xf32>
    %57 = math.log1p %56 : vector<4x32xf32>
    %58 = arith.addf %47, %57 : vector<4x32xf32>
    %59 = arith.select %50, %52, %58 : vector<4x32xi1>, vector<4x32xf32>
    %60 = arith.subf %37, %31 : vector<4x32xf32>
    %61 = arith.subf %34, %30 : vector<4x32xf32>
    %cst_33 = arith.constant -5.000000e-01 : f32
    %62 = vector.broadcast %cst_33 : f32 to vector<4x32xf32>
    %63 = arith.mulf %62, %60 : vector<4x32xf32>
    %64 = math.exp %60 : vector<4x32xf32>
    %65 = arith.mulf %61, %61 : vector<4x32xf32>
    %cst_34 = arith.constant 0.000000e+00 : f32
    %66 = vector.broadcast %cst_34 : f32 to vector<4x32xf32>
    %67 = arith.subf %66, %31 : vector<4x32xf32>
    %68 = math.exp %67 : vector<4x32xf32>
    %69 = arith.mulf %65, %68 : vector<4x32xf32>
    %70 = arith.addf %64, %69 : vector<4x32xf32>
    %cst_35 = arith.constant 5.000000e-01 : f32
    %71 = vector.broadcast %cst_35 : f32 to vector<4x32xf32>
    %72 = arith.mulf %71, %70 : vector<4x32xf32>
    %73 = arith.addf %63, %72 : vector<4x32xf32>
    %cst_36 = arith.constant 5.000000e-01 : f32
    %74 = vector.broadcast %cst_36 : f32 to vector<4x32xf32>
    %75 = arith.subf %73, %74 : vector<4x32xf32>
    %76 = arith.addf %24, %75 : vector<4x32xf32>
    %c0_37 = arith.constant 0 : index
    %c64 = arith.constant 64 : index
    %77 = vector.load %arg0[%c0_37, %c64] : memref<32x128xf32, #tpu.memory_space<vmem>>, vector<4x4xf32>
    %78 = vector.extract_strided_slice %26 {offsets = [0, 192], sizes = [4, 4], strides = [1, 1]} : vector<4x256xf32> to vector<4x4xf32>
    %cst_38 = arith.constant dense<0.000000e+00> : vector<4x4xf32>
    %79 = tpu.matmul %59, %14, %cst_38 {dimension_numbers = #tpu.dot_dimension_numbers<[1], [0], [0], [1], [0, 0, 1, 1], [], []>} : vector<4x32xf32>, vector<32x4xf32>, vector<4x4xf32> -> vector<4x4xf32>
    %80 = arith.addf %78, %79 : vector<4x4xf32>
    %81 = arith.subf %80, %77 : vector<4x4xf32>
    %82 = arith.mulf %81, %81 : vector<4x4xf32>
    %83 = arith.addf %25, %82 : vector<4x4xf32>
    %84 = vector.extract_strided_slice %26 {offsets = [0, 0], sizes = [4, 128], strides = [1, 1]} : vector<4x256xf32> to vector<4x128xf32>
    %85 = tpu.concatenate %59, %20 in 1 : vector<4x32xf32>, vector<4x32xf32> -> vector<4x64xf32>
    %cst_39 = arith.constant dense<0.000000e+00> : vector<4x128xf32>
    %86 = tpu.matmul %85, %15, %cst_39 {dimension_numbers = #tpu.dot_dimension_numbers<[1], [0], [0], [1], [0, 0, 1, 1], [], []>} : vector<4x64xf32>, vector<64x128xf32>, vector<4x128xf32> -> vector<4x128xf32>
    %87 = arith.addf %84, %86 : vector<4x128xf32>
    %88 = vector.extract_strided_slice %87 {offsets = [0, 0], sizes = [4, 96], strides = [1, 1]} : vector<4x128xf32> to vector<4x96xf32>
    %89 = arith.negf %88 : vector<4x96xf32>
    %90 = math.exp %89 : vector<4x96xf32>
    %cst_40 = arith.constant 1.000000e+00 : f32
    %91 = vector.broadcast %cst_40 : f32 to vector<4x96xf32>
    %92 = arith.addf %91, %90 : vector<4x96xf32>
    %93 = arith.divf %91, %92 : vector<4x96xf32>
    %94 = vector.extract_strided_slice %93 {offsets = [0, 0], sizes = [4, 32], strides = [1, 1]} : vector<4x96xf32> to vector<4x32xf32>
    %95 = vector.extract_strided_slice %93 {offsets = [0, 32], sizes = [4, 32], strides = [1, 1]} : vector<4x96xf32> to vector<4x32xf32>
    %96 = vector.extract_strided_slice %93 {offsets = [0, 64], sizes = [4, 32], strides = [1, 1]} : vector<4x96xf32> to vector<4x32xf32>
    %97 = vector.extract_strided_slice %87 {offsets = [0, 96], sizes = [4, 32], strides = [1, 1]} : vector<4x128xf32> to vector<4x32xf32>
    %98 = math.tanh %97 : vector<4x32xf32>
    %99 = arith.mulf %95, %21 : vector<4x32xf32>
    %100 = arith.mulf %94, %98 : vector<4x32xf32>
    %101 = arith.addf %99, %100 : vector<4x32xf32>
    %102 = math.tanh %101 : vector<4x32xf32>
    %103 = arith.mulf %96, %102 : vector<4x32xf32>
    %104 = tpu.concatenate %103, %22 in 1 : vector<4x32xf32>, vector<4x32xf32> -> vector<4x64xf32>
    %cst_41 = arith.constant dense<0.000000e+00> : vector<4x128xf32>
    %105 = tpu.matmul %104, %16, %cst_41 {dimension_numbers = #tpu.dot_dimension_numbers<[1], [0], [0], [1], [0, 0, 1, 1], [], []>} : vector<4x64xf32>, vector<64x128xf32>, vector<4x128xf32> -> vector<4x128xf32>
    %106 = arith.addf %105, %19 : vector<4x128xf32>
    %107 = vector.extract_strided_slice %106 {offsets = [0, 0], sizes = [4, 96], strides = [1, 1]} : vector<4x128xf32> to vector<4x96xf32>
    %108 = arith.negf %107 : vector<4x96xf32>
    %109 = math.exp %108 : vector<4x96xf32>
    %cst_42 = arith.constant 1.000000e+00 : f32
    %110 = vector.broadcast %cst_42 : f32 to vector<4x96xf32>
    %111 = arith.addf %110, %109 : vector<4x96xf32>
    %112 = arith.divf %110, %111 : vector<4x96xf32>
    %113 = vector.extract_strided_slice %112 {offsets = [0, 0], sizes = [4, 32], strides = [1, 1]} : vector<4x96xf32> to vector<4x32xf32>
    %114 = vector.extract_strided_slice %112 {offsets = [0, 32], sizes = [4, 32], strides = [1, 1]} : vector<4x96xf32> to vector<4x32xf32>
    %115 = vector.extract_strided_slice %112 {offsets = [0, 64], sizes = [4, 32], strides = [1, 1]} : vector<4x96xf32> to vector<4x32xf32>
    %116 = vector.extract_strided_slice %106 {offsets = [0, 96], sizes = [4, 32], strides = [1, 1]} : vector<4x128xf32> to vector<4x32xf32>
    %117 = math.tanh %116 : vector<4x32xf32>
    %118 = arith.mulf %114, %23 : vector<4x32xf32>
    %119 = arith.mulf %113, %117 : vector<4x32xf32>
    %120 = arith.addf %118, %119 : vector<4x32xf32>
    %121 = math.tanh %120 : vector<4x32xf32>
    %122 = arith.mulf %115, %121 : vector<4x32xf32>
    %123 = vector.extract_strided_slice %5 {offsets = [4, 0], sizes = [4, 256], strides = [1, 1]} : vector<32x256xf32> to vector<4x256xf32>
    %124 = arith.addf %122, %120 : vector<4x32xf32>
    %cst_43 = arith.constant dense<0.000000e+00> : vector<4x128xf32>
    %125 = tpu.matmul %124, %6, %cst_43 {dimension_numbers = #tpu.dot_dimension_numbers<[1], [0], [0], [1], [0, 0, 1, 1], [], []>} : vector<4x32xf32>, vector<32x128xf32>, vector<4x128xf32> -> vector<4x128xf32>
    %126 = arith.addf %125, %9 : vector<4x128xf32>
    %127 = vector.extract_strided_slice %126 {offsets = [0, 0], sizes = [4, 32], strides = [1, 1]} : vector<4x128xf32> to vector<4x32xf32>
    %128 = vector.extract_strided_slice %126 {offsets = [0, 32], sizes = [4, 32], strides = [1, 1]} : vector<4x128xf32> to vector<4x32xf32>
    %129 = vector.extract_strided_slice %126 {offsets = [0, 64], sizes = [4, 32], strides = [1, 1]} : vector<4x128xf32> to vector<4x32xf32>
    %130 = vector.extract_strided_slice %123 {offsets = [0, 128], sizes = [4, 32], strides = [1, 1]} : vector<4x256xf32> to vector<4x32xf32>
    %131 = arith.addf %129, %130 : vector<4x32xf32>
    %132 = vector.extract_strided_slice %126 {offsets = [0, 96], sizes = [4, 32], strides = [1, 1]} : vector<4x128xf32> to vector<4x32xf32>
    %133 = vector.extract_strided_slice %123 {offsets = [0, 160], sizes = [4, 32], strides = [1, 1]} : vector<4x256xf32> to vector<4x32xf32>
    %134 = arith.addf %132, %133 : vector<4x32xf32>
    %c4 = arith.constant 4 : index
    %c32_44 = arith.constant 32 : index
    %135 = vector.load %arg0[%c4, %c32_44] : memref<32x128xf32, #tpu.memory_space<vmem>>, vector<4x32xf32>
    %cst_45 = arith.constant 5.000000e-01 : f32
    %136 = vector.broadcast %cst_45 : f32 to vector<4x32xf32>
    %137 = arith.mulf %136, %134 : vector<4x32xf32>
    %138 = math.exp %137 : vector<4x32xf32>
    %139 = arith.mulf %138, %135 : vector<4x32xf32>
    %140 = arith.addf %131, %139 : vector<4x32xf32>
    %cst_46 = arith.constant dense<0.000000e+00> : vector<4x32xf32>
    %141 = tpu.matmul %140, %10, %cst_46 {dimension_numbers = #tpu.dot_dimension_numbers<[1], [0], [0], [1], [0, 0, 1, 1], [], []>} : vector<4x32xf32>, vector<32x32xf32>, vector<4x32xf32> -> vector<4x32xf32>
    %142 = arith.addf %141, %13 : vector<4x32xf32>
    %cst_47 = arith.constant 0.000000e+00 : f32
    %143 = vector.broadcast %cst_47 : f32 to vector<4x32xf32>
    %144 = arith.maximumf %142, %143 : vector<4x32xf32>
    %145 = vector.broadcast %cst_47 : f32 to vector<4x32xf32>
    %146 = arith.subf %142, %145 : vector<4x32xf32>
    %147 = arith.cmpf one, %146, %146 : vector<4x32xf32>
    %148 = vector.broadcast %cst_47 : f32 to vector<4x32xf32>
    %149 = arith.addf %142, %148 : vector<4x32xf32>
    %150 = math.absf %146 : vector<4x32xf32>
    %cst_48 = arith.constant 0.000000e+00 : f32
    %151 = vector.broadcast %cst_48 : f32 to vector<4x32xf32>
    %152 = arith.subf %151, %150 : vector<4x32xf32>
    %153 = math.exp %152 : vector<4x32xf32>
    %154 = math.log1p %153 : vector<4x32xf32>
    %155 = arith.addf %144, %154 : vector<4x32xf32>
    %156 = arith.select %147, %149, %155 : vector<4x32xi1>, vector<4x32xf32>
    %157 = arith.subf %134, %128 : vector<4x32xf32>
    %158 = arith.subf %131, %127 : vector<4x32xf32>
    %cst_49 = arith.constant -5.000000e-01 : f32
    %159 = vector.broadcast %cst_49 : f32 to vector<4x32xf32>
    %160 = arith.mulf %159, %157 : vector<4x32xf32>
    %161 = math.exp %157 : vector<4x32xf32>
    %162 = arith.mulf %158, %158 : vector<4x32xf32>
    %cst_50 = arith.constant 0.000000e+00 : f32
    %163 = vector.broadcast %cst_50 : f32 to vector<4x32xf32>
    %164 = arith.subf %163, %128 : vector<4x32xf32>
    %165 = math.exp %164 : vector<4x32xf32>
    %166 = arith.mulf %162, %165 : vector<4x32xf32>
    %167 = arith.addf %161, %166 : vector<4x32xf32>
    %cst_51 = arith.constant 5.000000e-01 : f32
    %168 = vector.broadcast %cst_51 : f32 to vector<4x32xf32>
    %169 = arith.mulf %168, %167 : vector<4x32xf32>
    %170 = arith.addf %160, %169 : vector<4x32xf32>
    %cst_52 = arith.constant 5.000000e-01 : f32
    %171 = vector.broadcast %cst_52 : f32 to vector<4x32xf32>
    %172 = arith.subf %170, %171 : vector<4x32xf32>
    %173 = arith.addf %76, %172 : vector<4x32xf32>
    %c4_53 = arith.constant 4 : index
    %c64_54 = arith.constant 64 : index
    %174 = vector.load %arg0[%c4_53, %c64_54] : memref<32x128xf32, #tpu.memory_space<vmem>>, vector<4x4xf32>
    %175 = vector.extract_strided_slice %123 {offsets = [0, 192], sizes = [4, 4], strides = [1, 1]} : vector<4x256xf32> to vector<4x4xf32>
    %cst_55 = arith.constant dense<0.000000e+00> : vector<4x4xf32>
    %176 = tpu.matmul %156, %14, %cst_55 {dimension_numbers = #tpu.dot_dimension_numbers<[1], [0], [0], [1], [0, 0, 1, 1], [], []>} : vector<4x32xf32>, vector<32x4xf32>, vector<4x4xf32> -> vector<4x4xf32>
    %177 = arith.addf %175, %176 : vector<4x4xf32>
    %178 = arith.subf %177, %174 : vector<4x4xf32>
    %179 = arith.mulf %178, %178 : vector<4x4xf32>
    %180 = arith.addf %83, %179 : vector<4x4xf32>
    %181 = vector.extract_strided_slice %123 {offsets = [0, 0], sizes = [4, 128], strides = [1, 1]} : vector<4x256xf32> to vector<4x128xf32>
    %182 = tpu.concatenate %156, %103 in 1 : vector<4x32xf32>, vector<4x32xf32> -> vector<4x64xf32>
    %cst_56 = arith.constant dense<0.000000e+00> : vector<4x128xf32>
    %183 = tpu.matmul %182, %15, %cst_56 {dimension_numbers = #tpu.dot_dimension_numbers<[1], [0], [0], [1], [0, 0, 1, 1], [], []>} : vector<4x64xf32>, vector<64x128xf32>, vector<4x128xf32> -> vector<4x128xf32>
    %184 = arith.addf %181, %183 : vector<4x128xf32>
    %185 = vector.extract_strided_slice %184 {offsets = [0, 0], sizes = [4, 96], strides = [1, 1]} : vector<4x128xf32> to vector<4x96xf32>
    %186 = arith.negf %185 : vector<4x96xf32>
    %187 = math.exp %186 : vector<4x96xf32>
    %cst_57 = arith.constant 1.000000e+00 : f32
    %188 = vector.broadcast %cst_57 : f32 to vector<4x96xf32>
    %189 = arith.addf %188, %187 : vector<4x96xf32>
    %190 = arith.divf %188, %189 : vector<4x96xf32>
    %191 = vector.extract_strided_slice %190 {offsets = [0, 0], sizes = [4, 32], strides = [1, 1]} : vector<4x96xf32> to vector<4x32xf32>
    %192 = vector.extract_strided_slice %190 {offsets = [0, 32], sizes = [4, 32], strides = [1, 1]} : vector<4x96xf32> to vector<4x32xf32>
    %193 = vector.extract_strided_slice %190 {offsets = [0, 64], sizes = [4, 32], strides = [1, 1]} : vector<4x96xf32> to vector<4x32xf32>
    %194 = vector.extract_strided_slice %184 {offsets = [0, 96], sizes = [4, 32], strides = [1, 1]} : vector<4x128xf32> to vector<4x32xf32>
    %195 = math.tanh %194 : vector<4x32xf32>
    %196 = arith.mulf %192, %101 : vector<4x32xf32>
    %197 = arith.mulf %191, %195 : vector<4x32xf32>
    %198 = arith.addf %196, %197 : vector<4x32xf32>
    %199 = math.tanh %198 : vector<4x32xf32>
    %200 = arith.mulf %193, %199 : vector<4x32xf32>
    %201 = tpu.concatenate %200, %122 in 1 : vector<4x32xf32>, vector<4x32xf32> -> vector<4x64xf32>
    %cst_58 = arith.constant dense<0.000000e+00> : vector<4x128xf32>
    %202 = tpu.matmul %201, %16, %cst_58 {dimension_numbers = #tpu.dot_dimension_numbers<[1], [0], [0], [1], [0, 0, 1, 1], [], []>} : vector<4x64xf32>, vector<64x128xf32>, vector<4x128xf32> -> vector<4x128xf32>
    %203 = arith.addf %202, %19 : vector<4x128xf32>
    %204 = vector.extract_strided_slice %203 {offsets = [0, 0], sizes = [4, 96], strides = [1, 1]} : vector<4x128xf32> to vector<4x96xf32>
    %205 = arith.negf %204 : vector<4x96xf32>
    %206 = math.exp %205 : vector<4x96xf32>
    %cst_59 = arith.constant 1.000000e+00 : f32
    %207 = vector.broadcast %cst_59 : f32 to vector<4x96xf32>
    %208 = arith.addf %207, %206 : vector<4x96xf32>
    %209 = arith.divf %207, %208 : vector<4x96xf32>
    %210 = vector.extract_strided_slice %209 {offsets = [0, 0], sizes = [4, 32], strides = [1, 1]} : vector<4x96xf32> to vector<4x32xf32>
    %211 = vector.extract_strided_slice %209 {offsets = [0, 32], sizes = [4, 32], strides = [1, 1]} : vector<4x96xf32> to vector<4x32xf32>
    %212 = vector.extract_strided_slice %209 {offsets = [0, 64], sizes = [4, 32], strides = [1, 1]} : vector<4x96xf32> to vector<4x32xf32>
    %213 = vector.extract_strided_slice %203 {offsets = [0, 96], sizes = [4, 32], strides = [1, 1]} : vector<4x128xf32> to vector<4x32xf32>
    %214 = math.tanh %213 : vector<4x32xf32>
    %215 = arith.mulf %211, %120 : vector<4x32xf32>
    %216 = arith.mulf %210, %214 : vector<4x32xf32>
    %217 = arith.addf %215, %216 : vector<4x32xf32>
    %218 = math.tanh %217 : vector<4x32xf32>
    %219 = arith.mulf %212, %218 : vector<4x32xf32>
    %220 = vector.extract_strided_slice %5 {offsets = [8, 0], sizes = [4, 256], strides = [1, 1]} : vector<32x256xf32> to vector<4x256xf32>
    %221 = arith.addf %219, %217 : vector<4x32xf32>
    %cst_60 = arith.constant dense<0.000000e+00> : vector<4x128xf32>
    %222 = tpu.matmul %221, %6, %cst_60 {dimension_numbers = #tpu.dot_dimension_numbers<[1], [0], [0], [1], [0, 0, 1, 1], [], []>} : vector<4x32xf32>, vector<32x128xf32>, vector<4x128xf32> -> vector<4x128xf32>
    %223 = arith.addf %222, %9 : vector<4x128xf32>
    %224 = vector.extract_strided_slice %223 {offsets = [0, 0], sizes = [4, 32], strides = [1, 1]} : vector<4x128xf32> to vector<4x32xf32>
    %225 = vector.extract_strided_slice %223 {offsets = [0, 32], sizes = [4, 32], strides = [1, 1]} : vector<4x128xf32> to vector<4x32xf32>
    %226 = vector.extract_strided_slice %223 {offsets = [0, 64], sizes = [4, 32], strides = [1, 1]} : vector<4x128xf32> to vector<4x32xf32>
    %227 = vector.extract_strided_slice %220 {offsets = [0, 128], sizes = [4, 32], strides = [1, 1]} : vector<4x256xf32> to vector<4x32xf32>
    %228 = arith.addf %226, %227 : vector<4x32xf32>
    %229 = vector.extract_strided_slice %223 {offsets = [0, 96], sizes = [4, 32], strides = [1, 1]} : vector<4x128xf32> to vector<4x32xf32>
    %230 = vector.extract_strided_slice %220 {offsets = [0, 160], sizes = [4, 32], strides = [1, 1]} : vector<4x256xf32> to vector<4x32xf32>
    %231 = arith.addf %229, %230 : vector<4x32xf32>
    %c8 = arith.constant 8 : index
    %c32_61 = arith.constant 32 : index
    %232 = vector.load %arg0[%c8, %c32_61] : memref<32x128xf32, #tpu.memory_space<vmem>>, vector<4x32xf32>
    %cst_62 = arith.constant 5.000000e-01 : f32
    %233 = vector.broadcast %cst_62 : f32 to vector<4x32xf32>
    %234 = arith.mulf %233, %231 : vector<4x32xf32>
    %235 = math.exp %234 : vector<4x32xf32>
    %236 = arith.mulf %235, %232 : vector<4x32xf32>
    %237 = arith.addf %228, %236 : vector<4x32xf32>
    %cst_63 = arith.constant dense<0.000000e+00> : vector<4x32xf32>
    %238 = tpu.matmul %237, %10, %cst_63 {dimension_numbers = #tpu.dot_dimension_numbers<[1], [0], [0], [1], [0, 0, 1, 1], [], []>} : vector<4x32xf32>, vector<32x32xf32>, vector<4x32xf32> -> vector<4x32xf32>
    %239 = arith.addf %238, %13 : vector<4x32xf32>
    %cst_64 = arith.constant 0.000000e+00 : f32
    %240 = vector.broadcast %cst_64 : f32 to vector<4x32xf32>
    %241 = arith.maximumf %239, %240 : vector<4x32xf32>
    %242 = vector.broadcast %cst_64 : f32 to vector<4x32xf32>
    %243 = arith.subf %239, %242 : vector<4x32xf32>
    %244 = arith.cmpf one, %243, %243 : vector<4x32xf32>
    %245 = vector.broadcast %cst_64 : f32 to vector<4x32xf32>
    %246 = arith.addf %239, %245 : vector<4x32xf32>
    %247 = math.absf %243 : vector<4x32xf32>
    %cst_65 = arith.constant 0.000000e+00 : f32
    %248 = vector.broadcast %cst_65 : f32 to vector<4x32xf32>
    %249 = arith.subf %248, %247 : vector<4x32xf32>
    %250 = math.exp %249 : vector<4x32xf32>
    %251 = math.log1p %250 : vector<4x32xf32>
    %252 = arith.addf %241, %251 : vector<4x32xf32>
    %253 = arith.select %244, %246, %252 : vector<4x32xi1>, vector<4x32xf32>
    %254 = arith.subf %231, %225 : vector<4x32xf32>
    %255 = arith.subf %228, %224 : vector<4x32xf32>
    %cst_66 = arith.constant -5.000000e-01 : f32
    %256 = vector.broadcast %cst_66 : f32 to vector<4x32xf32>
    %257 = arith.mulf %256, %254 : vector<4x32xf32>
    %258 = math.exp %254 : vector<4x32xf32>
    %259 = arith.mulf %255, %255 : vector<4x32xf32>
    %cst_67 = arith.constant 0.000000e+00 : f32
    %260 = vector.broadcast %cst_67 : f32 to vector<4x32xf32>
    %261 = arith.subf %260, %225 : vector<4x32xf32>
    %262 = math.exp %261 : vector<4x32xf32>
    %263 = arith.mulf %259, %262 : vector<4x32xf32>
    %264 = arith.addf %258, %263 : vector<4x32xf32>
    %cst_68 = arith.constant 5.000000e-01 : f32
    %265 = vector.broadcast %cst_68 : f32 to vector<4x32xf32>
    %266 = arith.mulf %265, %264 : vector<4x32xf32>
    %267 = arith.addf %257, %266 : vector<4x32xf32>
    %cst_69 = arith.constant 5.000000e-01 : f32
    %268 = vector.broadcast %cst_69 : f32 to vector<4x32xf32>
    %269 = arith.subf %267, %268 : vector<4x32xf32>
    %270 = arith.addf %173, %269 : vector<4x32xf32>
    %c8_70 = arith.constant 8 : index
    %c64_71 = arith.constant 64 : index
    %271 = vector.load %arg0[%c8_70, %c64_71] : memref<32x128xf32, #tpu.memory_space<vmem>>, vector<4x4xf32>
    %272 = vector.extract_strided_slice %220 {offsets = [0, 192], sizes = [4, 4], strides = [1, 1]} : vector<4x256xf32> to vector<4x4xf32>
    %cst_72 = arith.constant dense<0.000000e+00> : vector<4x4xf32>
    %273 = tpu.matmul %253, %14, %cst_72 {dimension_numbers = #tpu.dot_dimension_numbers<[1], [0], [0], [1], [0, 0, 1, 1], [], []>} : vector<4x32xf32>, vector<32x4xf32>, vector<4x4xf32> -> vector<4x4xf32>
    %274 = arith.addf %272, %273 : vector<4x4xf32>
    %275 = arith.subf %274, %271 : vector<4x4xf32>
    %276 = arith.mulf %275, %275 : vector<4x4xf32>
    %277 = arith.addf %180, %276 : vector<4x4xf32>
    %278 = vector.extract_strided_slice %220 {offsets = [0, 0], sizes = [4, 128], strides = [1, 1]} : vector<4x256xf32> to vector<4x128xf32>
    %279 = tpu.concatenate %253, %200 in 1 : vector<4x32xf32>, vector<4x32xf32> -> vector<4x64xf32>
    %cst_73 = arith.constant dense<0.000000e+00> : vector<4x128xf32>
    %280 = tpu.matmul %279, %15, %cst_73 {dimension_numbers = #tpu.dot_dimension_numbers<[1], [0], [0], [1], [0, 0, 1, 1], [], []>} : vector<4x64xf32>, vector<64x128xf32>, vector<4x128xf32> -> vector<4x128xf32>
    %281 = arith.addf %278, %280 : vector<4x128xf32>
    %282 = vector.extract_strided_slice %281 {offsets = [0, 0], sizes = [4, 96], strides = [1, 1]} : vector<4x128xf32> to vector<4x96xf32>
    %283 = arith.negf %282 : vector<4x96xf32>
    %284 = math.exp %283 : vector<4x96xf32>
    %cst_74 = arith.constant 1.000000e+00 : f32
    %285 = vector.broadcast %cst_74 : f32 to vector<4x96xf32>
    %286 = arith.addf %285, %284 : vector<4x96xf32>
    %287 = arith.divf %285, %286 : vector<4x96xf32>
    %288 = vector.extract_strided_slice %287 {offsets = [0, 0], sizes = [4, 32], strides = [1, 1]} : vector<4x96xf32> to vector<4x32xf32>
    %289 = vector.extract_strided_slice %287 {offsets = [0, 32], sizes = [4, 32], strides = [1, 1]} : vector<4x96xf32> to vector<4x32xf32>
    %290 = vector.extract_strided_slice %287 {offsets = [0, 64], sizes = [4, 32], strides = [1, 1]} : vector<4x96xf32> to vector<4x32xf32>
    %291 = vector.extract_strided_slice %281 {offsets = [0, 96], sizes = [4, 32], strides = [1, 1]} : vector<4x128xf32> to vector<4x32xf32>
    %292 = math.tanh %291 : vector<4x32xf32>
    %293 = arith.mulf %289, %198 : vector<4x32xf32>
    %294 = arith.mulf %288, %292 : vector<4x32xf32>
    %295 = arith.addf %293, %294 : vector<4x32xf32>
    %296 = math.tanh %295 : vector<4x32xf32>
    %297 = arith.mulf %290, %296 : vector<4x32xf32>
    %298 = tpu.concatenate %297, %219 in 1 : vector<4x32xf32>, vector<4x32xf32> -> vector<4x64xf32>
    %cst_75 = arith.constant dense<0.000000e+00> : vector<4x128xf32>
    %299 = tpu.matmul %298, %16, %cst_75 {dimension_numbers = #tpu.dot_dimension_numbers<[1], [0], [0], [1], [0, 0, 1, 1], [], []>} : vector<4x64xf32>, vector<64x128xf32>, vector<4x128xf32> -> vector<4x128xf32>
    %300 = arith.addf %299, %19 : vector<4x128xf32>
    %301 = vector.extract_strided_slice %300 {offsets = [0, 0], sizes = [4, 96], strides = [1, 1]} : vector<4x128xf32> to vector<4x96xf32>
    %302 = arith.negf %301 : vector<4x96xf32>
    %303 = math.exp %302 : vector<4x96xf32>
    %cst_76 = arith.constant 1.000000e+00 : f32
    %304 = vector.broadcast %cst_76 : f32 to vector<4x96xf32>
    %305 = arith.addf %304, %303 : vector<4x96xf32>
    %306 = arith.divf %304, %305 : vector<4x96xf32>
    %307 = vector.extract_strided_slice %306 {offsets = [0, 0], sizes = [4, 32], strides = [1, 1]} : vector<4x96xf32> to vector<4x32xf32>
    %308 = vector.extract_strided_slice %306 {offsets = [0, 32], sizes = [4, 32], strides = [1, 1]} : vector<4x96xf32> to vector<4x32xf32>
    %309 = vector.extract_strided_slice %306 {offsets = [0, 64], sizes = [4, 32], strides = [1, 1]} : vector<4x96xf32> to vector<4x32xf32>
    %310 = vector.extract_strided_slice %300 {offsets = [0, 96], sizes = [4, 32], strides = [1, 1]} : vector<4x128xf32> to vector<4x32xf32>
    %311 = math.tanh %310 : vector<4x32xf32>
    %312 = arith.mulf %308, %217 : vector<4x32xf32>
    %313 = arith.mulf %307, %311 : vector<4x32xf32>
    %314 = arith.addf %312, %313 : vector<4x32xf32>
    %315 = math.tanh %314 : vector<4x32xf32>
    %316 = arith.mulf %309, %315 : vector<4x32xf32>
    %317 = vector.extract_strided_slice %5 {offsets = [12, 0], sizes = [4, 256], strides = [1, 1]} : vector<32x256xf32> to vector<4x256xf32>
    %318 = arith.addf %316, %314 : vector<4x32xf32>
    %cst_77 = arith.constant dense<0.000000e+00> : vector<4x128xf32>
    %319 = tpu.matmul %318, %6, %cst_77 {dimension_numbers = #tpu.dot_dimension_numbers<[1], [0], [0], [1], [0, 0, 1, 1], [], []>} : vector<4x32xf32>, vector<32x128xf32>, vector<4x128xf32> -> vector<4x128xf32>
    %320 = arith.addf %319, %9 : vector<4x128xf32>
    %321 = vector.extract_strided_slice %320 {offsets = [0, 0], sizes = [4, 32], strides = [1, 1]} : vector<4x128xf32> to vector<4x32xf32>
    %322 = vector.extract_strided_slice %320 {offsets = [0, 32], sizes = [4, 32], strides = [1, 1]} : vector<4x128xf32> to vector<4x32xf32>
    %323 = vector.extract_strided_slice %320 {offsets = [0, 64], sizes = [4, 32], strides = [1, 1]} : vector<4x128xf32> to vector<4x32xf32>
    %324 = vector.extract_strided_slice %317 {offsets = [0, 128], sizes = [4, 32], strides = [1, 1]} : vector<4x256xf32> to vector<4x32xf32>
    %325 = arith.addf %323, %324 : vector<4x32xf32>
    %326 = vector.extract_strided_slice %320 {offsets = [0, 96], sizes = [4, 32], strides = [1, 1]} : vector<4x128xf32> to vector<4x32xf32>
    %327 = vector.extract_strided_slice %317 {offsets = [0, 160], sizes = [4, 32], strides = [1, 1]} : vector<4x256xf32> to vector<4x32xf32>
    %328 = arith.addf %326, %327 : vector<4x32xf32>
    %c12 = arith.constant 12 : index
    %c32_78 = arith.constant 32 : index
    %329 = vector.load %arg0[%c12, %c32_78] : memref<32x128xf32, #tpu.memory_space<vmem>>, vector<4x32xf32>
    %cst_79 = arith.constant 5.000000e-01 : f32
    %330 = vector.broadcast %cst_79 : f32 to vector<4x32xf32>
    %331 = arith.mulf %330, %328 : vector<4x32xf32>
    %332 = math.exp %331 : vector<4x32xf32>
    %333 = arith.mulf %332, %329 : vector<4x32xf32>
    %334 = arith.addf %325, %333 : vector<4x32xf32>
    %cst_80 = arith.constant dense<0.000000e+00> : vector<4x32xf32>
    %335 = tpu.matmul %334, %10, %cst_80 {dimension_numbers = #tpu.dot_dimension_numbers<[1], [0], [0], [1], [0, 0, 1, 1], [], []>} : vector<4x32xf32>, vector<32x32xf32>, vector<4x32xf32> -> vector<4x32xf32>
    %336 = arith.addf %335, %13 : vector<4x32xf32>
    %cst_81 = arith.constant 0.000000e+00 : f32
    %337 = vector.broadcast %cst_81 : f32 to vector<4x32xf32>
    %338 = arith.maximumf %336, %337 : vector<4x32xf32>
    %339 = vector.broadcast %cst_81 : f32 to vector<4x32xf32>
    %340 = arith.subf %336, %339 : vector<4x32xf32>
    %341 = arith.cmpf one, %340, %340 : vector<4x32xf32>
    %342 = vector.broadcast %cst_81 : f32 to vector<4x32xf32>
    %343 = arith.addf %336, %342 : vector<4x32xf32>
    %344 = math.absf %340 : vector<4x32xf32>
    %cst_82 = arith.constant 0.000000e+00 : f32
    %345 = vector.broadcast %cst_82 : f32 to vector<4x32xf32>
    %346 = arith.subf %345, %344 : vector<4x32xf32>
    %347 = math.exp %346 : vector<4x32xf32>
    %348 = math.log1p %347 : vector<4x32xf32>
    %349 = arith.addf %338, %348 : vector<4x32xf32>
    %350 = arith.select %341, %343, %349 : vector<4x32xi1>, vector<4x32xf32>
    %351 = arith.subf %328, %322 : vector<4x32xf32>
    %352 = arith.subf %325, %321 : vector<4x32xf32>
    %cst_83 = arith.constant -5.000000e-01 : f32
    %353 = vector.broadcast %cst_83 : f32 to vector<4x32xf32>
    %354 = arith.mulf %353, %351 : vector<4x32xf32>
    %355 = math.exp %351 : vector<4x32xf32>
    %356 = arith.mulf %352, %352 : vector<4x32xf32>
    %cst_84 = arith.constant 0.000000e+00 : f32
    %357 = vector.broadcast %cst_84 : f32 to vector<4x32xf32>
    %358 = arith.subf %357, %322 : vector<4x32xf32>
    %359 = math.exp %358 : vector<4x32xf32>
    %360 = arith.mulf %356, %359 : vector<4x32xf32>
    %361 = arith.addf %355, %360 : vector<4x32xf32>
    %cst_85 = arith.constant 5.000000e-01 : f32
    %362 = vector.broadcast %cst_85 : f32 to vector<4x32xf32>
    %363 = arith.mulf %362, %361 : vector<4x32xf32>
    %364 = arith.addf %354, %363 : vector<4x32xf32>
    %cst_86 = arith.constant 5.000000e-01 : f32
    %365 = vector.broadcast %cst_86 : f32 to vector<4x32xf32>
    %366 = arith.subf %364, %365 : vector<4x32xf32>
    %367 = arith.addf %270, %366 : vector<4x32xf32>
    %c12_87 = arith.constant 12 : index
    %c64_88 = arith.constant 64 : index
    %368 = vector.load %arg0[%c12_87, %c64_88] : memref<32x128xf32, #tpu.memory_space<vmem>>, vector<4x4xf32>
    %369 = vector.extract_strided_slice %317 {offsets = [0, 192], sizes = [4, 4], strides = [1, 1]} : vector<4x256xf32> to vector<4x4xf32>
    %cst_89 = arith.constant dense<0.000000e+00> : vector<4x4xf32>
    %370 = tpu.matmul %350, %14, %cst_89 {dimension_numbers = #tpu.dot_dimension_numbers<[1], [0], [0], [1], [0, 0, 1, 1], [], []>} : vector<4x32xf32>, vector<32x4xf32>, vector<4x4xf32> -> vector<4x4xf32>
    %371 = arith.addf %369, %370 : vector<4x4xf32>
    %372 = arith.subf %371, %368 : vector<4x4xf32>
    %373 = arith.mulf %372, %372 : vector<4x4xf32>
    %374 = arith.addf %277, %373 : vector<4x4xf32>
    %375 = vector.extract_strided_slice %317 {offsets = [0, 0], sizes = [4, 128], strides = [1, 1]} : vector<4x256xf32> to vector<4x128xf32>
    %376 = tpu.concatenate %350, %297 in 1 : vector<4x32xf32>, vector<4x32xf32> -> vector<4x64xf32>
    %cst_90 = arith.constant dense<0.000000e+00> : vector<4x128xf32>
    %377 = tpu.matmul %376, %15, %cst_90 {dimension_numbers = #tpu.dot_dimension_numbers<[1], [0], [0], [1], [0, 0, 1, 1], [], []>} : vector<4x64xf32>, vector<64x128xf32>, vector<4x128xf32> -> vector<4x128xf32>
    %378 = arith.addf %375, %377 : vector<4x128xf32>
    %379 = vector.extract_strided_slice %378 {offsets = [0, 0], sizes = [4, 96], strides = [1, 1]} : vector<4x128xf32> to vector<4x96xf32>
    %380 = arith.negf %379 : vector<4x96xf32>
    %381 = math.exp %380 : vector<4x96xf32>
    %cst_91 = arith.constant 1.000000e+00 : f32
    %382 = vector.broadcast %cst_91 : f32 to vector<4x96xf32>
    %383 = arith.addf %382, %381 : vector<4x96xf32>
    %384 = arith.divf %382, %383 : vector<4x96xf32>
    %385 = vector.extract_strided_slice %384 {offsets = [0, 0], sizes = [4, 32], strides = [1, 1]} : vector<4x96xf32> to vector<4x32xf32>
    %386 = vector.extract_strided_slice %384 {offsets = [0, 32], sizes = [4, 32], strides = [1, 1]} : vector<4x96xf32> to vector<4x32xf32>
    %387 = vector.extract_strided_slice %384 {offsets = [0, 64], sizes = [4, 32], strides = [1, 1]} : vector<4x96xf32> to vector<4x32xf32>
    %388 = vector.extract_strided_slice %378 {offsets = [0, 96], sizes = [4, 32], strides = [1, 1]} : vector<4x128xf32> to vector<4x32xf32>
    %389 = math.tanh %388 : vector<4x32xf32>
    %390 = arith.mulf %386, %295 : vector<4x32xf32>
    %391 = arith.mulf %385, %389 : vector<4x32xf32>
    %392 = arith.addf %390, %391 : vector<4x32xf32>
    %393 = math.tanh %392 : vector<4x32xf32>
    %394 = arith.mulf %387, %393 : vector<4x32xf32>
    %395 = tpu.concatenate %394, %316 in 1 : vector<4x32xf32>, vector<4x32xf32> -> vector<4x64xf32>
    %cst_92 = arith.constant dense<0.000000e+00> : vector<4x128xf32>
    %396 = tpu.matmul %395, %16, %cst_92 {dimension_numbers = #tpu.dot_dimension_numbers<[1], [0], [0], [1], [0, 0, 1, 1], [], []>} : vector<4x64xf32>, vector<64x128xf32>, vector<4x128xf32> -> vector<4x128xf32>
    %397 = arith.addf %396, %19 : vector<4x128xf32>
    %398 = vector.extract_strided_slice %397 {offsets = [0, 0], sizes = [4, 96], strides = [1, 1]} : vector<4x128xf32> to vector<4x96xf32>
    %399 = arith.negf %398 : vector<4x96xf32>
    %400 = math.exp %399 : vector<4x96xf32>
    %cst_93 = arith.constant 1.000000e+00 : f32
    %401 = vector.broadcast %cst_93 : f32 to vector<4x96xf32>
    %402 = arith.addf %401, %400 : vector<4x96xf32>
    %403 = arith.divf %401, %402 : vector<4x96xf32>
    %404 = vector.extract_strided_slice %403 {offsets = [0, 0], sizes = [4, 32], strides = [1, 1]} : vector<4x96xf32> to vector<4x32xf32>
    %405 = vector.extract_strided_slice %403 {offsets = [0, 32], sizes = [4, 32], strides = [1, 1]} : vector<4x96xf32> to vector<4x32xf32>
    %406 = vector.extract_strided_slice %403 {offsets = [0, 64], sizes = [4, 32], strides = [1, 1]} : vector<4x96xf32> to vector<4x32xf32>
    %407 = vector.extract_strided_slice %397 {offsets = [0, 96], sizes = [4, 32], strides = [1, 1]} : vector<4x128xf32> to vector<4x32xf32>
    %408 = math.tanh %407 : vector<4x32xf32>
    %409 = arith.mulf %405, %314 : vector<4x32xf32>
    %410 = arith.mulf %404, %408 : vector<4x32xf32>
    %411 = arith.addf %409, %410 : vector<4x32xf32>
    %412 = math.tanh %411 : vector<4x32xf32>
    %413 = arith.mulf %406, %412 : vector<4x32xf32>
    %414 = vector.extract_strided_slice %5 {offsets = [16, 0], sizes = [4, 256], strides = [1, 1]} : vector<32x256xf32> to vector<4x256xf32>
    %415 = arith.addf %413, %411 : vector<4x32xf32>
    %cst_94 = arith.constant dense<0.000000e+00> : vector<4x128xf32>
    %416 = tpu.matmul %415, %6, %cst_94 {dimension_numbers = #tpu.dot_dimension_numbers<[1], [0], [0], [1], [0, 0, 1, 1], [], []>} : vector<4x32xf32>, vector<32x128xf32>, vector<4x128xf32> -> vector<4x128xf32>
    %417 = arith.addf %416, %9 : vector<4x128xf32>
    %418 = vector.extract_strided_slice %417 {offsets = [0, 0], sizes = [4, 32], strides = [1, 1]} : vector<4x128xf32> to vector<4x32xf32>
    %419 = vector.extract_strided_slice %417 {offsets = [0, 32], sizes = [4, 32], strides = [1, 1]} : vector<4x128xf32> to vector<4x32xf32>
    %420 = vector.extract_strided_slice %417 {offsets = [0, 64], sizes = [4, 32], strides = [1, 1]} : vector<4x128xf32> to vector<4x32xf32>
    %421 = vector.extract_strided_slice %414 {offsets = [0, 128], sizes = [4, 32], strides = [1, 1]} : vector<4x256xf32> to vector<4x32xf32>
    %422 = arith.addf %420, %421 : vector<4x32xf32>
    %423 = vector.extract_strided_slice %417 {offsets = [0, 96], sizes = [4, 32], strides = [1, 1]} : vector<4x128xf32> to vector<4x32xf32>
    %424 = vector.extract_strided_slice %414 {offsets = [0, 160], sizes = [4, 32], strides = [1, 1]} : vector<4x256xf32> to vector<4x32xf32>
    %425 = arith.addf %423, %424 : vector<4x32xf32>
    %c16 = arith.constant 16 : index
    %c32_95 = arith.constant 32 : index
    %426 = vector.load %arg0[%c16, %c32_95] : memref<32x128xf32, #tpu.memory_space<vmem>>, vector<4x32xf32>
    %cst_96 = arith.constant 5.000000e-01 : f32
    %427 = vector.broadcast %cst_96 : f32 to vector<4x32xf32>
    %428 = arith.mulf %427, %425 : vector<4x32xf32>
    %429 = math.exp %428 : vector<4x32xf32>
    %430 = arith.mulf %429, %426 : vector<4x32xf32>
    %431 = arith.addf %422, %430 : vector<4x32xf32>
    %cst_97 = arith.constant dense<0.000000e+00> : vector<4x32xf32>
    %432 = tpu.matmul %431, %10, %cst_97 {dimension_numbers = #tpu.dot_dimension_numbers<[1], [0], [0], [1], [0, 0, 1, 1], [], []>} : vector<4x32xf32>, vector<32x32xf32>, vector<4x32xf32> -> vector<4x32xf32>
    %433 = arith.addf %432, %13 : vector<4x32xf32>
    %cst_98 = arith.constant 0.000000e+00 : f32
    %434 = vector.broadcast %cst_98 : f32 to vector<4x32xf32>
    %435 = arith.maximumf %433, %434 : vector<4x32xf32>
    %436 = vector.broadcast %cst_98 : f32 to vector<4x32xf32>
    %437 = arith.subf %433, %436 : vector<4x32xf32>
    %438 = arith.cmpf one, %437, %437 : vector<4x32xf32>
    %439 = vector.broadcast %cst_98 : f32 to vector<4x32xf32>
    %440 = arith.addf %433, %439 : vector<4x32xf32>
    %441 = math.absf %437 : vector<4x32xf32>
    %cst_99 = arith.constant 0.000000e+00 : f32
    %442 = vector.broadcast %cst_99 : f32 to vector<4x32xf32>
    %443 = arith.subf %442, %441 : vector<4x32xf32>
    %444 = math.exp %443 : vector<4x32xf32>
    %445 = math.log1p %444 : vector<4x32xf32>
    %446 = arith.addf %435, %445 : vector<4x32xf32>
    %447 = arith.select %438, %440, %446 : vector<4x32xi1>, vector<4x32xf32>
    %448 = arith.subf %425, %419 : vector<4x32xf32>
    %449 = arith.subf %422, %418 : vector<4x32xf32>
    %cst_100 = arith.constant -5.000000e-01 : f32
    %450 = vector.broadcast %cst_100 : f32 to vector<4x32xf32>
    %451 = arith.mulf %450, %448 : vector<4x32xf32>
    %452 = math.exp %448 : vector<4x32xf32>
    %453 = arith.mulf %449, %449 : vector<4x32xf32>
    %cst_101 = arith.constant 0.000000e+00 : f32
    %454 = vector.broadcast %cst_101 : f32 to vector<4x32xf32>
    %455 = arith.subf %454, %419 : vector<4x32xf32>
    %456 = math.exp %455 : vector<4x32xf32>
    %457 = arith.mulf %453, %456 : vector<4x32xf32>
    %458 = arith.addf %452, %457 : vector<4x32xf32>
    %cst_102 = arith.constant 5.000000e-01 : f32
    %459 = vector.broadcast %cst_102 : f32 to vector<4x32xf32>
    %460 = arith.mulf %459, %458 : vector<4x32xf32>
    %461 = arith.addf %451, %460 : vector<4x32xf32>
    %cst_103 = arith.constant 5.000000e-01 : f32
    %462 = vector.broadcast %cst_103 : f32 to vector<4x32xf32>
    %463 = arith.subf %461, %462 : vector<4x32xf32>
    %464 = arith.addf %367, %463 : vector<4x32xf32>
    %c16_104 = arith.constant 16 : index
    %c64_105 = arith.constant 64 : index
    %465 = vector.load %arg0[%c16_104, %c64_105] : memref<32x128xf32, #tpu.memory_space<vmem>>, vector<4x4xf32>
    %466 = vector.extract_strided_slice %414 {offsets = [0, 192], sizes = [4, 4], strides = [1, 1]} : vector<4x256xf32> to vector<4x4xf32>
    %cst_106 = arith.constant dense<0.000000e+00> : vector<4x4xf32>
    %467 = tpu.matmul %447, %14, %cst_106 {dimension_numbers = #tpu.dot_dimension_numbers<[1], [0], [0], [1], [0, 0, 1, 1], [], []>} : vector<4x32xf32>, vector<32x4xf32>, vector<4x4xf32> -> vector<4x4xf32>
    %468 = arith.addf %466, %467 : vector<4x4xf32>
    %469 = arith.subf %468, %465 : vector<4x4xf32>
    %470 = arith.mulf %469, %469 : vector<4x4xf32>
    %471 = arith.addf %374, %470 : vector<4x4xf32>
    %472 = vector.extract_strided_slice %414 {offsets = [0, 0], sizes = [4, 128], strides = [1, 1]} : vector<4x256xf32> to vector<4x128xf32>
    %473 = tpu.concatenate %447, %394 in 1 : vector<4x32xf32>, vector<4x32xf32> -> vector<4x64xf32>
    %cst_107 = arith.constant dense<0.000000e+00> : vector<4x128xf32>
    %474 = tpu.matmul %473, %15, %cst_107 {dimension_numbers = #tpu.dot_dimension_numbers<[1], [0], [0], [1], [0, 0, 1, 1], [], []>} : vector<4x64xf32>, vector<64x128xf32>, vector<4x128xf32> -> vector<4x128xf32>
    %475 = arith.addf %472, %474 : vector<4x128xf32>
    %476 = vector.extract_strided_slice %475 {offsets = [0, 0], sizes = [4, 96], strides = [1, 1]} : vector<4x128xf32> to vector<4x96xf32>
    %477 = arith.negf %476 : vector<4x96xf32>
    %478 = math.exp %477 : vector<4x96xf32>
    %cst_108 = arith.constant 1.000000e+00 : f32
    %479 = vector.broadcast %cst_108 : f32 to vector<4x96xf32>
    %480 = arith.addf %479, %478 : vector<4x96xf32>
    %481 = arith.divf %479, %480 : vector<4x96xf32>
    %482 = vector.extract_strided_slice %481 {offsets = [0, 0], sizes = [4, 32], strides = [1, 1]} : vector<4x96xf32> to vector<4x32xf32>
    %483 = vector.extract_strided_slice %481 {offsets = [0, 32], sizes = [4, 32], strides = [1, 1]} : vector<4x96xf32> to vector<4x32xf32>
    %484 = vector.extract_strided_slice %481 {offsets = [0, 64], sizes = [4, 32], strides = [1, 1]} : vector<4x96xf32> to vector<4x32xf32>
    %485 = vector.extract_strided_slice %475 {offsets = [0, 96], sizes = [4, 32], strides = [1, 1]} : vector<4x128xf32> to vector<4x32xf32>
    %486 = math.tanh %485 : vector<4x32xf32>
    %487 = arith.mulf %483, %392 : vector<4x32xf32>
    %488 = arith.mulf %482, %486 : vector<4x32xf32>
    %489 = arith.addf %487, %488 : vector<4x32xf32>
    %490 = math.tanh %489 : vector<4x32xf32>
    %491 = arith.mulf %484, %490 : vector<4x32xf32>
    %492 = tpu.concatenate %491, %413 in 1 : vector<4x32xf32>, vector<4x32xf32> -> vector<4x64xf32>
    %cst_109 = arith.constant dense<0.000000e+00> : vector<4x128xf32>
    %493 = tpu.matmul %492, %16, %cst_109 {dimension_numbers = #tpu.dot_dimension_numbers<[1], [0], [0], [1], [0, 0, 1, 1], [], []>} : vector<4x64xf32>, vector<64x128xf32>, vector<4x128xf32> -> vector<4x128xf32>
    %494 = arith.addf %493, %19 : vector<4x128xf32>
    %495 = vector.extract_strided_slice %494 {offsets = [0, 0], sizes = [4, 96], strides = [1, 1]} : vector<4x128xf32> to vector<4x96xf32>
    %496 = arith.negf %495 : vector<4x96xf32>
    %497 = math.exp %496 : vector<4x96xf32>
    %cst_110 = arith.constant 1.000000e+00 : f32
    %498 = vector.broadcast %cst_110 : f32 to vector<4x96xf32>
    %499 = arith.addf %498, %497 : vector<4x96xf32>
    %500 = arith.divf %498, %499 : vector<4x96xf32>
    %501 = vector.extract_strided_slice %500 {offsets = [0, 0], sizes = [4, 32], strides = [1, 1]} : vector<4x96xf32> to vector<4x32xf32>
    %502 = vector.extract_strided_slice %500 {offsets = [0, 32], sizes = [4, 32], strides = [1, 1]} : vector<4x96xf32> to vector<4x32xf32>
    %503 = vector.extract_strided_slice %500 {offsets = [0, 64], sizes = [4, 32], strides = [1, 1]} : vector<4x96xf32> to vector<4x32xf32>
    %504 = vector.extract_strided_slice %494 {offsets = [0, 96], sizes = [4, 32], strides = [1, 1]} : vector<4x128xf32> to vector<4x32xf32>
    %505 = math.tanh %504 : vector<4x32xf32>
    %506 = arith.mulf %502, %411 : vector<4x32xf32>
    %507 = arith.mulf %501, %505 : vector<4x32xf32>
    %508 = arith.addf %506, %507 : vector<4x32xf32>
    %509 = math.tanh %508 : vector<4x32xf32>
    %510 = arith.mulf %503, %509 : vector<4x32xf32>
    %511 = vector.extract_strided_slice %5 {offsets = [20, 0], sizes = [4, 256], strides = [1, 1]} : vector<32x256xf32> to vector<4x256xf32>
    %512 = arith.addf %510, %508 : vector<4x32xf32>
    %cst_111 = arith.constant dense<0.000000e+00> : vector<4x128xf32>
    %513 = tpu.matmul %512, %6, %cst_111 {dimension_numbers = #tpu.dot_dimension_numbers<[1], [0], [0], [1], [0, 0, 1, 1], [], []>} : vector<4x32xf32>, vector<32x128xf32>, vector<4x128xf32> -> vector<4x128xf32>
    %514 = arith.addf %513, %9 : vector<4x128xf32>
    %515 = vector.extract_strided_slice %514 {offsets = [0, 0], sizes = [4, 32], strides = [1, 1]} : vector<4x128xf32> to vector<4x32xf32>
    %516 = vector.extract_strided_slice %514 {offsets = [0, 32], sizes = [4, 32], strides = [1, 1]} : vector<4x128xf32> to vector<4x32xf32>
    %517 = vector.extract_strided_slice %514 {offsets = [0, 64], sizes = [4, 32], strides = [1, 1]} : vector<4x128xf32> to vector<4x32xf32>
    %518 = vector.extract_strided_slice %511 {offsets = [0, 128], sizes = [4, 32], strides = [1, 1]} : vector<4x256xf32> to vector<4x32xf32>
    %519 = arith.addf %517, %518 : vector<4x32xf32>
    %520 = vector.extract_strided_slice %514 {offsets = [0, 96], sizes = [4, 32], strides = [1, 1]} : vector<4x128xf32> to vector<4x32xf32>
    %521 = vector.extract_strided_slice %511 {offsets = [0, 160], sizes = [4, 32], strides = [1, 1]} : vector<4x256xf32> to vector<4x32xf32>
    %522 = arith.addf %520, %521 : vector<4x32xf32>
    %c20 = arith.constant 20 : index
    %c32_112 = arith.constant 32 : index
    %523 = vector.load %arg0[%c20, %c32_112] : memref<32x128xf32, #tpu.memory_space<vmem>>, vector<4x32xf32>
    %cst_113 = arith.constant 5.000000e-01 : f32
    %524 = vector.broadcast %cst_113 : f32 to vector<4x32xf32>
    %525 = arith.mulf %524, %522 : vector<4x32xf32>
    %526 = math.exp %525 : vector<4x32xf32>
    %527 = arith.mulf %526, %523 : vector<4x32xf32>
    %528 = arith.addf %519, %527 : vector<4x32xf32>
    %cst_114 = arith.constant dense<0.000000e+00> : vector<4x32xf32>
    %529 = tpu.matmul %528, %10, %cst_114 {dimension_numbers = #tpu.dot_dimension_numbers<[1], [0], [0], [1], [0, 0, 1, 1], [], []>} : vector<4x32xf32>, vector<32x32xf32>, vector<4x32xf32> -> vector<4x32xf32>
    %530 = arith.addf %529, %13 : vector<4x32xf32>
    %cst_115 = arith.constant 0.000000e+00 : f32
    %531 = vector.broadcast %cst_115 : f32 to vector<4x32xf32>
    %532 = arith.maximumf %530, %531 : vector<4x32xf32>
    %533 = vector.broadcast %cst_115 : f32 to vector<4x32xf32>
    %534 = arith.subf %530, %533 : vector<4x32xf32>
    %535 = arith.cmpf one, %534, %534 : vector<4x32xf32>
    %536 = vector.broadcast %cst_115 : f32 to vector<4x32xf32>
    %537 = arith.addf %530, %536 : vector<4x32xf32>
    %538 = math.absf %534 : vector<4x32xf32>
    %cst_116 = arith.constant 0.000000e+00 : f32
    %539 = vector.broadcast %cst_116 : f32 to vector<4x32xf32>
    %540 = arith.subf %539, %538 : vector<4x32xf32>
    %541 = math.exp %540 : vector<4x32xf32>
    %542 = math.log1p %541 : vector<4x32xf32>
    %543 = arith.addf %532, %542 : vector<4x32xf32>
    %544 = arith.select %535, %537, %543 : vector<4x32xi1>, vector<4x32xf32>
    %545 = arith.subf %522, %516 : vector<4x32xf32>
    %546 = arith.subf %519, %515 : vector<4x32xf32>
    %cst_117 = arith.constant -5.000000e-01 : f32
    %547 = vector.broadcast %cst_117 : f32 to vector<4x32xf32>
    %548 = arith.mulf %547, %545 : vector<4x32xf32>
    %549 = math.exp %545 : vector<4x32xf32>
    %550 = arith.mulf %546, %546 : vector<4x32xf32>
    %cst_118 = arith.constant 0.000000e+00 : f32
    %551 = vector.broadcast %cst_118 : f32 to vector<4x32xf32>
    %552 = arith.subf %551, %516 : vector<4x32xf32>
    %553 = math.exp %552 : vector<4x32xf32>
    %554 = arith.mulf %550, %553 : vector<4x32xf32>
    %555 = arith.addf %549, %554 : vector<4x32xf32>
    %cst_119 = arith.constant 5.000000e-01 : f32
    %556 = vector.broadcast %cst_119 : f32 to vector<4x32xf32>
    %557 = arith.mulf %556, %555 : vector<4x32xf32>
    %558 = arith.addf %548, %557 : vector<4x32xf32>
    %cst_120 = arith.constant 5.000000e-01 : f32
    %559 = vector.broadcast %cst_120 : f32 to vector<4x32xf32>
    %560 = arith.subf %558, %559 : vector<4x32xf32>
    %561 = arith.addf %464, %560 : vector<4x32xf32>
    %c20_121 = arith.constant 20 : index
    %c64_122 = arith.constant 64 : index
    %562 = vector.load %arg0[%c20_121, %c64_122] : memref<32x128xf32, #tpu.memory_space<vmem>>, vector<4x4xf32>
    %563 = vector.extract_strided_slice %511 {offsets = [0, 192], sizes = [4, 4], strides = [1, 1]} : vector<4x256xf32> to vector<4x4xf32>
    %cst_123 = arith.constant dense<0.000000e+00> : vector<4x4xf32>
    %564 = tpu.matmul %544, %14, %cst_123 {dimension_numbers = #tpu.dot_dimension_numbers<[1], [0], [0], [1], [0, 0, 1, 1], [], []>} : vector<4x32xf32>, vector<32x4xf32>, vector<4x4xf32> -> vector<4x4xf32>
    %565 = arith.addf %563, %564 : vector<4x4xf32>
    %566 = arith.subf %565, %562 : vector<4x4xf32>
    %567 = arith.mulf %566, %566 : vector<4x4xf32>
    %568 = arith.addf %471, %567 : vector<4x4xf32>
    %569 = vector.extract_strided_slice %511 {offsets = [0, 0], sizes = [4, 128], strides = [1, 1]} : vector<4x256xf32> to vector<4x128xf32>
    %570 = tpu.concatenate %544, %491 in 1 : vector<4x32xf32>, vector<4x32xf32> -> vector<4x64xf32>
    %cst_124 = arith.constant dense<0.000000e+00> : vector<4x128xf32>
    %571 = tpu.matmul %570, %15, %cst_124 {dimension_numbers = #tpu.dot_dimension_numbers<[1], [0], [0], [1], [0, 0, 1, 1], [], []>} : vector<4x64xf32>, vector<64x128xf32>, vector<4x128xf32> -> vector<4x128xf32>
    %572 = arith.addf %569, %571 : vector<4x128xf32>
    %573 = vector.extract_strided_slice %572 {offsets = [0, 0], sizes = [4, 96], strides = [1, 1]} : vector<4x128xf32> to vector<4x96xf32>
    %574 = arith.negf %573 : vector<4x96xf32>
    %575 = math.exp %574 : vector<4x96xf32>
    %cst_125 = arith.constant 1.000000e+00 : f32
    %576 = vector.broadcast %cst_125 : f32 to vector<4x96xf32>
    %577 = arith.addf %576, %575 : vector<4x96xf32>
    %578 = arith.divf %576, %577 : vector<4x96xf32>
    %579 = vector.extract_strided_slice %578 {offsets = [0, 0], sizes = [4, 32], strides = [1, 1]} : vector<4x96xf32> to vector<4x32xf32>
    %580 = vector.extract_strided_slice %578 {offsets = [0, 32], sizes = [4, 32], strides = [1, 1]} : vector<4x96xf32> to vector<4x32xf32>
    %581 = vector.extract_strided_slice %578 {offsets = [0, 64], sizes = [4, 32], strides = [1, 1]} : vector<4x96xf32> to vector<4x32xf32>
    %582 = vector.extract_strided_slice %572 {offsets = [0, 96], sizes = [4, 32], strides = [1, 1]} : vector<4x128xf32> to vector<4x32xf32>
    %583 = math.tanh %582 : vector<4x32xf32>
    %584 = arith.mulf %580, %489 : vector<4x32xf32>
    %585 = arith.mulf %579, %583 : vector<4x32xf32>
    %586 = arith.addf %584, %585 : vector<4x32xf32>
    %587 = math.tanh %586 : vector<4x32xf32>
    %588 = arith.mulf %581, %587 : vector<4x32xf32>
    %589 = tpu.concatenate %588, %510 in 1 : vector<4x32xf32>, vector<4x32xf32> -> vector<4x64xf32>
    %cst_126 = arith.constant dense<0.000000e+00> : vector<4x128xf32>
    %590 = tpu.matmul %589, %16, %cst_126 {dimension_numbers = #tpu.dot_dimension_numbers<[1], [0], [0], [1], [0, 0, 1, 1], [], []>} : vector<4x64xf32>, vector<64x128xf32>, vector<4x128xf32> -> vector<4x128xf32>
    %591 = arith.addf %590, %19 : vector<4x128xf32>
    %592 = vector.extract_strided_slice %591 {offsets = [0, 0], sizes = [4, 96], strides = [1, 1]} : vector<4x128xf32> to vector<4x96xf32>
    %593 = arith.negf %592 : vector<4x96xf32>
    %594 = math.exp %593 : vector<4x96xf32>
    %cst_127 = arith.constant 1.000000e+00 : f32
    %595 = vector.broadcast %cst_127 : f32 to vector<4x96xf32>
    %596 = arith.addf %595, %594 : vector<4x96xf32>
    %597 = arith.divf %595, %596 : vector<4x96xf32>
    %598 = vector.extract_strided_slice %597 {offsets = [0, 0], sizes = [4, 32], strides = [1, 1]} : vector<4x96xf32> to vector<4x32xf32>
    %599 = vector.extract_strided_slice %597 {offsets = [0, 32], sizes = [4, 32], strides = [1, 1]} : vector<4x96xf32> to vector<4x32xf32>
    %600 = vector.extract_strided_slice %597 {offsets = [0, 64], sizes = [4, 32], strides = [1, 1]} : vector<4x96xf32> to vector<4x32xf32>
    %601 = vector.extract_strided_slice %591 {offsets = [0, 96], sizes = [4, 32], strides = [1, 1]} : vector<4x128xf32> to vector<4x32xf32>
    %602 = math.tanh %601 : vector<4x32xf32>
    %603 = arith.mulf %599, %508 : vector<4x32xf32>
    %604 = arith.mulf %598, %602 : vector<4x32xf32>
    %605 = arith.addf %603, %604 : vector<4x32xf32>
    %606 = math.tanh %605 : vector<4x32xf32>
    %607 = arith.mulf %600, %606 : vector<4x32xf32>
    %608 = vector.extract_strided_slice %5 {offsets = [24, 0], sizes = [4, 256], strides = [1, 1]} : vector<32x256xf32> to vector<4x256xf32>
    %609 = arith.addf %607, %605 : vector<4x32xf32>
    %cst_128 = arith.constant dense<0.000000e+00> : vector<4x128xf32>
    %610 = tpu.matmul %609, %6, %cst_128 {dimension_numbers = #tpu.dot_dimension_numbers<[1], [0], [0], [1], [0, 0, 1, 1], [], []>} : vector<4x32xf32>, vector<32x128xf32>, vector<4x128xf32> -> vector<4x128xf32>
    %611 = arith.addf %610, %9 : vector<4x128xf32>
    %612 = vector.extract_strided_slice %611 {offsets = [0, 0], sizes = [4, 32], strides = [1, 1]} : vector<4x128xf32> to vector<4x32xf32>
    %613 = vector.extract_strided_slice %611 {offsets = [0, 32], sizes = [4, 32], strides = [1, 1]} : vector<4x128xf32> to vector<4x32xf32>
    %614 = vector.extract_strided_slice %611 {offsets = [0, 64], sizes = [4, 32], strides = [1, 1]} : vector<4x128xf32> to vector<4x32xf32>
    %615 = vector.extract_strided_slice %608 {offsets = [0, 128], sizes = [4, 32], strides = [1, 1]} : vector<4x256xf32> to vector<4x32xf32>
    %616 = arith.addf %614, %615 : vector<4x32xf32>
    %617 = vector.extract_strided_slice %611 {offsets = [0, 96], sizes = [4, 32], strides = [1, 1]} : vector<4x128xf32> to vector<4x32xf32>
    %618 = vector.extract_strided_slice %608 {offsets = [0, 160], sizes = [4, 32], strides = [1, 1]} : vector<4x256xf32> to vector<4x32xf32>
    %619 = arith.addf %617, %618 : vector<4x32xf32>
    %c24 = arith.constant 24 : index
    %c32_129 = arith.constant 32 : index
    %620 = vector.load %arg0[%c24, %c32_129] : memref<32x128xf32, #tpu.memory_space<vmem>>, vector<4x32xf32>
    %cst_130 = arith.constant 5.000000e-01 : f32
    %621 = vector.broadcast %cst_130 : f32 to vector<4x32xf32>
    %622 = arith.mulf %621, %619 : vector<4x32xf32>
    %623 = math.exp %622 : vector<4x32xf32>
    %624 = arith.mulf %623, %620 : vector<4x32xf32>
    %625 = arith.addf %616, %624 : vector<4x32xf32>
    %cst_131 = arith.constant dense<0.000000e+00> : vector<4x32xf32>
    %626 = tpu.matmul %625, %10, %cst_131 {dimension_numbers = #tpu.dot_dimension_numbers<[1], [0], [0], [1], [0, 0, 1, 1], [], []>} : vector<4x32xf32>, vector<32x32xf32>, vector<4x32xf32> -> vector<4x32xf32>
    %627 = arith.addf %626, %13 : vector<4x32xf32>
    %cst_132 = arith.constant 0.000000e+00 : f32
    %628 = vector.broadcast %cst_132 : f32 to vector<4x32xf32>
    %629 = arith.maximumf %627, %628 : vector<4x32xf32>
    %630 = vector.broadcast %cst_132 : f32 to vector<4x32xf32>
    %631 = arith.subf %627, %630 : vector<4x32xf32>
    %632 = arith.cmpf one, %631, %631 : vector<4x32xf32>
    %633 = vector.broadcast %cst_132 : f32 to vector<4x32xf32>
    %634 = arith.addf %627, %633 : vector<4x32xf32>
    %635 = math.absf %631 : vector<4x32xf32>
    %cst_133 = arith.constant 0.000000e+00 : f32
    %636 = vector.broadcast %cst_133 : f32 to vector<4x32xf32>
    %637 = arith.subf %636, %635 : vector<4x32xf32>
    %638 = math.exp %637 : vector<4x32xf32>
    %639 = math.log1p %638 : vector<4x32xf32>
    %640 = arith.addf %629, %639 : vector<4x32xf32>
    %641 = arith.select %632, %634, %640 : vector<4x32xi1>, vector<4x32xf32>
    %642 = arith.subf %619, %613 : vector<4x32xf32>
    %643 = arith.subf %616, %612 : vector<4x32xf32>
    %cst_134 = arith.constant -5.000000e-01 : f32
    %644 = vector.broadcast %cst_134 : f32 to vector<4x32xf32>
    %645 = arith.mulf %644, %642 : vector<4x32xf32>
    %646 = math.exp %642 : vector<4x32xf32>
    %647 = arith.mulf %643, %643 : vector<4x32xf32>
    %cst_135 = arith.constant 0.000000e+00 : f32
    %648 = vector.broadcast %cst_135 : f32 to vector<4x32xf32>
    %649 = arith.subf %648, %613 : vector<4x32xf32>
    %650 = math.exp %649 : vector<4x32xf32>
    %651 = arith.mulf %647, %650 : vector<4x32xf32>
    %652 = arith.addf %646, %651 : vector<4x32xf32>
    %cst_136 = arith.constant 5.000000e-01 : f32
    %653 = vector.broadcast %cst_136 : f32 to vector<4x32xf32>
    %654 = arith.mulf %653, %652 : vector<4x32xf32>
    %655 = arith.addf %645, %654 : vector<4x32xf32>
    %cst_137 = arith.constant 5.000000e-01 : f32
    %656 = vector.broadcast %cst_137 : f32 to vector<4x32xf32>
    %657 = arith.subf %655, %656 : vector<4x32xf32>
    %658 = arith.addf %561, %657 : vector<4x32xf32>
    %c24_138 = arith.constant 24 : index
    %c64_139 = arith.constant 64 : index
    %659 = vector.load %arg0[%c24_138, %c64_139] : memref<32x128xf32, #tpu.memory_space<vmem>>, vector<4x4xf32>
    %660 = vector.extract_strided_slice %608 {offsets = [0, 192], sizes = [4, 4], strides = [1, 1]} : vector<4x256xf32> to vector<4x4xf32>
    %cst_140 = arith.constant dense<0.000000e+00> : vector<4x4xf32>
    %661 = tpu.matmul %641, %14, %cst_140 {dimension_numbers = #tpu.dot_dimension_numbers<[1], [0], [0], [1], [0, 0, 1, 1], [], []>} : vector<4x32xf32>, vector<32x4xf32>, vector<4x4xf32> -> vector<4x4xf32>
    %662 = arith.addf %660, %661 : vector<4x4xf32>
    %663 = arith.subf %662, %659 : vector<4x4xf32>
    %664 = arith.mulf %663, %663 : vector<4x4xf32>
    %665 = arith.addf %568, %664 : vector<4x4xf32>
    %666 = vector.extract_strided_slice %608 {offsets = [0, 0], sizes = [4, 128], strides = [1, 1]} : vector<4x256xf32> to vector<4x128xf32>
    %667 = tpu.concatenate %641, %588 in 1 : vector<4x32xf32>, vector<4x32xf32> -> vector<4x64xf32>
    %cst_141 = arith.constant dense<0.000000e+00> : vector<4x128xf32>
    %668 = tpu.matmul %667, %15, %cst_141 {dimension_numbers = #tpu.dot_dimension_numbers<[1], [0], [0], [1], [0, 0, 1, 1], [], []>} : vector<4x64xf32>, vector<64x128xf32>, vector<4x128xf32> -> vector<4x128xf32>
    %669 = arith.addf %666, %668 : vector<4x128xf32>
    %670 = vector.extract_strided_slice %669 {offsets = [0, 0], sizes = [4, 96], strides = [1, 1]} : vector<4x128xf32> to vector<4x96xf32>
    %671 = arith.negf %670 : vector<4x96xf32>
    %672 = math.exp %671 : vector<4x96xf32>
    %cst_142 = arith.constant 1.000000e+00 : f32
    %673 = vector.broadcast %cst_142 : f32 to vector<4x96xf32>
    %674 = arith.addf %673, %672 : vector<4x96xf32>
    %675 = arith.divf %673, %674 : vector<4x96xf32>
    %676 = vector.extract_strided_slice %675 {offsets = [0, 0], sizes = [4, 32], strides = [1, 1]} : vector<4x96xf32> to vector<4x32xf32>
    %677 = vector.extract_strided_slice %675 {offsets = [0, 32], sizes = [4, 32], strides = [1, 1]} : vector<4x96xf32> to vector<4x32xf32>
    %678 = vector.extract_strided_slice %675 {offsets = [0, 64], sizes = [4, 32], strides = [1, 1]} : vector<4x96xf32> to vector<4x32xf32>
    %679 = vector.extract_strided_slice %669 {offsets = [0, 96], sizes = [4, 32], strides = [1, 1]} : vector<4x128xf32> to vector<4x32xf32>
    %680 = math.tanh %679 : vector<4x32xf32>
    %681 = arith.mulf %677, %586 : vector<4x32xf32>
    %682 = arith.mulf %676, %680 : vector<4x32xf32>
    %683 = arith.addf %681, %682 : vector<4x32xf32>
    %684 = math.tanh %683 : vector<4x32xf32>
    %685 = arith.mulf %678, %684 : vector<4x32xf32>
    %686 = tpu.concatenate %685, %607 in 1 : vector<4x32xf32>, vector<4x32xf32> -> vector<4x64xf32>
    %cst_143 = arith.constant dense<0.000000e+00> : vector<4x128xf32>
    %687 = tpu.matmul %686, %16, %cst_143 {dimension_numbers = #tpu.dot_dimension_numbers<[1], [0], [0], [1], [0, 0, 1, 1], [], []>} : vector<4x64xf32>, vector<64x128xf32>, vector<4x128xf32> -> vector<4x128xf32>
    %688 = arith.addf %687, %19 : vector<4x128xf32>
    %689 = vector.extract_strided_slice %688 {offsets = [0, 0], sizes = [4, 96], strides = [1, 1]} : vector<4x128xf32> to vector<4x96xf32>
    %690 = arith.negf %689 : vector<4x96xf32>
    %691 = math.exp %690 : vector<4x96xf32>
    %cst_144 = arith.constant 1.000000e+00 : f32
    %692 = vector.broadcast %cst_144 : f32 to vector<4x96xf32>
    %693 = arith.addf %692, %691 : vector<4x96xf32>
    %694 = arith.divf %692, %693 : vector<4x96xf32>
    %695 = vector.extract_strided_slice %694 {offsets = [0, 0], sizes = [4, 32], strides = [1, 1]} : vector<4x96xf32> to vector<4x32xf32>
    %696 = vector.extract_strided_slice %694 {offsets = [0, 32], sizes = [4, 32], strides = [1, 1]} : vector<4x96xf32> to vector<4x32xf32>
    %697 = vector.extract_strided_slice %694 {offsets = [0, 64], sizes = [4, 32], strides = [1, 1]} : vector<4x96xf32> to vector<4x32xf32>
    %698 = vector.extract_strided_slice %688 {offsets = [0, 96], sizes = [4, 32], strides = [1, 1]} : vector<4x128xf32> to vector<4x32xf32>
    %699 = math.tanh %698 : vector<4x32xf32>
    %700 = arith.mulf %696, %605 : vector<4x32xf32>
    %701 = arith.mulf %695, %699 : vector<4x32xf32>
    %702 = arith.addf %700, %701 : vector<4x32xf32>
    %703 = math.tanh %702 : vector<4x32xf32>
    %704 = arith.mulf %697, %703 : vector<4x32xf32>
    %705 = vector.extract_strided_slice %5 {offsets = [28, 0], sizes = [4, 256], strides = [1, 1]} : vector<32x256xf32> to vector<4x256xf32>
    %706 = arith.addf %704, %702 : vector<4x32xf32>
    %cst_145 = arith.constant dense<0.000000e+00> : vector<4x128xf32>
    %707 = tpu.matmul %706, %6, %cst_145 {dimension_numbers = #tpu.dot_dimension_numbers<[1], [0], [0], [1], [0, 0, 1, 1], [], []>} : vector<4x32xf32>, vector<32x128xf32>, vector<4x128xf32> -> vector<4x128xf32>
    %708 = arith.addf %707, %9 : vector<4x128xf32>
    %709 = vector.extract_strided_slice %708 {offsets = [0, 0], sizes = [4, 32], strides = [1, 1]} : vector<4x128xf32> to vector<4x32xf32>
    %710 = vector.extract_strided_slice %708 {offsets = [0, 32], sizes = [4, 32], strides = [1, 1]} : vector<4x128xf32> to vector<4x32xf32>
    %711 = vector.extract_strided_slice %708 {offsets = [0, 64], sizes = [4, 32], strides = [1, 1]} : vector<4x128xf32> to vector<4x32xf32>
    %712 = vector.extract_strided_slice %705 {offsets = [0, 128], sizes = [4, 32], strides = [1, 1]} : vector<4x256xf32> to vector<4x32xf32>
    %713 = arith.addf %711, %712 : vector<4x32xf32>
    %714 = vector.extract_strided_slice %708 {offsets = [0, 96], sizes = [4, 32], strides = [1, 1]} : vector<4x128xf32> to vector<4x32xf32>
    %715 = vector.extract_strided_slice %705 {offsets = [0, 160], sizes = [4, 32], strides = [1, 1]} : vector<4x256xf32> to vector<4x32xf32>
    %716 = arith.addf %714, %715 : vector<4x32xf32>
    %c28 = arith.constant 28 : index
    %c32_146 = arith.constant 32 : index
    %717 = vector.load %arg0[%c28, %c32_146] : memref<32x128xf32, #tpu.memory_space<vmem>>, vector<4x32xf32>
    %cst_147 = arith.constant 5.000000e-01 : f32
    %718 = vector.broadcast %cst_147 : f32 to vector<4x32xf32>
    %719 = arith.mulf %718, %716 : vector<4x32xf32>
    %720 = math.exp %719 : vector<4x32xf32>
    %721 = arith.mulf %720, %717 : vector<4x32xf32>
    %722 = arith.addf %713, %721 : vector<4x32xf32>
    %cst_148 = arith.constant dense<0.000000e+00> : vector<4x32xf32>
    %723 = tpu.matmul %722, %10, %cst_148 {dimension_numbers = #tpu.dot_dimension_numbers<[1], [0], [0], [1], [0, 0, 1, 1], [], []>} : vector<4x32xf32>, vector<32x32xf32>, vector<4x32xf32> -> vector<4x32xf32>
    %724 = arith.addf %723, %13 : vector<4x32xf32>
    %cst_149 = arith.constant 0.000000e+00 : f32
    %725 = vector.broadcast %cst_149 : f32 to vector<4x32xf32>
    %726 = arith.maximumf %724, %725 : vector<4x32xf32>
    %727 = vector.broadcast %cst_149 : f32 to vector<4x32xf32>
    %728 = arith.subf %724, %727 : vector<4x32xf32>
    %729 = arith.cmpf one, %728, %728 : vector<4x32xf32>
    %730 = vector.broadcast %cst_149 : f32 to vector<4x32xf32>
    %731 = arith.addf %724, %730 : vector<4x32xf32>
    %732 = math.absf %728 : vector<4x32xf32>
    %cst_150 = arith.constant 0.000000e+00 : f32
    %733 = vector.broadcast %cst_150 : f32 to vector<4x32xf32>
    %734 = arith.subf %733, %732 : vector<4x32xf32>
    %735 = math.exp %734 : vector<4x32xf32>
    %736 = math.log1p %735 : vector<4x32xf32>
    %737 = arith.addf %726, %736 : vector<4x32xf32>
    %738 = arith.select %729, %731, %737 : vector<4x32xi1>, vector<4x32xf32>
    %739 = arith.subf %716, %710 : vector<4x32xf32>
    %740 = arith.subf %713, %709 : vector<4x32xf32>
    %cst_151 = arith.constant -5.000000e-01 : f32
    %741 = vector.broadcast %cst_151 : f32 to vector<4x32xf32>
    %742 = arith.mulf %741, %739 : vector<4x32xf32>
    %743 = math.exp %739 : vector<4x32xf32>
    %744 = arith.mulf %740, %740 : vector<4x32xf32>
    %cst_152 = arith.constant 0.000000e+00 : f32
    %745 = vector.broadcast %cst_152 : f32 to vector<4x32xf32>
    %746 = arith.subf %745, %710 : vector<4x32xf32>
    %747 = math.exp %746 : vector<4x32xf32>
    %748 = arith.mulf %744, %747 : vector<4x32xf32>
    %749 = arith.addf %743, %748 : vector<4x32xf32>
    %cst_153 = arith.constant 5.000000e-01 : f32
    %750 = vector.broadcast %cst_153 : f32 to vector<4x32xf32>
    %751 = arith.mulf %750, %749 : vector<4x32xf32>
    %752 = arith.addf %742, %751 : vector<4x32xf32>
    %cst_154 = arith.constant 5.000000e-01 : f32
    %753 = vector.broadcast %cst_154 : f32 to vector<4x32xf32>
    %754 = arith.subf %752, %753 : vector<4x32xf32>
    %755 = arith.addf %658, %754 : vector<4x32xf32>
    %c28_155 = arith.constant 28 : index
    %c64_156 = arith.constant 64 : index
    %756 = vector.load %arg0[%c28_155, %c64_156] : memref<32x128xf32, #tpu.memory_space<vmem>>, vector<4x4xf32>
    %757 = vector.extract_strided_slice %705 {offsets = [0, 192], sizes = [4, 4], strides = [1, 1]} : vector<4x256xf32> to vector<4x4xf32>
    %cst_157 = arith.constant dense<0.000000e+00> : vector<4x4xf32>
    %758 = tpu.matmul %738, %14, %cst_157 {dimension_numbers = #tpu.dot_dimension_numbers<[1], [0], [0], [1], [0, 0, 1, 1], [], []>} : vector<4x32xf32>, vector<32x4xf32>, vector<4x4xf32> -> vector<4x4xf32>
    %759 = arith.addf %757, %758 : vector<4x4xf32>
    %760 = arith.subf %759, %756 : vector<4x4xf32>
    %761 = arith.mulf %760, %760 : vector<4x4xf32>
    %762 = arith.addf %665, %761 : vector<4x4xf32>
    %c0_158 = arith.constant 0 : index
    %763 = memref.load %arg11[%c0_158] : memref<2xf32, #tpu.memory_space<smem>>
    %c1 = arith.constant 1 : index
    %764 = memref.load %arg11[%c1] : memref<2xf32, #tpu.memory_space<smem>>
    %765 = vector.shape_cast %755 : vector<4x32xf32> to vector<1x4x32xf32>
    %cst_159 = arith.constant dense<0.000000e+00> : vector<1xf32>
    %766 = vector.multi_reduction <add>, %765, %cst_159 [1, 2] : vector<1x4x32xf32> to vector<1xf32>
    %767 = vector.shape_cast %766 : vector<1xf32> to vector<1x1x1xf32>
    %768 = vector.extract %767[0, 0, 0] : f32 from vector<1x1x1xf32>
    %cst_160 = arith.constant 7.812500e-03 : f32
    %769 = arith.mulf %768, %cst_160 : f32
    %770 = vector.shape_cast %762 : vector<4x4xf32> to vector<1x4x4xf32>
    %cst_161 = arith.constant dense<0.000000e+00> : vector<1xf32>
    %771 = vector.multi_reduction <add>, %770, %cst_161 [1, 2] : vector<1x4x4xf32> to vector<1xf32>
    %772 = vector.shape_cast %771 : vector<1xf32> to vector<1x1x1xf32>
    %773 = vector.extract %772[0, 0, 0] : f32 from vector<1x1x1xf32>
    %cst_162 = arith.constant 6.250000e-02 : f32
    %774 = arith.mulf %773, %cst_162 : f32
    %775 = arith.mulf %769, %763 : f32
    %776 = arith.mulf %774, %764 : f32
    %777 = arith.addf %775, %776 : f32
    %cst_163 = arith.constant 1.250000e-01 : f32
    %778 = arith.mulf %777, %cst_163 : f32
    %cst_164 = arith.constant 0.000000e+00 : f32
    %779 = vector.broadcast %cst_164 : f32 to vector<1x1xf32>
    %780 = vector.broadcast %778 : f32 to vector<1x1xf32>
    %781 = arith.addf %779, %780 : vector<1x1xf32>
    %c0_165 = arith.constant 0 : index
    %c0_166 = arith.constant 0 : index
    %782 = vector.load %arg12[%c0_165, %c0_166] : memref<1x1xf32, #tpu.memory_space<vmem>>, vector<1x1xf32>
    tpu.vector_store %arg12[%c0_165, %c0_166], %781 {strides = array<i32>} : memref<1x1xf32, #tpu.memory_space<vmem>>, vector<1x1xf32>,
    %cst_167 = arith.constant 0.000000e+00 : f32
    %783 = vector.broadcast %cst_167 : f32 to vector<1x1xf32>
    %784 = vector.broadcast %769 : f32 to vector<1x1xf32>
    %785 = arith.addf %783, %784 : vector<1x1xf32>
    %c0_168 = arith.constant 0 : index
    %c0_169 = arith.constant 0 : index
    %786 = vector.load %arg13[%c0_168, %c0_169] : memref<1x1xf32, #tpu.memory_space<vmem>>, vector<1x1xf32>
    tpu.vector_store %arg13[%c0_168, %c0_169], %785 {strides = array<i32>} : memref<1x1xf32, #tpu.memory_space<vmem>>, vector<1x1xf32>,
    %cst_170 = arith.constant 0.000000e+00 : f32
    %787 = vector.broadcast %cst_170 : f32 to vector<1x1xf32>
    %788 = vector.broadcast %774 : f32 to vector<1x1xf32>
    %789 = arith.addf %787, %788 : vector<1x1xf32>
    %c0_171 = arith.constant 0 : index
    %c0_172 = arith.constant 0 : index
    %790 = vector.load %arg14[%c0_171, %c0_172] : memref<1x1xf32, #tpu.memory_space<vmem>>, vector<1x1xf32>
    tpu.vector_store %arg14[%c0_171, %c0_172], %789 {strides = array<i32>} : memref<1x1xf32, #tpu.memory_space<vmem>>, vector<1x1xf32>,
    return
  }
}

</mosaic_0001>

<llo_original>
// kernel: tpu_custom_call.1
$region0: #{tpu_custom_call.1}
  #allocation0 [shape = 'u32[]', space=smem, size = 0x4, offset = 0x4, fixed_abs, tag = 'smem constant byte address 0x4 - core index']
  #allocation1 [shape = 'u32[144,128]{1,0:T(1,128)}', space=vmem, size = 0x12000, scoped, tag = 'internal scratch']
  %s0 = inlined_call_operand.hbm [shape: f32[32,128], index: 0, kind: input, shape index: {}]
  %s1 = inlined_call_operand.hbm [shape: f32[128,256], index: 1, kind: input, shape index: {}]
  %s2 = inlined_call_operand.vmem [shape: f32[1,256], index: 2, kind: input, shape index: {}]
  %s3 = inlined_call_operand.hbm [shape: f32[32,128], index: 3, kind: input, shape index: {}]
  %s4 = inlined_call_operand.hbm [shape: f32[1,128], index: 4, kind: input, shape index: {}]
  %s5 = inlined_call_operand.hbm [shape: f32[32,32], index: 5, kind: input, shape index: {}]
  %s6 = inlined_call_operand.hbm [shape: f32[1,32], index: 6, kind: input, shape index: {}]
  %s7 = inlined_call_operand.vmem [shape: f32[32,4], index: 7, kind: input, shape index: {}]
  %s8 = inlined_call_operand.vmem [shape: f32[64,128], index: 8, kind: input, shape index: {}]
  %s9 = inlined_call_operand.hbm [shape: f32[64,128], index: 9, kind: input, shape index: {}]
  %s10 = inlined_call_operand.vmem [shape: f32[1,128], index: 10, kind: input, shape index: {}]
  %s11 = inlined_call_operand.vmem [shape: f32[2], index: 11, kind: input, shape index: {}]
  %s12 = inlined_call_operand.hbm [shape: f32[1,1], index: 12, kind: output, shape index: {0}]
  %s13 = inlined_call_operand.hbm [shape: f32[1,1], index: 13, kind: output, shape index: {1}]
  %s14 = inlined_call_operand.hbm [shape: f32[1,1], index: 14, kind: output, shape index: {2}]
  %15 = xla_tuple %s12, %s13, %s14
  %s16 = sld [smem:[#allocation0]]
  $region106: #{tpu_custom_call.1} parent=0
    _
  %s18 = ssub.s32 1, %s16
  %s19 = scalar_select 0, %s18, %s16
  $region1: #{tpu_custom_call.1} parent=0
    #allocation2 [shape = 'u8[16384]{0}', space=vmem, size = 0x4000, scoped, tag = 'input window, operand 0, single buffered']
    #allocation3 [shape = 's32[1]{0}', space=sflag, size = 0x4, scoped, tag = 'scoped memory for tpu_custom_call.1']
    #allocation4 [shape = 's32[1]{0}', space=sflag, size = 0x4, scoped, tag = 'scoped memory for tpu_custom_call.1']
    #allocation5 [shape = 's32[1]{0}', space=sflag, size = 0x4, scoped, tag = 'scoped memory for tpu_custom_call.1']
    #allocation6 [shape = 'u8[131072]{0}', space=vmem, size = 0x20000, scoped, tag = 'input window, operand 1, single buffered']
    #allocation7 [shape = 's32[1]{0}', space=sflag, size = 0x4, scoped, tag = 'scoped memory for tpu_custom_call.1']
    #allocation8 [shape = 'u8[16384]{0}', space=vmem, size = 0x4000, scoped, tag = 'input window, operand 3, single buffered']
    #allocation9 [shape = 'u8[512]{0}', space=vmem, size = 0x400, scoped, tag = 'input window, operand 4, single buffered']
    #allocation10 [shape = 's32[1]{0}', space=sflag, size = 0x4, scoped, tag = 'scoped memory for tpu_custom_call.1']
    #allocation11 [shape = 'u8[16384]{0}', space=vmem, size = 0x4000, scoped, tag = 'input window, operand 5, single buffered']
    #allocation12 [shape = 'u8[512]{0}', space=vmem, size = 0x400, scoped, tag = 'input window, operand 6, single buffered']
    #allocation13 [shape = 's32[1]{0}', space=sflag, size = 0x4, scoped, tag = 'scoped memory for tpu_custom_call.1']
    #allocation14 [shape = 'u8[32768]{0}', space=vmem, size = 0x8000, scoped, tag = 'input window, operand 9, single buffered']
    #allocation15 [shape = 'u8[512]{0}', space=smem, size = 0x200, scoped, tag = 'input window, operand 11, single buffered']
    #allocation16 [shape = 'u8[512]{0}', space=vmem, size = 0x400, scoped, tag = 'output window, operand 0, single buffered']
    #allocation17 [shape = 'u8[512]{0}', space=vmem, size = 0x400, scoped, tag = 'output window, operand 1, single buffered']
    #allocation18 [shape = 's32[1]{0}', space=sflag, size = 0x4, scoped, tag = 'scoped memory for tpu_custom_call.1']
    #allocation19 [shape = 'u8[512]{0}', space=vmem, size = 0x400, scoped, tag = 'output window, operand 2, single buffered']
    %20 = vsyncpa [#allocation3], 0
    %21 = vsyncpa [#allocation7], 0
    %22 = vsyncpa [#allocation10], 0
    %23 = vsyncpa [#allocation13], 0
    %24 = vsyncpa [#allocation5], 0
    %25 = vsyncpa [#allocation4], 0
    %26 = vsyncpa [#allocation18], 0
    // Predicated region
    $region2: #{tpu_custom_call.1} parent=1 // pred_check
      _
    $region3: #{tpu_custom_call.1} parent=1 // pred_check_branch
      %28 = sbr.rel (0) target = $region5
    $region4: #{tpu_custom_call.1} parent=1 // pred_region
      %s30 = ssub.s32 512, 512
      %31 = vsyncadd [#allocation3], %s30
      %s32 = sshll.u32 [#allocation2], 4
      %s33 = int_to_ptr.vmem [resolvable:$true] %s32
      %38 = dma.hbm_to_vmem [thread:$0]  %s0, 512, %s33, [#allocation3], 128, 128, 8
    $region5: #{tpu_custom_call.1} parent=1 // pred_fallthru
      _
    // Predicated region
    $region6: #{tpu_custom_call.1} parent=1 // pred_check
      _
    $region7: #{tpu_custom_call.1} parent=1 // pred_check_branch
      %40 = sbr.rel (0) target = $region9
    $region8: #{tpu_custom_call.1} parent=1 // pred_region
      %s42 = ssub.s32 4096, 4096
      %43 = vsyncadd [#allocation7], %s42
      %s44 = sshll.u32 [#allocation6], 4
      %s45 = int_to_ptr.vmem [resolvable:$true] %s44
      %50 = dma.hbm_to_vmem [thread:$0]  %s1, 4096, %s45, [#allocation7], 256, 256, 16
    $region9: #{tpu_custom_call.1} parent=1 // pred_fallthru
      _
    // Predicated region
    $region10: #{tpu_custom_call.1} parent=1 // pred_check
      _
    $region11: #{tpu_custom_call.1} parent=1 // pred_check_branch
      %52 = sbr.rel (0) target = $region13
    $region12: #{tpu_custom_call.1} parent=1 // pred_region
      _
    $region13: #{tpu_custom_call.1} parent=1 // pred_fallthru
      _
    // Predicated region
    $region14: #{tpu_custom_call.1} parent=1 // pred_check
      _
    $region15: #{tpu_custom_call.1} parent=1 // pred_check_branch
      %54 = sbr.rel (0) target = $region17
    $region16: #{tpu_custom_call.1} parent=1 // pred_region
      %s56 = ssub.s32 512, 512
      %57 = vsyncadd [#allocation7], %s56
      %s58 = sshll.u32 [#allocation8], 4
      %s59 = int_to_ptr.vmem [resolvable:$true] %s58
      %64 = dma.hbm_to_vmem [thread:$0]  %s3, 512, %s59, [#allocation7], 128, 128, 8
    $region17: #{tpu_custom_call.1} parent=1 // pred_fallthru
      _
    // Predicated region
    $region18: #{tpu_custom_call.1} parent=1 // pred_check
      _
    $region19: #{tpu_custom_call.1} parent=1 // pred_check_branch
      %66 = sbr.rel (0) target = $region21
    $region20: #{tpu_custom_call.1} parent=1 // pred_region
      %s68 = ssub.s32 16, 16
      %69 = vsyncadd [#allocation10], %s68
      %s71 = sshll.u32 [#allocation9], 4
      %s72 = int_to_ptr.vmem [resolvable:$true] %s71
      %74 = dma.hbm_to_vmem [thread:$0]  %s4, 16, %s72, [#allocation10]
    $region21: #{tpu_custom_call.1} parent=1 // pred_fallthru
      _
    // Predicated region
    $region22: #{tpu_custom_call.1} parent=1 // pred_check
      _
    $region23: #{tpu_custom_call.1} parent=1 // pred_check_branch
      %76 = sbr.rel (0) target = $region25
    $region24: #{tpu_custom_call.1} parent=1 // pred_region
      %s78 = ssub.s32 512, 512
      %79 = vsyncadd [#allocation10], %s78
      %s80 = sshll.u32 [#allocation11], 4
      %s81 = int_to_ptr.vmem [resolvable:$true] %s80
      %86 = dma.hbm_to_vmem [thread:$0]  %s5, 512, %s81, [#allocation10], 128, 128, 8
    $region25: #{tpu_custom_call.1} parent=1 // pred_fallthru
      _
    // Predicated region
    $region26: #{tpu_custom_call.1} parent=1 // pred_check
      _
    $region27: #{tpu_custom_call.1} parent=1 // pred_check_branch
      %88 = sbr.rel (0) target = $region29
    $region28: #{tpu_custom_call.1} parent=1 // pred_region
      %s90 = ssub.s32 16, 16
      %91 = vsyncadd [#allocation13], %s90
      %s93 = sshll.u32 [#allocation12], 4
      %s94 = int_to_ptr.vmem [resolvable:$true] %s93
      %96 = dma.hbm_to_vmem [thread:$0]  %s6, 16, %s94, [#allocation13]
    $region29: #{tpu_custom_call.1} parent=1 // pred_fallthru
      _
    // Predicated region
    $region30: #{tpu_custom_call.1} parent=1 // pred_check
      _
    $region31: #{tpu_custom_call.1} parent=1 // pred_check_branch
      %98 = sbr.rel (0) target = $region33
    $region32: #{tpu_custom_call.1} parent=1 // pred_region
      _
    $region33: #{tpu_custom_call.1} parent=1 // pred_fallthru
      _
    // Predicated region
    $region34: #{tpu_custom_call.1} parent=1 // pred_check
      _
    $region35: #{tpu_custom_call.1} parent=1 // pred_check_branch
      %100 = sbr.rel (0) target = $region37
    $region36: #{tpu_custom_call.1} parent=1 // pred_region
      _
    $region37: #{tpu_custom_call.1} parent=1 // pred_fallthru
      _
    // Predicated region
    $region38: #{tpu_custom_call.1} parent=1 // pred_check
      _
    $region39: #{tpu_custom_call.1} parent=1 // pred_check_branch
      %102 = sbr.rel (0) target = $region41
    $region40: #{tpu_custom_call.1} parent=1 // pred_region
      %s104 = ssub.s32 1024, 1024
      %105 = vsyncadd [#allocation13], %s104
      %s106 = sshll.u32 [#allocation14], 4
      %s107 = int_to_ptr.vmem [resolvable:$true] %s106
      %112 = dma.hbm_to_vmem [thread:$0]  %s9, 1024, %s107, [#allocation13], 128, 128, 8
    $region41: #{tpu_custom_call.1} parent=1 // pred_fallthru
      _
    // Predicated region
    $region42: #{tpu_custom_call.1} parent=1 // pred_check
      _
    $region43: #{tpu_custom_call.1} parent=1 // pred_check_branch
      %114 = sbr.rel (0) target = $region45
    $region44: #{tpu_custom_call.1} parent=1 // pred_region
      _
    $region45: #{tpu_custom_call.1} parent=1 // pred_fallthru
      _
    // Predicated region
    $region46: #{tpu_custom_call.1} parent=1 // pred_check
      _
    $region47: #{tpu_custom_call.1} parent=1 // pred_check_branch
      %116 = sbr.rel (0) target = $region49
    $region48: #{tpu_custom_call.1} parent=1 // pred_region
      %s118 = ssub.s32 16, 16
      %119 = vsyncadd [#allocation5], %s118
      %s121 = sshll.u32 %s11, 4
      %s122 = int_to_ptr.vmem [resolvable:$true] %s121
      %124 = dma.vmem_to_smem %s122, 16, [#allocation15], [#allocation5]
    $region49: #{tpu_custom_call.1} parent=1 // pred_fallthru
      _
    // Predicated region
    $region50: #{tpu_custom_call.1} parent=1 // pred_check
      _
    $region51: #{tpu_custom_call.1} parent=1 // pred_check_branch
      %126 = sbr.rel (0) target = $region53
    $region52: #{tpu_custom_call.1} parent=1 // pred_region
      %127 = dma.done [#allocation3], 512
    $region53: #{tpu_custom_call.1} parent=1 // pred_fallthru
      _
    // Predicated region
    $region54: #{tpu_custom_call.1} parent=1 // pred_check
      _
    $region55: #{tpu_custom_call.1} parent=1 // pred_check_branch
      %129 = sbr.rel (0) target = $region57
    $region56: #{tpu_custom_call.1} parent=1 // pred_region
      %130 = dma.done [#allocation7], 4096
    $region57: #{tpu_custom_call.1} parent=1 // pred_fallthru
      _
    // Predicated region
    $region58: #{tpu_custom_call.1} parent=1 // pred_check
      _
    $region59: #{tpu_custom_call.1} parent=1 // pred_check_branch
      %132 = sbr.rel (0) target = $region61
    $region60: #{tpu_custom_call.1} parent=1 // pred_region
      %133 = dma.done [#allocation7], 512
    $region61: #{tpu_custom_call.1} parent=1 // pred_fallthru
      _
    // Predicated region
    $region62: #{tpu_custom_call.1} parent=1 // pred_check
      _
    $region63: #{tpu_custom_call.1} parent=1 // pred_check_branch
      %135 = sbr.rel (0) target = $region65
    $region64: #{tpu_custom_call.1} parent=1 // pred_region
      %136 = dma.done [#allocation10], 16
    $region65: #{tpu_custom_call.1} parent=1 // pred_fallthru
      _
    // Predicated region
    $region66: #{tpu_custom_call.1} parent=1 // pred_check
      _
    $region67: #{tpu_custom_call.1} parent=1 // pred_check_branch
      %138 = sbr.rel (0) target = $region69
    $region68: #{tpu_custom_call.1} parent=1 // pred_region
      %139 = dma.done [#allocation10], 512
    $region69: #{tpu_custom_call.1} parent=1 // pred_fallthru
      _
    // Predicated region
    $region70: #{tpu_custom_call.1} parent=1 // pred_check
      _
    $region71: #{tpu_custom_call.1} parent=1 // pred_check_branch
      %141 = sbr.rel (0) target = $region73
    $region72: #{tpu_custom_call.1} parent=1 // pred_region
      %142 = dma.done [#allocation13], 16
    $region73: #{tpu_custom_call.1} parent=1 // pred_fallthru
      _
    // Predicated region
    $region74: #{tpu_custom_call.1} parent=1 // pred_check
      _
    $region75: #{tpu_custom_call.1} parent=1 // pred_check_branch
      %144 = sbr.rel (0) target = $region77
    $region76: #{tpu_custom_call.1} parent=1 // pred_region
      %145 = dma.done [#allocation13], 1024
    $region77: #{tpu_custom_call.1} parent=1 // pred_fallthru
      _
    // Predicated region
    $region78: #{tpu_custom_call.1} parent=1 // pred_check
      _
    $region79: #{tpu_custom_call.1} parent=1 // pred_check_branch
      %147 = sbr.rel (0) target = $region81
    $region80: #{tpu_custom_call.1} parent=1 // pred_region
      %148 = dma.done [#allocation5], 16
    $region81: #{tpu_custom_call.1} parent=1 // pred_fallthru
      _
    %149 = sfence
    %v150 = vld [vmem:[#allocation2] sm:$0xff]
    %v151 = vld [vmem:[#allocation2 + $0x8] sm:$0xff]
    %v152 = vld [vmem:[#allocation2 + $0x10] sm:$0xff]
    %v153 = vld [vmem:[#allocation2 + $0x18] sm:$0xff]
    %v154 = vld [vmem:[#allocation6] sm:$0xff]
    %v155 = vld [vmem:[#allocation6 + $0x8] sm:$0xff]
    %v156 = vld [vmem:[#allocation6 + $0x10] sm:$0xff]
    %v157 = vld [vmem:[#allocation6 + $0x18] sm:$0xff]
    %v158 = vld [vmem:[#allocation6 + $0x20] sm:$0xff]
    %v159 = vld [vmem:[#allocation6 + $0x28] sm:$0xff]
    %v160 = vld [vmem:[#allocation6 + $0x30] sm:$0xff]
    %v161 = vld [vmem:[#allocation6 + $0x38] sm:$0xff]
    %v162 = vld [vmem:[#allocation6 + $0x40] sm:$0xff]
    %v163 = vld [vmem:[#allocation6 + $0x48] sm:$0xff]
    %v164 = vld [vmem:[#allocation6 + $0x50] sm:$0xff]
    %v165 = vld [vmem:[#allocation6 + $0x58] sm:$0xff]
    %v166 = vld [vmem:[#allocation6 + $0x60] sm:$0xff]
    %v167 = vld [vmem:[#allocation6 + $0x68] sm:$0xff]
    %v168 = vld [vmem:[#allocation6 + $0x70] sm:$0xff]
    %v169 = vld [vmem:[#allocation6 + $0x78] sm:$0xff]
    %v170 = vld [vmem:[#allocation6 + $0x80] sm:$0xff]
    %v171 = vld [vmem:[#allocation6 + $0x88] sm:$0xff]
    %v172 = vld [vmem:[#allocation6 + $0x90] sm:$0xff]
    %v173 = vld [vmem:[#allocation6 + $0x98] sm:$0xff]
    %v174 = vld [vmem:[#allocation6 + $0xa0] sm:$0xff]
    %v175 = vld [vmem:[#allocation6 + $0xa8] sm:$0xff]
    %v176 = vld [vmem:[#allocation6 + $0xb0] sm:$0xff]
    %v177 = vld [vmem:[#allocation6 + $0xb8] sm:$0xff]
    %v178 = vld [vmem:[#allocation6 + $0xc0] sm:$0xff]
    %v179 = vld [vmem:[#allocation6 + $0xc8] sm:$0xff]
    %v180 = vld [vmem:[#allocation6 + $0xd0] sm:$0xff]
    %v181 = vld [vmem:[#allocation6 + $0xd8] sm:$0xff]
    %v182 = vld [vmem:[#allocation6 + $0xe0] sm:$0xff]
    %v183 = vld [vmem:[#allocation6 + $0xe8] sm:$0xff]
    %v184 = vld [vmem:[#allocation6 + $0xf0] sm:$0xff]
    %v185 = vld [vmem:[#allocation6 + $0xf8] sm:$0xff]
    %v186 = vld [vmem:[%s2] sm:$0x3]
    %v188 = vlaneseq
    %v189 = vshrl.u32 %v188, 7
    %v190 = vsub.s32 0, %v189
    %v191 = vrot.slane %v186, %v190
    %v192 = vlaneseq
    %v193 = vshrl.u32 %v192, 7
    %v194 = vsub.s32 1, %v193
    %v195 = vrot.slane %v186, %v194
    %198 = vmatprep.subr.mxu0 %v155
    %199 = vmatpush1.msra.mxu0 %v154
    %200 = vmatprep.subr.mxu0 %v157
    %201 = vmatpush1.msra.mxu0 %v156
    %202 = vmatprep.subr.mxu0 %v159
    %203 = vmatpush1.msra.mxu0 %v158
    %204 = vmatprep.subr.mxu0 %v161
    %205 = vmatpush1.msra.mxu0 %v160
    %206 = vmatprep.subr.mxu0 %v163
    %207 = vmatpush1.msra.mxu0 %v162
    %208 = vmatprep.subr.mxu0 %v165
    %209 = vmatpush1.msra.mxu0 %v164
    %210 = vmatprep.subr.mxu0 %v167
    %211 = vmatpush1.msra.mxu0 %v166
    %212 = vmatprep.subr.mxu0 %v169
    %213 = vmatpush1.msra.mxu0 %v168
    %214 = vmatprep.subr.mxu0 %v171
    %215 = vmatpush1.msra.mxu0 %v170
    %216 = vmatprep.subr.mxu0 %v173
    %217 = vmatpush1.msra.mxu0 %v172
    %218 = vmatprep.subr.mxu0 %v175
    %219 = vmatpush1.msra.mxu0 %v174
    %220 = vmatprep.subr.mxu0 %v177
    %221 = vmatpush1.msra.mxu0 %v176
    %222 = vmatprep.subr.mxu0 %v179
    %223 = vmatpush1.msra.mxu0 %v178
    %224 = vmatprep.subr.mxu0 %v181
    %225 = vmatpush1.msra.mxu0 %v180
    %226 = vmatprep.subr.mxu0 %v183
    %227 = vmatpush1.msra.mxu0 %v182
    %228 = vmatprep.subr.mxu0 %v185
    %229 = vmatpush1.msra.mxu0 %v184
    %230 = vmatprep.subr.mxu0 0.0
    %231 = vmatpush1.msra.mxu0 0.0
    %232 = vmatprep.subr.mxu0 0.0
    %233 = vmatpush1.msra.mxu0 0.0
    %234 = vmatprep.subr.mxu0 0.0
    %235 = vmatpush1.msra.mxu0 0.0
    %236 = vmatprep.subr.mxu0 0.0
    %237 = vmatpush1.msra.mxu0 0.0
    %238 = vmatprep.subr.mxu0 0.0
    %239 = vmatpush1.msra.mxu0 0.0
    %240 = vmatprep.subr.mxu0 0.0
    %241 = vmatpush1.msra.mxu0 0.0
    %242 = vmatprep.subr.mxu0 0.0
    %243 = vmatpush1.msra.mxu0 0.0
    %244 = vmatprep.subr.mxu0 0.0
    %245 = vmatpush1.msra.mxu0 0.0
    %246 = vmatprep.subr.mxu0 0.0
    %247 = vmatpush1.msra.mxu0 0.0
    %248 = vmatprep.subr.mxu0 0.0
    %249 = vmatpush1.msra.mxu0 0.0
    %250 = vmatprep.subr.mxu0 0.0
    %251 = vmatpush1.msra.mxu0 0.0
    %252 = vmatprep.subr.mxu0 0.0
    %253 = vmatpush1.msra.mxu0 0.0
    %254 = vmatprep.subr.mxu0 0.0
    %255 = vmatpush1.msra.mxu0 0.0
    %256 = vmatprep.subr.mxu0 0.0
    %257 = vmatpush1.msra.mxu0 0.0
    %258 = vmatprep.subr.mxu0 0.0
    %259 = vmatpush1.msra.mxu0 0.0
    %260 = vmatprep.subr.mxu0 0.0
    %261 = vmatpush1.msra.mxu0 0.0
    %262 = vmatprep.mubr.f32.mxu0 0.0
    %263 = vmatmul.mubr.f32.gmra.mrb[0].mxu0 %v150
    %v264 = vpop.f32.mrb[0].mxu0
    %v265 = vadd.f32 %v191, %v264
    %v266 = vpop.f32.mrb[0].mxu0
    %v267 = vadd.f32 %v195, %v266
    %268 = vmatprep.mubr.f32.mxu0 0.0
    %269 = vmatmul.mubr.f32.gmra.mrb[0].mxu0 %v151
    %v270 = vpop.f32.mrb[0].mxu0
    %v271 = vadd.f32 %v191, %v270
    %v272 = vpop.f32.mrb[0].mxu0
    %v273 = vadd.f32 %v195, %v272
    %274 = vmatprep.mubr.f32.mxu0 0.0
    %275 = vmatmul.mubr.f32.gmra.mrb[0].mxu0 %v152
    %v276 = vpop.f32.mrb[0].mxu0
    %v277 = vadd.f32 %v191, %v276
    %v278 = vpop.f32.mrb[0].mxu0
    %v279 = vadd.f32 %v195, %v278
    %280 = vmatprep.mubr.f32.mxu0 0.0
    %281 = vmatmul.mubr.f32.gmra.mrb[0].mxu0 %v153
    %v282 = vpop.f32.mrb[0].mxu0
    %v283 = vadd.f32 %v191, %v282
    %v284 = vpop.f32.mrb[0].mxu0
    %v285 = vadd.f32 %v195, %v284
    %286 = vdwg.mxu0
    %v287 = vld [vmem:[#allocation8] sm:$0xff]
    %v288 = vld [vmem:[#allocation8 + $0x8] sm:$0xff]
    %v289 = vld [vmem:[#allocation8 + $0x10] sm:$0xff]
    %v290 = vld [vmem:[#allocation8 + $0x18] sm:$0xff]
    %v291 = vld [vmem:[#allocation9] sm:$0x1]
    %v293 = vlaneseq
    %v294 = vshrl.u32 %v293, 7
    %v295 = vsub.s32 0, %v294
    %v296 = vrot.slane %v291, %v295
    %v298 = vld [vmem:[#allocation11] sm:$0xff]
    %v299 = vld [vmem:[#allocation11 + $0x8] sm:$0xff]
    %v300 = vld [vmem:[#allocation11 + $0x10] sm:$0xff]
    %v301 = vld [vmem:[#allocation11 + $0x18] sm:$0xff]
    %v302 = vld [vmem:[#allocation12] sm:$0x1]
    %v304 = vlaneseq
    %v305 = vshrl.u32 %v304, 7
    %v306 = vsub.s32 0, %v305
    %v307 = vrot.slane %v302, %v306
    %v309 = vld [vmem:[%s7] sm:$0xff]
    %v310 = vld [vmem:[%s7 + $0x8] sm:$0xff]
    %v311 = vld [vmem:[%s7 + $0x10] sm:$0xff]
    %v312 = vld [vmem:[%s7 + $0x18] sm:$0xff]
    %v313 = vld [vmem:[%s8] sm:$0xff]
    %v314 = vld [vmem:[%s8 + $0x8] sm:$0xff]
    %v315 = vld [vmem:[%s8 + $0x10] sm:$0xff]
    %v316 = vld [vmem:[%s8 + $0x18] sm:$0xff]
    %v317 = vld [vmem:[%s8 + $0x20] sm:$0xff]
    %v318 = vld [vmem:[%s8 + $0x28] sm:$0xff]
    %v319 = vld [vmem:[%s8 + $0x30] sm:$0xff]
    %v320 = vld [vmem:[%s8 + $0x38] sm:$0xff]
    %v321 = vld [vmem:[#allocation14] sm:$0xff]
    %v322 = vld [vmem:[#allocation14 + $0x8] sm:$0xff]
    %v323 = vld [vmem:[#allocation14 + $0x10] sm:$0xff]
    %v324 = vld [vmem:[#allocation14 + $0x18] sm:$0xff]
    %v325 = vld [vmem:[#allocation14 + $0x20] sm:$0xff]
    %v326 = vld [vmem:[#allocation14 + $0x28] sm:$0xff]
    %v327 = vld [vmem:[#allocation14 + $0x30] sm:$0xff]
    %v328 = vld [vmem:[#allocation14 + $0x38] sm:$0xff]
    %v329 = vld [vmem:[%s10] sm:$0x1]
    %v331 = vlaneseq
    %v332 = vshrl.u32 %v331, 7
    %v333 = vsub.s32 0, %v332
    %v334 = vrot.slane %v329, %v333
    %vm336 = vcmask 261120
    %v338 = vsel %vm336, 0.0, 0
    %340 = vmatprep.subr.mxu0 0.0
    %341 = vmatpush1.msra.mxu0 %v287
    %342 = vmatprep.subr.mxu0 0.0
    %343 = vmatpush1.msra.mxu0 %v288
    %344 = vmatprep.subr.mxu0 0.0
    %345 = vmatpush1.msra.mxu0 %v289
    %346 = vmatprep.subr.mxu0 0.0
    %347 = vmatpush1.msra.mxu0 %v290
    %348 = vmatprep.subr.mxu0 0.0
    %349 = vmatpush1.msra.mxu0 0.0
    %350 = vmatprep.subr.mxu0 0.0
    %351 = vmatpush1.msra.mxu0 0.0
    %352 = vmatprep.subr.mxu0 0.0
    %353 = vmatpush1.msra.mxu0 0.0
    %354 = vmatprep.subr.mxu0 0.0
    %355 = vmatpush1.msra.mxu0 0.0
    %356 = vmatprep.subr.mxu0 0.0
    %357 = vmatpush1.msra.mxu0 0.0
    %358 = vmatprep.subr.mxu0 0.0
    %359 = vmatpush1.msra.mxu0 0.0
    %360 = vmatprep.subr.mxu0 0.0
    %361 = vmatpush1.msra.mxu0 0.0
    %362 = vmatprep.subr.mxu0 0.0
    %363 = vmatpush1.msra.mxu0 0.0
    %364 = vmatprep.subr.mxu0 0.0
    %365 = vmatpush1.msra.mxu0 0.0
    %366 = vmatprep.subr.mxu0 0.0
    %367 = vmatpush1.msra.mxu0 0.0
    %368 = vmatprep.subr.mxu0 0.0
    %369 = vmatpush1.msra.mxu0 0.0
    %370 = vmatprep.subr.mxu0 0.0
    %371 = vmatpush1.msra.mxu0 0.0
    %372 = vmatprep.subr.mxu0 0.0
    %373 = vmatpush1.msra.mxu0 0.0
    %374 = vmatprep.subr.mxu0 0.0
    %375 = vmatpush1.msra.mxu0 0.0
    %376 = vmatprep.subr.mxu0 0.0
    %377 = vmatpush1.msra.mxu0 0.0
    %378 = vmatprep.subr.mxu0 0.0
    %379 = vmatpush1.msra.mxu0 0.0
    %380 = vmatprep.subr.mxu0 0.0
    %381 = vmatpush1.msra.mxu0 0.0
    %382 = vmatprep.subr.mxu0 0.0
    %383 = vmatpush1.msra.mxu0 0.0
    %384 = vmatprep.subr.mxu0 0.0
    %385 = vmatpush1.msra.mxu0 0.0
    %386 = vmatprep.subr.mxu0 0.0
    %387 = vmatpush1.msra.mxu0 0.0
    %388 = vmatprep.subr.mxu0 0.0
    %389 = vmatpush1.msra.mxu0 0.0
    %390 = vmatprep.subr.mxu0 0.0
    %391 = vmatpush1.msra.mxu0 0.0
    %392 = vmatprep.subr.mxu0 0.0
    %393 = vmatpush1.msra.mxu0 0.0
    %394 = vmatprep.subr.mxu0 0.0
    %395 = vmatpush1.msra.mxu0 0.0
    %396 = vmatprep.subr.mxu0 0.0
    %397 = vmatpush1.msra.mxu0 0.0
    %398 = vmatprep.subr.mxu0 0.0
    %399 = vmatpush1.msra.mxu0 0.0
    %400 = vmatprep.subr.mxu0 0.0
    %401 = vmatpush1.msra.mxu0 0.0
    %402 = vmatprep.subr.mxu0 0.0
    %403 = vmatpush1.msra.mxu0 0.0
    %404 = vmatprep.mubr.f32.mxu0 0.0
    %405 = vmatmul.mubr.f32.gmra.mrb[0].mxu0 %v338
    %v406 = vpop.f32.mrb[0].mxu0
    %v407 = vadd.f32 %v296, %v406
    %v408 = vpop.f32.mrb[0].mxu0
    %409 = vdwg.mxu0
    %411 = vrot.lane.b32.xlu0 %v267, 64
    %v412 = vpop.permute.xlu0 %411
    %v414 = vadd.f32 %v407, %v412
    %v415 = vld [vmem:[#allocation2] sm:$0xf]
    %v416 = vmul.f32 %v414, 0.5
    %v417 = vmul.f32 %v416, 1.442695
    %v418 = vpow.pop %v417
    %420 = vrot.lane.b32.xlu0 %v415, 64
    %v421 = vpop.permute.xlu0 %420
    %v423 = vmul.f32 %v418, %v421
    %425 = vrot.lane.b32.xlu0 %v423, 96
    %v426 = vpop.permute.xlu0 %425
    %v428 = vadd.f32 %v414, %v426
    %430 = vrot.lane.b32.xlu0 %v428, 64
    %v431 = vpop.permute.xlu0 %430
    %v432 = vsel %vm336, %v431, 0
    %434 = vmatprep.subr.mxu0 0.0
    %435 = vmatpush1.msra.mxu0 %v298
    %436 = vmatprep.subr.mxu0 0.0
    %437 = vmatpush1.msra.mxu0 %v299
    %438 = vmatprep.subr.mxu0 0.0
    %439 = vmatpush1.msra.mxu0 %v300
    %440 = vmatprep.subr.mxu0 0.0
    %441 = vmatpush1.msra.mxu0 %v301
    %442 = vmatprep.subr.mxu0 0.0
    %443 = vmatpush1.msra.mxu0 0.0
    %444 = vmatprep.subr.mxu0 0.0
    %445 = vmatpush1.msra.mxu0 0.0
    %446 = vmatprep.subr.mxu0 0.0
    %447 = vmatpush1.msra.mxu0 0.0
    %448 = vmatprep.subr.mxu0 0.0
    %449 = vmatpush1.msra.mxu0 0.0
    %450 = vmatprep.subr.mxu0 0.0
    %451 = vmatpush1.msra.mxu0 0.0
    %452 = vmatprep.subr.mxu0 0.0
    %453 = vmatpush1.msra.mxu0 0.0
    %454 = vmatprep.subr.mxu0 0.0
    %455 = vmatpush1.msra.mxu0 0.0
    %456 = vmatprep.subr.mxu0 0.0
    %457 = vmatpush1.msra.mxu0 0.0
    %458 = vmatprep.subr.mxu0 0.0
    %459 = vmatpush1.msra.mxu0 0.0
    %460 = vmatprep.subr.mxu0 0.0
    %461 = vmatpush1.msra.mxu0 0.0
    %462 = vmatprep.subr.mxu0 0.0
    %463 = vmatpush1.msra.mxu0 0.0
    %464 = vmatprep.subr.mxu0 0.0
    %465 = vmatpush1.msra.mxu0 0.0
    %466 = vmatprep.subr.mxu0 0.0
    %467 = vmatpush1.msra.mxu0 0.0
    %468 = vmatprep.subr.mxu0 0.0
    %469 = vmatpush1.msra.mxu0 0.0
    %470 = vmatprep.subr.mxu0 0.0
    %471 = vmatpush1.msra.mxu0 0.0
    %472 = vmatprep.subr.mxu0 0.0
    %473 = vmatpush1.msra.mxu0 0.0
    %474 = vmatprep.subr.mxu0 0.0
    %475 = vmatpush1.msra.mxu0 0.0
    %476 = vmatprep.subr.mxu0 0.0
    %477 = vmatpush1.msra.mxu0 0.0
    %478 = vmatprep.subr.mxu0 0.0
    %479 = vmatpush1.msra.mxu0 0.0
    %480 = vmatprep.subr.mxu0 0.0
    %481 = vmatpush1.msra.mxu0 0.0
    %482 = vmatprep.subr.mxu0 0.0
    %483 = vmatpush1.msra.mxu0 0.0
    %484 = vmatprep.subr.mxu0 0.0
    %485 = vmatpush1.msra.mxu0 0.0
    %486 = vmatprep.subr.mxu0 0.0
    %487 = vmatpush1.msra.mxu0 0.0
    %488 = vmatprep.subr.mxu0 0.0
    %489 = vmatpush1.msra.mxu0 0.0
    %490 = vmatprep.subr.mxu0 0.0
    %491 = vmatpush1.msra.mxu0 0.0
    %492 = vmatprep.subr.mxu0 0.0
    %493 = vmatpush1.msra.mxu0 0.0
    %494 = vmatprep.subr.mxu0 0.0
    %495 = vmatpush1.msra.mxu0 0.0
    %496 = vmatprep.subr.mxu0 0.0
    %497 = vmatpush1.msra.mxu0 0.0
    %498 = vmatprep.mubr.f32.mxu0 0.0
    %499 = vmatmul.mubr.f32.gmra.mrb[0].mxu0 %v432
    %v500 = vpop.f32.mrb[0].mxu0
    %v501 = vadd.f32 %v307, %v500
    %v502 = vpop.f32.mrb[0].mxu0
    %503 = vdwg.mxu0
    %v504 = vmax.f32 %v501, 0.0
    %vm505 = vcmp.ne.f32.partialorder %v501, %v501
    %v506 = vadd.f32 %v501, 0.0
    %v507 = vand.u32 2147483647, %v501
    %v508 = vsub.f32 0.0, %v507
    %v509 = vmul.f32 %v508, 1.442695
    %v510 = vpow.pop %v509
    %v511 = vadd.f32 %v510, 1.0
    %v512 = vlog2.pop %v511
    %v513 = vmul.f32 %v512, 0.6931472
    %v514 = vmul.f32 -0.5, %v510
    %v515 = vadd.f32 %v514, 1.0
    %v516 = vmul.f32 %v515, %v510
    %v517 = vand.u32 2147483647, %v510
    %vm518 = vcmp.lt.f32.partialorder %v517, 0.0004427343
    %v519 = vsel %vm518, %v516, %v513
    %v520 = vadd.f32 %v504, %v519
    %v521 = vsel %vm505, %v506, %v520
    %523 = vrot.lane.b32.xlu0 %v407, 64
    %v524 = vpop.permute.xlu0 %523
    %v526 = vsub.f32 %v414, %v524
    %v527 = vmul.f32 %v526, -0.5
    %v528 = vmul.f32 %v526, 1.442695
    %v529 = vpow.pop %v528
    %v530 = vmul.f32 %v526, %v526
    %v531 = vsub.f32 0.0, %v407
    %v532 = vmul.f32 %v531, 1.442695
    %v533 = vpow.pop %v532
    %535 = vrot.lane.b32.xlu0 %v533, 32
    %v536 = vpop.permute.xlu0 %535
    %v538 = vmul.f32 %v530, %v536
    %540 = vrot.lane.b32.xlu0 %v538, 32
    %v541 = vpop.permute.xlu0 %540
    %v543 = vadd.f32 %v529, %v541
    %v544 = vmul.f32 %v543, 0.5
    %v545 = vadd.f32 %v527, %v544
    %v546 = vsub.f32 %v545, 0.5
    %v547 = vadd.f32 %v546, 0.0
    %v549 = vsel %vm336, %v521, 0
    %551 = vmatprep.subr.mxu0 0.0
    %552 = vmatpush1.msra.mxu0 %v309
    %553 = vmatprep.subr.mxu0 0.0
    %554 = vmatpush1.msra.mxu0 %v310
    %555 = vmatprep.subr.mxu0 0.0
    %556 = vmatpush1.msra.mxu0 %v311
    %557 = vmatprep.subr.mxu0 0.0
    %558 = vmatpush1.msra.mxu0 %v312
    %559 = vmatprep.subr.mxu0 0.0
    %560 = vmatpush1.msra.mxu0 0.0
    %561 = vmatprep.subr.mxu0 0.0
    %562 = vmatpush1.msra.mxu0 0.0
    %563 = vmatprep.subr.mxu0 0.0
    %564 = vmatpush1.msra.mxu0 0.0
    %565 = vmatprep.subr.mxu0 0.0
    %566 = vmatpush1.msra.mxu0 0.0
    %567 = vmatprep.subr.mxu0 0.0
    %568 = vmatpush1.msra.mxu0 0.0
    %569 = vmatprep.subr.mxu0 0.0
    %570 = vmatpush1.msra.mxu0 0.0
    %571 = vmatprep.subr.mxu0 0.0
    %572 = vmatpush1.msra.mxu0 0.0
    %573 = vmatprep.subr.mxu0 0.0
    %574 = vmatpush1.msra.mxu0 0.0
    %575 = vmatprep.subr.mxu0 0.0
    %576 = vmatpush1.msra.mxu0 0.0
    %577 = vmatprep.subr.mxu0 0.0
    %578 = vmatpush1.msra.mxu0 0.0
    %579 = vmatprep.subr.mxu0 0.0
    %580 = vmatpush1.msra.mxu0 0.0
    %581 = vmatprep.subr.mxu0 0.0
    %582 = vmatpush1.msra.mxu0 0.0
    %583 = vmatprep.subr.mxu0 0.0
    %584 = vmatpush1.msra.mxu0 0.0
    %585 = vmatprep.subr.mxu0 0.0
    %586 = vmatpush1.msra.mxu0 0.0
    %587 = vmatprep.subr.mxu0 0.0
    %588 = vmatpush1.msra.mxu0 0.0
    %589 = vmatprep.subr.mxu0 0.0
    %590 = vmatpush1.msra.mxu0 0.0
    %591 = vmatprep.subr.mxu0 0.0
    %592 = vmatpush1.msra.mxu0 0.0
    %593 = vmatprep.subr.mxu0 0.0
    %594 = vmatpush1.msra.mxu0 0.0
    %595 = vmatprep.subr.mxu0 0.0
    %596 = vmatpush1.msra.mxu0 0.0
    %597 = vmatprep.subr.mxu0 0.0
    %598 = vmatpush1.msra.mxu0 0.0
    %599 = vmatprep.subr.mxu0 0.0
    %600 = vmatpush1.msra.mxu0 0.0
    %601 = vmatprep.subr.mxu0 0.0
    %602 = vmatpush1.msra.mxu0 0.0
    %603 = vmatprep.subr.mxu0 0.0
    %604 = vmatpush1.msra.mxu0 0.0
    %605 = vmatprep.subr.mxu0 0.0
    %606 = vmatpush1.msra.mxu0 0.0
    %607 = vmatprep.subr.mxu0 0.0
    %608 = vmatpush1.msra.mxu0 0.0
    %609 = vmatprep.subr.mxu0 0.0
    %610 = vmatpush1.msra.mxu0 0.0
    %611 = vmatprep.subr.mxu0 0.0
    %612 = vmatpush1.msra.mxu0 0.0
    %613 = vmatprep.subr.mxu0 0.0
    %614 = vmatpush1.msra.mxu0 0.0
    %615 = vmatprep.mubr.f32.mxu0 0.0
    %616 = vmatmul.mubr.f32.gmra.mrb[0].mxu0 %v549
    %v617 = vpop.f32.mrb[0].mxu0
    %v618 = vadd.f32 0.0, %v617
    %v619 = vpop.f32.mrb[0].mxu0
    %620 = vdwg.mxu0
    %622 = vrot.lane.b32.xlu0 %v618, 64
    %v623 = vpop.permute.xlu0 %622
    %v625 = vadd.f32 %v267, %v623
    %v626 = vsub.f32 %v625, %v415
    %v627 = vmul.f32 %v626, %v626
    %v628 = vadd.f32 %v627, 0.0
    %v629 = vsel %vm336, %v521, 0.0
    %vm630 = vcmask 523264
    %v632 = vsel %vm630, %v629, 0
    %634 = vmatprep.subr.mxu0 0.0
    %635 = vmatpush1.msra.mxu0 %v313
    %636 = vmatprep.subr.mxu0 0.0
    %637 = vmatpush1.msra.mxu0 %v314
    %638 = vmatprep.subr.mxu0 0.0
    %639 = vmatpush1.msra.mxu0 %v315
    %640 = vmatprep.subr.mxu0 0.0
    %641 = vmatpush1.msra.mxu0 %v316
    %642 = vmatprep.subr.mxu0 0.0
    %643 = vmatpush1.msra.mxu0 %v317
    %644 = vmatprep.subr.mxu0 0.0
    %645 = vmatpush1.msra.mxu0 %v318
    %646 = vmatprep.subr.mxu0 0.0
    %647 = vmatpush1.msra.mxu0 %v319
    %648 = vmatprep.subr.mxu0 0.0
    %649 = vmatpush1.msra.mxu0 %v320
    %650 = vmatprep.subr.mxu0 0.0
    %651 = vmatpush1.msra.mxu0 0.0
    %652 = vmatprep.subr.mxu0 0.0
    %653 = vmatpush1.msra.mxu0 0.0
    %654 = vmatprep.subr.mxu0 0.0
    %655 = vmatpush1.msra.mxu0 0.0
    %656 = vmatprep.subr.mxu0 0.0
    %657 = vmatpush1.msra.mxu0 0.0
    %658 = vmatprep.subr.mxu0 0.0
    %659 = vmatpush1.msra.mxu0 0.0
    %660 = vmatprep.subr.mxu0 0.0
    %661 = vmatpush1.msra.mxu0 0.0
    %662 = vmatprep.subr.mxu0 0.0
    %663 = vmatpush1.msra.mxu0 0.0
    %664 = vmatprep.subr.mxu0 0.0
    %665 = vmatpush1.msra.mxu0 0.0
    %666 = vmatprep.subr.mxu0 0.0
    %667 = vmatpush1.msra.mxu0 0.0
    %668 = vmatprep.subr.mxu0 0.0
    %669 = vmatpush1.msra.mxu0 0.0
    %670 = vmatprep.subr.mxu0 0.0
    %671 = vmatpush1.msra.mxu0 0.0
    %672 = vmatprep.subr.mxu0 0.0
    %673 = vmatpush1.msra.mxu0 0.0
    %674 = vmatprep.subr.mxu0 0.0
    %675 = vmatpush1.msra.mxu0 0.0
    %676 = vmatprep.subr.mxu0 0.0
    %677 = vmatpush1.msra.mxu0 0.0
    %678 = vmatprep.subr.mxu0 0.0
    %679 = vmatpush1.msra.mxu0 0.0
    %680 = vmatprep.subr.mxu0 0.0
    %681 = vmatpush1.msra.mxu0 0.0
    %682 = vmatprep.subr.mxu0 0.0
    %683 = vmatpush1.msra.mxu0 0.0
    %684 = vmatprep.subr.mxu0 0.0
    %685 = vmatpush1.msra.mxu0 0.0
    %686 = vmatprep.subr.mxu0 0.0
    %687 = vmatpush1.msra.mxu0 0.0
    %688 = vmatprep.subr.mxu0 0.0
    %689 = vmatpush1.msra.mxu0 0.0
    %690 = vmatprep.subr.mxu0 0.0
    %691 = vmatpush1.msra.mxu0 0.0
    %692 = vmatprep.subr.mxu0 0.0
    %693 = vmatpush1.msra.mxu0 0.0
    %694 = vmatprep.subr.mxu0 0.0
    %695 = vmatpush1.msra.mxu0 0.0
    %696 = vmatprep.subr.mxu0 0.0
    %697 = vmatpush1.msra.mxu0 0.0
    %698 = vmatprep.mubr.f32.mxu0 0.0
    %699 = vmatmul.mubr.f32.gmra.mrb[0].mxu0 %v632
    %v700 = vpop.f32.mrb[0].mxu0
    %v701 = vadd.f32 0.0, %v700
    %v702 = vpop.f32.mrb[0].mxu0
    %703 = vdwg.mxu0
    %v704 = vadd.f32 %v265, %v701
    %v705 = vxor.u32 %v704, 2147483648
    %v706 = vmul.f32 %v705, 1.442695
    %v707 = vpow.pop %v706
    %v708 = vadd.f32 %v707, 1.0
    %v709 = vrcp.pop %v708
    %v710 = vmul.f32 1.0, %v709
    %v711 = vtanh.pop %v704
    %v712 = vmul.f32 %v710, 0.0
    %714 = vrot.lane.b32.xlu0 %v711, 32
    %v715 = vpop.permute.xlu0 %714
    %v717 = vmul.f32 %v710, %v715
    %719 = vrot.lane.b32.xlu0 %v717, 32
    %v720 = vpop.permute.xlu0 %719
    %v722 = vadd.f32 %v712, %v720
    %v723 = vtanh.pop %v722
    %725 = vrot.lane.b32.xlu0 %v723, 32
    %v726 = vpop.permute.xlu0 %725
    %v728 = vmul.f32 %v710, %v726
    %730 = vrot.lane.b32.xlu0 %v728, 64
    %v731 = vpop.permute.xlu0 %730
    %v733 = vsel %vm336, %v731, 0.0
    %v735 = vsel %vm630, %v733, 0
    %737 = vmatprep.subr.mxu0 0.0
    %738 = vmatpush1.msra.mxu0 %v321
    %739 = vmatprep.subr.mxu0 0.0
    %740 = vmatpush1.msra.mxu0 %v322
    %741 = vmatprep.subr.mxu0 0.0
    %742 = vmatpush1.msra.mxu0 %v323
    %743 = vmatprep.subr.mxu0 0.0
    %744 = vmatpush1.msra.mxu0 %v324
    %745 = vmatprep.subr.mxu0 0.0
    %746 = vmatpush1.msra.mxu0 %v325
    %747 = vmatprep.subr.mxu0 0.0
    %748 = vmatpush1.msra.mxu0 %v326
    %749 = vmatprep.subr.mxu0 0.0
    %750 = vmatpush1.msra.mxu0 %v327
    %751 = vmatprep.subr.mxu0 0.0
    %752 = vmatpush1.msra.mxu0 %v328
    %753 = vmatprep.subr.mxu0 0.0
    %754 = vmatpush1.msra.mxu0 0.0
    %755 = vmatprep.subr.mxu0 0.0
    %756 = vmatpush1.msra.mxu0 0.0
    %757 = vmatprep.subr.mxu0 0.0
    %758 = vmatpush1.msra.mxu0 0.0
    %759 = vmatprep.subr.mxu0 0.0
    %760 = vmatpush1.msra.mxu0 0.0
    %761 = vmatprep.subr.mxu0 0.0
    %762 = vmatpush1.msra.mxu0 0.0
    %763 = vmatprep.subr.mxu0 0.0
    %764 = vmatpush1.msra.mxu0 0.0
    %765 = vmatprep.subr.mxu0 0.0
    %766 = vmatpush1.msra.mxu0 0.0
    %767 = vmatprep.subr.mxu0 0.0
    %768 = vmatpush1.msra.mxu0 0.0
    %769 = vmatprep.subr.mxu0 0.0
    %770 = vmatpush1.msra.mxu0 0.0
    %771 = vmatprep.subr.mxu0 0.0
    %772 = vmatpush1.msra.mxu0 0.0
    %773 = vmatprep.subr.mxu0 0.0
    %774 = vmatpush1.msra.mxu0 0.0
    %775 = vmatprep.subr.mxu0 0.0
    %776 = vmatpush1.msra.mxu0 0.0
    %777 = vmatprep.subr.mxu0 0.0
    %778 = vmatpush1.msra.mxu0 0.0
    %779 = vmatprep.subr.mxu0 0.0
    %780 = vmatpush1.msra.mxu0 0.0
    %781 = vmatprep.subr.mxu0 0.0
    %782 = vmatpush1.msra.mxu0 0.0
    %783 = vmatprep.subr.mxu0 0.0
    %784 = vmatpush1.msra.mxu0 0.0
    %785 = vmatprep.subr.mxu0 0.0
    %786 = vmatpush1.msra.mxu0 0.0
    %787 = vmatprep.subr.mxu0 0.0
    %788 = vmatpush1.msra.mxu0 0.0
    %789 = vmatprep.subr.mxu0 0.0
    %790 = vmatpush1.msra.mxu0 0.0
    %791 = vmatprep.subr.mxu0 0.0
    %792 = vmatpush1.msra.mxu0 0.0
    %793 = vmatprep.subr.mxu0 0.0
    %794 = vmatpush1.msra.mxu0 0.0
    %795 = vmatprep.subr.mxu0 0.0
    %796 = vmatpush1.msra.mxu0 0.0
    %797 = vmatprep.subr.mxu0 0.0
    %798 = vmatpush1.msra.mxu0 0.0
    %799 = vmatprep.subr.mxu0 0.0
    %800 = vmatpush1.msra.mxu0 0.0
    %801 = vmatprep.mubr.f32.mxu0 0.0
    %802 = vmatmul.mubr.f32.gmra.mrb[0].mxu0 %v735
    %v803 = vpop.f32.mrb[0].mxu0
    %v804 = vadd.f32 %v334, %v803
    %v805 = vpop.f32.mrb[0].mxu0
    %806 = vdwg.mxu0
    %v807 = vxor.u32 %v804, 2147483648
    %v808 = vmul.f32 %v807, 1.442695
    %v809 = vpow.pop %v808
    %v810 = vadd.f32 %v809, 1.0
    %v811 = vrcp.pop %v810
    %v812 = vmul.f32 1.0, %v811
    %v813 = vtanh.pop %v804
    %v814 = vmul.f32 %v812, 0.0
    %816 = vrot.lane.b32.xlu0 %v813, 32
    %v817 = vpop.permute.xlu0 %816
    %v819 = vmul.f32 %v812, %v817
    %821 = vrot.lane.b32.xlu0 %v819, 32
    %v822 = vpop.permute.xlu0 %821
    %v824 = vadd.f32 %v814, %v822
    %v825 = vtanh.pop %v824
    %827 = vrot.lane.b32.xlu0 %v825, 32
    %v828 = vpop.permute.xlu0 %827
    %v830 = vmul.f32 %v812, %v828
    %832 = vrot.lane.b32.xlu0 %v824, 32
    %v833 = vpop.permute.xlu0 %832
    %v835 = vadd.f32 %v830, %v833
    %837 = vrot.lane.b32.xlu0 %v835, 64
    %v838 = vpop.permute.xlu0 %837
    %v839 = vsel %vm336, %v838, 0
    %841 = vmatprep.subr.mxu0 0.0
    %842 = vmatpush1.msra.mxu0 %v287
    %843 = vmatprep.subr.mxu0 0.0
    %844 = vmatpush1.msra.mxu0 %v288
    %845 = vmatprep.subr.mxu0 0.0
    %846 = vmatpush1.msra.mxu0 %v289
    %847 = vmatprep.subr.mxu0 0.0
    %848 = vmatpush1.msra.mxu0 %v290
    %849 = vmatprep.subr.mxu0 0.0
    %850 = vmatpush1.msra.mxu0 0.0
    %851 = vmatprep.subr.mxu0 0.0
    %852 = vmatpush1.msra.mxu0 0.0
    %853 = vmatprep.subr.mxu0 0.0
    %854 = vmatpush1.msra.mxu0 0.0
    %855 = vmatprep.subr.mxu0 0.0
    %856 = vmatpush1.msra.mxu0 0.0
    %857 = vmatprep.subr.mxu0 0.0
    %858 = vmatpush1.msra.mxu0 0.0
    %859 = vmatprep.subr.mxu0 0.0
    %860 = vmatpush1.msra.mxu0 0.0
    %861 = vmatprep.subr.mxu0 0.0
    %862 = vmatpush1.msra.mxu0 0.0
    %863 = vmatprep.subr.mxu0 0.0
    %864 = vmatpush1.msra.mxu0 0.0
    %865 = vmatprep.subr.mxu0 0.0
    %866 = vmatpush1.msra.mxu0 0.0
    %867 = vmatprep.subr.mxu0 0.0
    %868 = vmatpush1.msra.mxu0 0.0
    %869 = vmatprep.subr.mxu0 0.0
    %870 = vmatpush1.msra.mxu0 0.0
    %871 = vmatprep.subr.mxu0 0.0
    %872 = vmatpush1.msra.mxu0 0.0
    %873 = vmatprep.subr.mxu0 0.0
    %874 = vmatpush1.msra.mxu0 0.0
    %875 = vmatprep.subr.mxu0 0.0
    %876 = vmatpush1.msra.mxu0 0.0
    %877 = vmatprep.subr.mxu0 0.0
    %878 = vmatpush1.msra.mxu0 0.0
    %879 = vmatprep.subr.mxu0 0.0
    %880 = vmatpush1.msra.mxu0 0.0
    %881 = vmatprep.subr.mxu0 0.0
    %882 = vmatpush1.msra.mxu0 0.0
    %883 = vmatprep.subr.mxu0 0.0
    %884 = vmatpush1.msra.mxu0 0.0
    %885 = vmatprep.subr.mxu0 0.0
    %886 = vmatpush1.msra.mxu0 0.0
    %887 = vmatprep.subr.mxu0 0.0
    %888 = vmatpush1.msra.mxu0 0.0
    %889 = vmatprep.subr.mxu0 0.0
    %890 = vmatpush1.msra.mxu0 0.0
    %891 = vmatprep.subr.mxu0 0.0
    %892 = vmatpush1.msra.mxu0 0.0
    %893 = vmatprep.subr.mxu0 0.0
    %894 = vmatpush1.msra.mxu0 0.0
    %895 = vmatprep.subr.mxu0 0.0
    %896 = vmatpush1.msra.mxu0 0.0
    %897 = vmatprep.subr.mxu0 0.0
    %898 = vmatpush1.msra.mxu0 0.0
    %899 = vmatprep.subr.mxu0 0.0
    %900 = vmatpush1.msra.mxu0 0.0
    %901 = vmatprep.subr.mxu0 0.0
    %902 = vmatpush1.msra.mxu0 0.0
    %903 = vmatprep.subr.mxu0 0.0
    %904 = vmatpush1.msra.mxu0 0.0
    %905 = vmatprep.mubr.f32.mxu0 0.0
    %906 = vmatmul.mubr.f32.gmra.mrb[0].mxu0 %v839
    %v907 = vpop.f32.mrb[0].mxu0
    %v908 = vadd.f32 %v296, %v907
    %v909 = vpop.f32.mrb[0].mxu0
    %910 = vdwg.mxu0
    %v911 = vrot.slane %v267, 4
    %912 = vrot.lane.b32.xlu0 %v911, 64
    %v913 = vpop.permute.xlu0 %912
    %v915 = vadd.f32 %v908, %v913
    %v916 = vld [vmem:[#allocation2 + $0x4] sm:$0xf]
    %v917 = vmul.f32 %v915, 0.5
    %v918 = vmul.f32 %v917, 1.442695
    %v919 = vpow.pop %v918
    %921 = vrot.lane.b32.xlu0 %v916, 64
    %v922 = vpop.permute.xlu0 %921
    %v924 = vmul.f32 %v919, %v922
    %926 = vrot.lane.b32.xlu0 %v924, 96
    %v927 = vpop.permute.xlu0 %926
    %v929 = vadd.f32 %v915, %v927
    %931 = vrot.lane.b32.xlu0 %v929, 64
    %v932 = vpop.permute.xlu0 %931
    %v933 = vsel %vm336, %v932, 0
    %935 = vmatprep.subr.mxu0 0.0
    %936 = vmatpush1.msra.mxu0 %v298
    %937 = vmatprep.subr.mxu0 0.0
    %938 = vmatpush1.msra.mxu0 %v299
    %939 = vmatprep.subr.mxu0 0.0
    %940 = vmatpush1.msra.mxu0 %v300
    %941 = vmatprep.subr.mxu0 0.0
    %942 = vmatpush1.msra.mxu0 %v301
    %943 = vmatprep.subr.mxu0 0.0
    %944 = vmatpush1.msra.mxu0 0.0
    %945 = vmatprep.subr.mxu0 0.0
    %946 = vmatpush1.msra.mxu0 0.0
    %947 = vmatprep.subr.mxu0 0.0
    %948 = vmatpush1.msra.mxu0 0.0
    %949 = vmatprep.subr.mxu0 0.0
    %950 = vmatpush1.msra.mxu0 0.0
    %951 = vmatprep.subr.mxu0 0.0
    %952 = vmatpush1.msra.mxu0 0.0
    %953 = vmatprep.subr.mxu0 0.0
    %954 = vmatpush1.msra.mxu0 0.0
    %955 = vmatprep.subr.mxu0 0.0
    %956 = vmatpush1.msra.mxu0 0.0
    %957 = vmatprep.subr.mxu0 0.0
    %958 = vmatpush1.msra.mxu0 0.0
    %959 = vmatprep.subr.mxu0 0.0
    %960 = vmatpush1.msra.mxu0 0.0
    %961 = vmatprep.subr.mxu0 0.0
    %962 = vmatpush1.msra.mxu0 0.0
    %963 = vmatprep.subr.mxu0 0.0
    %964 = vmatpush1.msra.mxu0 0.0
    %965 = vmatprep.subr.mxu0 0.0
    %966 = vmatpush1.msra.mxu0 0.0
    %967 = vmatprep.subr.mxu0 0.0
    %968 = vmatpush1.msra.mxu0 0.0
    %969 = vmatprep.subr.mxu0 0.0
    %970 = vmatpush1.msra.mxu0 0.0
    %971 = vmatprep.subr.mxu0 0.0
    %972 = vmatpush1.msra.mxu0 0.0
    %973 = vmatprep.subr.mxu0 0.0
    %974 = vmatpush1.msra.mxu0 0.0
    %975 = vmatprep.subr.mxu0 0.0
    %976 = vmatpush1.msra.mxu0 0.0
    %977 = vmatprep.subr.mxu0 0.0
    %978 = vmatpush1.msra.mxu0 0.0
    %979 = vmatprep.subr.mxu0 0.0
    %980 = vmatpush1.msra.mxu0 0.0
    %981 = vmatprep.subr.mxu0 0.0
    %982 = vmatpush1.msra.mxu0 0.0
    %983 = vmatprep.subr.mxu0 0.0
    %984 = vmatpush1.msra.mxu0 0.0
    %985 = vmatprep.subr.mxu0 0.0
    %986 = vmatpush1.msra.mxu0 0.0
    %987 = vmatprep.subr.mxu0 0.0
    %988 = vmatpush1.msra.mxu0 0.0
    %989 = vmatprep.subr.mxu0 0.0
    %990 = vmatpush1.msra.mxu0 0.0
    %991 = vmatprep.subr.mxu0 0.0
    %992 = vmatpush1.msra.mxu0 0.0
    %993 = vmatprep.subr.mxu0 0.0
    %994 = vmatpush1.msra.mxu0 0.0
    %995 = vmatprep.subr.mxu0 0.0
    %996 = vmatpush1.msra.mxu0 0.0
    %997 = vmatprep.subr.mxu0 0.0
    %998 = vmatpush1.msra.mxu0 0.0
    %999 = vmatprep.mubr.f32.mxu0 0.0
    %1000 = vmatmul.mubr.f32.gmra.mrb[0].mxu0 %v933
    %v1001 = vpop.f32.mrb[0].mxu0
    %v1002 = vadd.f32 %v307, %v1001
    %v1003 = vpop.f32.mrb[0].mxu0
    %1004 = vdwg.mxu0
    %v1005 = vmax.f32 %v1002, 0.0
    %vm1006 = vcmp.ne.f32.partialorder %v1002, %v1002
    %v1007 = vadd.f32 %v1002, 0.0
    %v1008 = vand.u32 2147483647, %v1002
    %v1009 = vsub.f32 0.0, %v1008
    %v1010 = vmul.f32 %v1009, 1.442695
    %v1011 = vpow.pop %v1010
    %v1012 = vadd.f32 %v1011, 1.0
    %v1013 = vlog2.pop %v1012
    %v1014 = vmul.f32 %v1013, 0.6931472
    %v1015 = vmul.f32 -0.5, %v1011
    %v1016 = vadd.f32 %v1015, 1.0
    %v1017 = vmul.f32 %v1016, %v1011
    %v1018 = vand.u32 2147483647, %v1011
    %vm1019 = vcmp.lt.f32.partialorder %v1018, 0.0004427343
    %v1020 = vsel %vm1019, %v1017, %v1014
    %v1021 = vadd.f32 %v1005, %v1020
    %v1022 = vsel %vm1006, %v1007, %v1021
    %1024 = vrot.lane.b32.xlu0 %v908, 64
    %v1025 = vpop.permute.xlu0 %1024
    %v1027 = vsub.f32 %v915, %v1025
    %v1028 = vmul.f32 %v1027, -0.5
    %v1029 = vmul.f32 %v1027, 1.442695
    %v1030 = vpow.pop %v1029
    %v1031 = vmul.f32 %v1027, %v1027
    %v1032 = vsub.f32 0.0, %v908
    %v1033 = vmul.f32 %v1032, 1.442695
    %v1034 = vpow.pop %v1033
    %1036 = vrot.lane.b32.xlu0 %v1034, 32
    %v1037 = vpop.permute.xlu0 %1036
    %v1039 = vmul.f32 %v1031, %v1037
    %1041 = vrot.lane.b32.xlu0 %v1039, 32
    %v1042 = vpop.permute.xlu0 %1041
    %v1044 = vadd.f32 %v1030, %v1042
    %v1045 = vmul.f32 %v1044, 0.5
    %v1046 = vadd.f32 %v1028, %v1045
    %v1047 = vsub.f32 %v1046, 0.5
    %v1048 = vadd.f32 %v547, %v1047
    %v1050 = vsel %vm336, %v1022, 0
    %1052 = vmatprep.subr.mxu0 0.0
    %1053 = vmatpush1.msra.mxu0 %v309
    %1054 = vmatprep.subr.mxu0 0.0
    %1055 = vmatpush1.msra.mxu0 %v310
    %1056 = vmatprep.subr.mxu0 0.0
    %1057 = vmatpush1.msra.mxu0 %v311
    %1058 = vmatprep.subr.mxu0 0.0
    %1059 = vmatpush1.msra.mxu0 %v312
    %1060 = vmatprep.subr.mxu0 0.0
    %1061 = vmatpush1.msra.mxu0 0.0
    %1062 = vmatprep.subr.mxu0 0.0
    %1063 = vmatpush1.msra.mxu0 0.0
    %1064 = vmatprep.subr.mxu0 0.0
    %1065 = vmatpush1.msra.mxu0 0.0
    %1066 = vmatprep.subr.mxu0 0.0
    %1067 = vmatpush1.msra.mxu0 0.0
    %1068 = vmatprep.subr.mxu0 0.0
    %1069 = vmatpush1.msra.mxu0 0.0
    %1070 = vmatprep.subr.mxu0 0.0
    %1071 = vmatpush1.msra.mxu0 0.0
    %1072 = vmatprep.subr.mxu0 0.0
    %1073 = vmatpush1.msra.mxu0 0.0
    %1074 = vmatprep.subr.mxu0 0.0
    %1075 = vmatpush1.msra.mxu0 0.0
    %1076 = vmatprep.subr.mxu0 0.0
    %1077 = vmatpush1.msra.mxu0 0.0
    %1078 = vmatprep.subr.mxu0 0.0
    %1079 = vmatpush1.msra.mxu0 0.0
    %1080 = vmatprep.subr.mxu0 0.0
    %1081 = vmatpush1.msra.mxu0 0.0
    %1082 = vmatprep.subr.mxu0 0.0
    %1083 = vmatpush1.msra.mxu0 0.0
    %1084 = vmatprep.subr.mxu0 0.0
    %1085 = vmatpush1.msra.mxu0 0.0
    %1086 = vmatprep.subr.mxu0 0.0
    %1087 = vmatpush1.msra.mxu0 0.0
    %1088 = vmatprep.subr.mxu0 0.0
    %1089 = vmatpush1.msra.mxu0 0.0
    %1090 = vmatprep.subr.mxu0 0.0
    %1091 = vmatpush1.msra.mxu0 0.0
    %1092 = vmatprep.subr.mxu0 0.0
    %1093 = vmatpush1.msra.mxu0 0.0
    %1094 = vmatprep.subr.mxu0 0.0
    %1095 = vmatpush1.msra.mxu0 0.0
    %1096 = vmatprep.subr.mxu0 0.0
    %1097 = vmatpush1.msra.mxu0 0.0
    %1098 = vmatprep.subr.mxu0 0.0
    %1099 = vmatpush1.msra.mxu0 0.0
    %1100 = vmatprep.subr.mxu0 0.0
    %1101 = vmatpush1.msra.mxu0 0.0
    %1102 = vmatprep.subr.mxu0 0.0
    %1103 = vmatpush1.msra.mxu0 0.0
    %1104 = vmatprep.subr.mxu0 0.0
    %1105 = vmatpush1.msra.mxu0 0.0
    %1106 = vmatprep.subr.mxu0 0.0
    %1107 = vmatpush1.msra.mxu0 0.0
    %1108 = vmatprep.subr.mxu0 0.0
    %1109 = vmatpush1.msra.mxu0 0.0
    %1110 = vmatprep.subr.mxu0 0.0
    %1111 = vmatpush1.msra.mxu0 0.0
    %1112 = vmatprep.subr.mxu0 0.0
    %1113 = vmatpush1.msra.mxu0 0.0
    %1114 = vmatprep.subr.mxu0 0.0
    %1115 = vmatpush1.msra.mxu0 0.0
    %1116 = vmatprep.mubr.f32.mxu0 0.0
    %1117 = vmatmul.mubr.f32.gmra.mrb[0].mxu0 %v1050
    %v1118 = vpop.f32.mrb[0].mxu0
    %v1119 = vadd.f32 0.0, %v1118
    %v1120 = vpop.f32.mrb[0].mxu0
    %1121 = vdwg.mxu0
    %v1123 = vrot.slane %v1119, 4
    %1124 = vrot.lane.b32.xlu0 %v1123, 64
    %v1125 = vpop.permute.xlu0 %1124
    %v1127 = vadd.f32 %v267, %v1125
    %v1128 = vrot.slane %v916, 4
    %v1130 = vsub.f32 %v1127, %v1128
    %v1131 = vmul.f32 %v1130, %v1130
    %v1133 = vrot.slane %v1131, 4
    %v1135 = vadd.f32 %v628, %v1133
    %1136 = vrot.lane.b32.xlu0 %v728, 96
    %v1137 = vpop.permute.xlu0 %1136
    %v1139 = vsel %vm336, %v1022, %v1137
    %v1141 = vsel %vm630, %v1139, 0
    %1143 = vmatprep.subr.mxu0 0.0
    %1144 = vmatpush1.msra.mxu0 %v313
    %1145 = vmatprep.subr.mxu0 0.0
    %1146 = vmatpush1.msra.mxu0 %v314
    %1147 = vmatprep.subr.mxu0 0.0
    %1148 = vmatpush1.msra.mxu0 %v315
    %1149 = vmatprep.subr.mxu0 0.0
    %1150 = vmatpush1.msra.mxu0 %v316
    %1151 = vmatprep.subr.mxu0 0.0
    %1152 = vmatpush1.msra.mxu0 %v317
    %1153 = vmatprep.subr.mxu0 0.0
    %1154 = vmatpush1.msra.mxu0 %v318
    %1155 = vmatprep.subr.mxu0 0.0
    %1156 = vmatpush1.msra.mxu0 %v319
    %1157 = vmatprep.subr.mxu0 0.0
    %1158 = vmatpush1.msra.mxu0 %v320
    %1159 = vmatprep.subr.mxu0 0.0
    %1160 = vmatpush1.msra.mxu0 0.0
    %1161 = vmatprep.subr.mxu0 0.0
    %1162 = vmatpush1.msra.mxu0 0.0
    %1163 = vmatprep.subr.mxu0 0.0
    %1164 = vmatpush1.msra.mxu0 0.0
    %1165 = vmatprep.subr.mxu0 0.0
    %1166 = vmatpush1.msra.mxu0 0.0
    %1167 = vmatprep.subr.mxu0 0.0
    %1168 = vmatpush1.msra.mxu0 0.0
    %1169 = vmatprep.subr.mxu0 0.0
    %1170 = vmatpush1.msra.mxu0 0.0
    %1171 = vmatprep.subr.mxu0 0.0
    %1172 = vmatpush1.msra.mxu0 0.0
    %1173 = vmatprep.subr.mxu0 0.0
    %1174 = vmatpush1.msra.mxu0 0.0
    %1175 = vmatprep.subr.mxu0 0.0
    %1176 = vmatpush1.msra.mxu0 0.0
    %1177 = vmatprep.subr.mxu0 0.0
    %1178 = vmatpush1.msra.mxu0 0.0
    %1179 = vmatprep.subr.mxu0 0.0
    %1180 = vmatpush1.msra.mxu0 0.0
    %1181 = vmatprep.subr.mxu0 0.0
    %1182 = vmatpush1.msra.mxu0 0.0
    %1183 = vmatprep.subr.mxu0 0.0
    %1184 = vmatpush1.msra.mxu0 0.0
    %1185 = vmatprep.subr.mxu0 0.0
    %1186 = vmatpush1.msra.mxu0 0.0
    %1187 = vmatprep.subr.mxu0 0.0
    %1188 = vmatpush1.msra.mxu0 0.0
    %1189 = vmatprep.subr.mxu0 0.0
    %1190 = vmatpush1.msra.mxu0 0.0
    %1191 = vmatprep.subr.mxu0 0.0
    %1192 = vmatpush1.msra.mxu0 0.0
    %1193 = vmatprep.subr.mxu0 0.0
    %1194 = vmatpush1.msra.mxu0 0.0
    %1195 = vmatprep.subr.mxu0 0.0
    %1196 = vmatpush1.msra.mxu0 0.0
    %1197 = vmatprep.subr.mxu0 0.0
    %1198 = vmatpush1.msra.mxu0 0.0
    %1199 = vmatprep.subr.mxu0 0.0
    %1200 = vmatpush1.msra.mxu0 0.0
    %1201 = vmatprep.subr.mxu0 0.0
    %1202 = vmatpush1.msra.mxu0 0.0
    %1203 = vmatprep.subr.mxu0 0.0
    %1204 = vmatpush1.msra.mxu0 0.0
    %1205 = vmatprep.subr.mxu0 0.0
    %1206 = vmatpush1.msra.mxu0 0.0
    %1207 = vmatprep.mubr.f32.mxu0 0.0
    %1208 = vmatmul.mubr.f32.gmra.mrb[0].mxu0 %v1141
    %v1209 = vpop.f32.mrb[0].mxu0
    %v1210 = vadd.f32 0.0, %v1209
    %v1211 = vpop.f32.mrb[0].mxu0
    %1212 = vdwg.mxu0
    %v1214 = vrot.slane %v1210, 4
    %v1216 = vadd.f32 %v265, %v1214
    %v1217 = vxor.u32 %v1216, 2147483648
    %v1218 = vmul.f32 %v1217, 1.442695
    %v1219 = vpow.pop %v1218
    %v1220 = vadd.f32 %v1219, 1.0
    %v1221 = vrcp.pop %v1220
    %v1222 = vmul.f32 1.0, %v1221
    %v1223 = vtanh.pop %v1216
    %v1225 = vrot.slane %v722, 4
    %v1227 = vmul.f32 %v1222, %v1225
    %1229 = vrot.lane.b32.xlu0 %v1223, 32
    %v1230 = vpop.permute.xlu0 %1229
    %v1232 = vmul.f32 %v1222, %v1230
    %1234 = vrot.lane.b32.xlu0 %v1232, 32
    %v1235 = vpop.permute.xlu0 %1234
    %v1237 = vadd.f32 %v1227, %v1235
    %v1238 = vtanh.pop %v1237
    %1240 = vrot.lane.b32.xlu0 %v1238, 32
    %v1241 = vpop.permute.xlu0 %1240
    %v1243 = vmul.f32 %v1222, %v1241
    %1245 = vrot.lane.b32.xlu0 %v1243, 64
    %v1246 = vpop.permute.xlu0 %1245
    %v1249 = vrot.slane %v830, 4
    %1250 = vrot.lane.b32.xlu0 %v1249, 96
    %v1251 = vpop.permute.xlu0 %1250
    %v1253 = vsel %vm336, %v1246, %v1251
    %v1255 = vrot.slane %v1253, 4
    %v1256 = vsel %vm630, %v1255, 0
    %1258 = vmatprep.subr.mxu0 0.0
    %1259 = vmatpush1.msra.mxu0 %v321
    %1260 = vmatprep.subr.mxu0 0.0
    %1261 = vmatpush1.msra.mxu0 %v322
    %1262 = vmatprep.subr.mxu0 0.0
    %1263 = vmatpush1.msra.mxu0 %v323
    %1264 = vmatprep.subr.mxu0 0.0
    %1265 = vmatpush1.msra.mxu0 %v324
    %1266 = vmatprep.subr.mxu0 0.0
    %1267 = vmatpush1.msra.mxu0 %v325
    %1268 = vmatprep.subr.mxu0 0.0
    %1269 = vmatpush1.msra.mxu0 %v326
    %1270 = vmatprep.subr.mxu0 0.0
    %1271 = vmatpush1.msra.mxu0 %v327
    %1272 = vmatprep.subr.mxu0 0.0
    %1273 = vmatpush1.msra.mxu0 %v328
    %1274 = vmatprep.subr.mxu0 0.0
    %1275 = vmatpush1.msra.mxu0 0.0
    %1276 = vmatprep.subr.mxu0 0.0
    %1277 = vmatpush1.msra.mxu0 0.0
    %1278 = vmatprep.subr.mxu0 0.0
    %1279 = vmatpush1.msra.mxu0 0.0
    %1280 = vmatprep.subr.mxu0 0.0
    %1281 = vmatpush1.msra.mxu0 0.0
    %1282 = vmatprep.subr.mxu0 0.0
    %1283 = vmatpush1.msra.mxu0 0.0
    %1284 = vmatprep.subr.mxu0 0.0
    %1285 = vmatpush1.msra.mxu0 0.0
    %1286 = vmatprep.subr.mxu0 0.0
    %1287 = vmatpush1.msra.mxu0 0.0
    %1288 = vmatprep.subr.mxu0 0.0
    %1289 = vmatpush1.msra.mxu0 0.0
    %1290 = vmatprep.subr.mxu0 0.0
    %1291 = vmatpush1.msra.mxu0 0.0
    %1292 = vmatprep.subr.mxu0 0.0
    %1293 = vmatpush1.msra.mxu0 0.0
    %1294 = vmatprep.subr.mxu0 0.0
    %1295 = vmatpush1.msra.mxu0 0.0
    %1296 = vmatprep.subr.mxu0 0.0
    %1297 = vmatpush1.msra.mxu0 0.0
    %1298 = vmatprep.subr.mxu0 0.0
    %1299 = vmatpush1.msra.mxu0 0.0
    %1300 = vmatprep.subr.mxu0 0.0
    %1301 = vmatpush1.msra.mxu0 0.0
    %1302 = vmatprep.subr.mxu0 0.0
    %1303 = vmatpush1.msra.mxu0 0.0
    %1304 = vmatprep.subr.mxu0 0.0
    %1305 = vmatpush1.msra.mxu0 0.0
    %1306 = vmatprep.subr.mxu0 0.0
    %1307 = vmatpush1.msra.mxu0 0.0
    %1308 = vmatprep.subr.mxu0 0.0
    %1309 = vmatpush1.msra.mxu0 0.0
    %1310 = vmatprep.subr.mxu0 0.0
    %1311 = vmatpush1.msra.mxu0 0.0
    %1312 = vmatprep.subr.mxu0 0.0
    %1313 = vmatpush1.msra.mxu0 0.0
    %1314 = vmatprep.subr.mxu0 0.0
    %1315 = vmatpush1.msra.mxu0 0.0
    %1316 = vmatprep.subr.mxu0 0.0
    %1317 = vmatpush1.msra.mxu0 0.0
    %1318 = vmatprep.subr.mxu0 0.0
    %1319 = vmatpush1.msra.mxu0 0.0
    %1320 = vmatprep.subr.mxu0 0.0
    %1321 = vmatpush1.msra.mxu0 0.0
    %1322 = vmatprep.mubr.f32.mxu0 0.0
    %1323 = vmatmul.mubr.f32.gmra.mrb[0].mxu0 %v1256
    %v1324 = vpop.f32.mrb[0].mxu0
    %v1325 = vadd.f32 %v334, %v1324
    %v1326 = vpop.f32.mrb[0].mxu0
    %1327 = vdwg.mxu0
    %v1328 = vxor.u32 %v1325, 2147483648
    %v1329 = vmul.f32 %v1328, 1.442695
    %v1330 = vpow.pop %v1329
    %v1331 = vadd.f32 %v1330, 1.0
    %v1332 = vrcp.pop %v1331
    %v1333 = vmul.f32 1.0, %v1332
    %v1334 = vtanh.pop %v1325
    %v1335 = vmul.f32 %v1333, %v824
    %1337 = vrot.lane.b32.xlu0 %v1334, 32
    %v1338 = vpop.permute.xlu0 %1337
    %v1340 = vmul.f32 %v1333, %v1338
    %1342 = vrot.lane.b32.xlu0 %v1340, 32
    %v1343 = vpop.permute.xlu0 %1342
    %v1345 = vadd.f32 %v1335, %v1343
    %v1346 = vtanh.pop %v1345
    %1348 = vrot.lane.b32.xlu0 %v1346, 32
    %v1349 = vpop.permute.xlu0 %1348
    %v1351 = vmul.f32 %v1333, %v1349
    %1353 = vrot.lane.b32.xlu0 %v1345, 32
    %v1354 = vpop.permute.xlu0 %1353
    %v1356 = vadd.f32 %v1351, %v1354
    %1358 = vrot.lane.b32.xlu0 %v1356, 64
    %v1359 = vpop.permute.xlu0 %1358
    %v1360 = vsel %vm336, %v1359, 0
    %1362 = vmatprep.subr.mxu0 0.0
    %1363 = vmatpush1.msra.mxu0 %v287
    %1364 = vmatprep.subr.mxu0 0.0
    %1365 = vmatpush1.msra.mxu0 %v288
    %1366 = vmatprep.subr.mxu0 0.0
    %1367 = vmatpush1.msra.mxu0 %v289
    %1368 = vmatprep.subr.mxu0 0.0
    %1369 = vmatpush1.msra.mxu0 %v290
    %1370 = vmatprep.subr.mxu0 0.0
    %1371 = vmatpush1.msra.mxu0 0.0
    %1372 = vmatprep.subr.mxu0 0.0
    %1373 = vmatpush1.msra.mxu0 0.0
    %1374 = vmatprep.subr.mxu0 0.0
    %1375 = vmatpush1.msra.mxu0 0.0
    %1376 = vmatprep.subr.mxu0 0.0
    %1377 = vmatpush1.msra.mxu0 0.0
    %1378 = vmatprep.subr.mxu0 0.0
    %1379 = vmatpush1.msra.mxu0 0.0
    %1380 = vmatprep.subr.mxu0 0.0
    %1381 = vmatpush1.msra.mxu0 0.0
    %1382 = vmatprep.subr.mxu0 0.0
    %1383 = vmatpush1.msra.mxu0 0.0
    %1384 = vmatprep.subr.mxu0 0.0
    %1385 = vmatpush1.msra.mxu0 0.0
    %1386 = vmatprep.subr.mxu0 0.0
    %1387 = vmatpush1.msra.mxu0 0.0
    %1388 = vmatprep.subr.mxu0 0.0
    %1389 = vmatpush1.msra.mxu0 0.0
    %1390 = vmatprep.subr.mxu0 0.0
    %1391 = vmatpush1.msra.mxu0 0.0
    %1392 = vmatprep.subr.mxu0 0.0
    %1393 = vmatpush1.msra.mxu0 0.0
    %1394 = vmatprep.subr.mxu0 0.0
    %1395 = vmatpush1.msra.mxu0 0.0
    %1396 = vmatprep.subr.mxu0 0.0
    %1397 = vmatpush1.msra.mxu0 0.0
    %1398 = vmatprep.subr.mxu0 0.0
    %1399 = vmatpush1.msra.mxu0 0.0
    %1400 = vmatprep.subr.mxu0 0.0
    %1401 = vmatpush1.msra.mxu0 0.0
    %1402 = vmatprep.subr.mxu0 0.0
    %1403 = vmatpush1.msra.mxu0 0.0
    %1404 = vmatprep.subr.mxu0 0.0
    %1405 = vmatpush1.msra.mxu0 0.0
    %1406 = vmatprep.subr.mxu0 0.0
    %1407 = vmatpush1.msra.mxu0 0.0
    %1408 = vmatprep.subr.mxu0 0.0
    %1409 = vmatpush1.msra.mxu0 0.0
    %1410 = vmatprep.subr.mxu0 0.0
    %1411 = vmatpush1.msra.mxu0 0.0
    %1412 = vmatprep.subr.mxu0 0.0
    %1413 = vmatpush1.msra.mxu0 0.0
    %1414 = vmatprep.subr.mxu0 0.0
    %1415 = vmatpush1.msra.mxu0 0.0
    %1416 = vmatprep.subr.mxu0 0.0
    %1417 = vmatpush1.msra.mxu0 0.0
    %1418 = vmatprep.subr.mxu0 0.0
    %1419 = vmatpush1.msra.mxu0 0.0
    %1420 = vmatprep.subr.mxu0 0.0
    %1421 = vmatpush1.msra.mxu0 0.0
    %1422 = vmatprep.subr.mxu0 0.0
    %1423 = vmatpush1.msra.mxu0 0.0
    %1424 = vmatprep.subr.mxu0 0.0
    %1425 = vmatpush1.msra.mxu0 0.0
    %1426 = vmatprep.mubr.f32.mxu0 0.0
    %1427 = vmatmul.mubr.f32.gmra.mrb[0].mxu0 %v1360
    %v1428 = vpop.f32.mrb[0].mxu0
    %v1429 = vadd.f32 %v296, %v1428
    %v1430 = vpop.f32.mrb[0].mxu0
    %1431 = vdwg.mxu0
    %1433 = vrot.lane.b32.xlu0 %v273, 64
    %v1434 = vpop.permute.xlu0 %1433
    %v1436 = vadd.f32 %v1429, %v1434
    %v1437 = vld [vmem:[#allocation2 + $0x8] sm:$0xf]
    %v1438 = vmul.f32 %v1436, 0.5
    %v1439 = vmul.f32 %v1438, 1.442695
    %v1440 = vpow.pop %v1439
    %1442 = vrot.lane.b32.xlu0 %v1437, 64
    %v1443 = vpop.permute.xlu0 %1442
    %v1445 = vmul.f32 %v1440, %v1443
    %1447 = vrot.lane.b32.xlu0 %v1445, 96
    %v1448 = vpop.permute.xlu0 %1447
    %v1450 = vadd.f32 %v1436, %v1448
    %1452 = vrot.lane.b32.xlu0 %v1450, 64
    %v1453 = vpop.permute.xlu0 %1452
    %v1454 = vsel %vm336, %v1453, 0
    %1456 = vmatprep.subr.mxu0 0.0
    %1457 = vmatpush1.msra.mxu0 %v298
    %1458 = vmatprep.subr.mxu0 0.0
    %1459 = vmatpush1.msra.mxu0 %v299
    %1460 = vmatprep.subr.mxu0 0.0
    %1461 = vmatpush1.msra.mxu0 %v300
    %1462 = vmatprep.subr.mxu0 0.0
    %1463 = vmatpush1.msra.mxu0 %v301
    %1464 = vmatprep.subr.mxu0 0.0
    %1465 = vmatpush1.msra.mxu0 0.0
    %1466 = vmatprep.subr.mxu0 0.0
    %1467 = vmatpush1.msra.mxu0 0.0
    %1468 = vmatprep.subr.mxu0 0.0
    %1469 = vmatpush1.msra.mxu0 0.0
    %1470 = vmatprep.subr.mxu0 0.0
    %1471 = vmatpush1.msra.mxu0 0.0
    %1472 = vmatprep.subr.mxu0 0.0
    %1473 = vmatpush1.msra.mxu0 0.0
    %1474 = vmatprep.subr.mxu0 0.0
    %1475 = vmatpush1.msra.mxu0 0.0
    %1476 = vmatprep.subr.mxu0 0.0
    %1477 = vmatpush1.msra.mxu0 0.0
    %1478 = vmatprep.subr.mxu0 0.0
    %1479 = vmatpush1.msra.mxu0 0.0
    %1480 = vmatprep.subr.mxu0 0.0
    %1481 = vmatpush1.msra.mxu0 0.0
    %1482 = vmatprep.subr.mxu0 0.0
    %1483 = vmatpush1.msra.mxu0 0.0
    %1484 = vmatprep.subr.mxu0 0.0
    %1485 = vmatpush1.msra.mxu0 0.0
    %1486 = vmatprep.subr.mxu0 0.0
    %1487 = vmatpush1.msra.mxu0 0.0
    %1488 = vmatprep.subr.mxu0 0.0
    %1489 = vmatpush1.msra.mxu0 0.0
    %1490 = vmatprep.subr.mxu0 0.0
    %1491 = vmatpush1.msra.mxu0 0.0
    %1492 = vmatprep.subr.mxu0 0.0
    %1493 = vmatpush1.msra.mxu0 0.0
    %1494 = vmatprep.subr.mxu0 0.0
    %1495 = vmatpush1.msra.mxu0 0.0
    %1496 = vmatprep.subr.mxu0 0.0
    %1497 = vmatpush1.msra.mxu0 0.0
    %1498 = vmatprep.subr.mxu0 0.0
    %1499 = vmatpush1.msra.mxu0 0.0
    %1500 = vmatprep.subr.mxu0 0.0
    %1501 = vmatpush1.msra.mxu0 0.0
    %1502 = vmatprep.subr.mxu0 0.0
    %1503 = vmatpush1.msra.mxu0 0.0
    %1504 = vmatprep.subr.mxu0 0.0
    %1505 = vmatpush1.msra.mxu0 0.0
    %1506 = vmatprep.subr.mxu0 0.0
    %1507 = vmatpush1.msra.mxu0 0.0
    %1508 = vmatprep.subr.mxu0 0.0
    %1509 = vmatpush1.msra.mxu0 0.0
    %1510 = vmatprep.subr.mxu0 0.0
    %1511 = vmatpush1.msra.mxu0 0.0
    %1512 = vmatprep.subr.mxu0 0.0
    %1513 = vmatpush1.msra.mxu0 0.0
    %1514 = vmatprep.subr.mxu0 0.0
    %1515 = vmatpush1.msra.mxu0 0.0
    %1516 = vmatprep.subr.mxu0 0.0
    %1517 = vmatpush1.msra.mxu0 0.0
    %1518 = vmatprep.subr.mxu0 0.0
    %1519 = vmatpush1.msra.mxu0 0.0
    %1520 = vmatprep.mubr.f32.mxu0 0.0
    %1521 = vmatmul.mubr.f32.gmra.mrb[0].mxu0 %v1454
    %v1522 = vpop.f32.mrb[0].mxu0
    %v1523 = vadd.f32 %v307, %v1522
    %v1524 = vpop.f32.mrb[0].mxu0
    %1525 = vdwg.mxu0
    %v1526 = vmax.f32 %v1523, 0.0
    %vm1527 = vcmp.ne.f32.partialorder %v1523, %v1523
    %v1528 = vadd.f32 %v1523, 0.0
    %v1529 = vand.u32 2147483647, %v1523
    %v1530 = vsub.f32 0.0, %v1529
    %v1531 = vmul.f32 %v1530, 1.442695
    %v1532 = vpow.pop %v1531
    %v1533 = vadd.f32 %v1532, 1.0
    %v1534 = vlog2.pop %v1533
    %v1535 = vmul.f32 %v1534, 0.6931472
    %v1536 = vmul.f32 -0.5, %v1532
    %v1537 = vadd.f32 %v1536, 1.0
    %v1538 = vmul.f32 %v1537, %v1532
    %v1539 = vand.u32 2147483647, %v1532
    %vm1540 = vcmp.lt.f32.partialorder %v1539, 0.0004427343
    %v1541 = vsel %vm1540, %v1538, %v1535
    %v1542 = vadd.f32 %v1526, %v1541
    %v1543 = vsel %vm1527, %v1528, %v1542
    %1545 = vrot.lane.b32.xlu0 %v1429, 64
    %v1546 = vpop.permute.xlu0 %1545
    %v1548 = vsub.f32 %v1436, %v1546
    %v1549 = vmul.f32 %v1548, -0.5
    %v1550 = vmul.f32 %v1548, 1.442695
    %v1551 = vpow.pop %v1550
    %v1552 = vmul.f32 %v1548, %v1548
    %v1553 = vsub.f32 0.0, %v1429
    %v1554 = vmul.f32 %v1553, 1.442695
    %v1555 = vpow.pop %v1554
    %1557 = vrot.lane.b32.xlu0 %v1555, 32
    %v1558 = vpop.permute.xlu0 %1557
    %v1560 = vmul.f32 %v1552, %v1558
    %1562 = vrot.lane.b32.xlu0 %v1560, 32
    %v1563 = vpop.permute.xlu0 %1562
    %v1565 = vadd.f32 %v1551, %v1563
    %v1566 = vmul.f32 %v1565, 0.5
    %v1567 = vadd.f32 %v1549, %v1566
    %v1568 = vsub.f32 %v1567, 0.5
    %v1569 = vadd.f32 %v1048, %v1568
    %v1571 = vsel %vm336, %v1543, 0
    %1573 = vmatprep.subr.mxu0 0.0
    %1574 = vmatpush1.msra.mxu0 %v309
    %1575 = vmatprep.subr.mxu0 0.0
    %1576 = vmatpush1.msra.mxu0 %v310
    %1577 = vmatprep.subr.mxu0 0.0
    %1578 = vmatpush1.msra.mxu0 %v311
    %1579 = vmatprep.subr.mxu0 0.0
    %1580 = vmatpush1.msra.mxu0 %v312
    %1581 = vmatprep.subr.mxu0 0.0
    %1582 = vmatpush1.msra.mxu0 0.0
    %1583 = vmatprep.subr.mxu0 0.0
    %1584 = vmatpush1.msra.mxu0 0.0
    %1585 = vmatprep.subr.mxu0 0.0
    %1586 = vmatpush1.msra.mxu0 0.0
    %1587 = vmatprep.subr.mxu0 0.0
    %1588 = vmatpush1.msra.mxu0 0.0
    %1589 = vmatprep.subr.mxu0 0.0
    %1590 = vmatpush1.msra.mxu0 0.0
    %1591 = vmatprep.subr.mxu0 0.0
    %1592 = vmatpush1.msra.mxu0 0.0
    %1593 = vmatprep.subr.mxu0 0.0
    %1594 = vmatpush1.msra.mxu0 0.0
    %1595 = vmatprep.subr.mxu0 0.0
    %1596 = vmatpush1.msra.mxu0 0.0
    %1597 = vmatprep.subr.mxu0 0.0
    %1598 = vmatpush1.msra.mxu0 0.0
    %1599 = vmatprep.subr.mxu0 0.0
    %1600 = vmatpush1.msra.mxu0 0.0
    %1601 = vmatprep.subr.mxu0 0.0
    %1602 = vmatpush1.msra.mxu0 0.0
    %1603 = vmatprep.subr.mxu0 0.0
    %1604 = vmatpush1.msra.mxu0 0.0
    %1605 = vmatprep.subr.mxu0 0.0
    %1606 = vmatpush1.msra.mxu0 0.0
    %1607 = vmatprep.subr.mxu0 0.0
    %1608 = vmatpush1.msra.mxu0 0.0
    %1609 = vmatprep.subr.mxu0 0.0
    %1610 = vmatpush1.msra.mxu0 0.0
    %1611 = vmatprep.subr.mxu0 0.0
    %1612 = vmatpush1.msra.mxu0 0.0
    %1613 = vmatprep.subr.mxu0 0.0
    %1614 = vmatpush1.msra.mxu0 0.0
    %1615 = vmatprep.subr.mxu0 0.0
    %1616 = vmatpush1.msra.mxu0 0.0
    %1617 = vmatprep.subr.mxu0 0.0
    %1618 = vmatpush1.msra.mxu0 0.0
    %1619 = vmatprep.subr.mxu0 0.0
    %1620 = vmatpush1.msra.mxu0 0.0
    %1621 = vmatprep.subr.mxu0 0.0
    %1622 = vmatpush1.msra.mxu0 0.0
    %1623 = vmatprep.subr.mxu0 0.0
    %1624 = vmatpush1.msra.mxu0 0.0
    %1625 = vmatprep.subr.mxu0 0.0
    %1626 = vmatpush1.msra.mxu0 0.0
    %1627 = vmatprep.subr.mxu0 0.0
    %1628 = vmatpush1.msra.mxu0 0.0
    %1629 = vmatprep.subr.mxu0 0.0
    %1630 = vmatpush1.msra.mxu0 0.0
    %1631 = vmatprep.subr.mxu0 0.0
    %1632 = vmatpush1.msra.mxu0 0.0
    %1633 = vmatprep.subr.mxu0 0.0
    %1634 = vmatpush1.msra.mxu0 0.0
    %1635 = vmatprep.subr.mxu0 0.0
    %1636 = vmatpush1.msra.mxu0 0.0
    %1637 = vmatprep.mubr.f32.mxu0 0.0
    %1638 = vmatmul.mubr.f32.gmra.mrb[0].mxu0 %v1571
    %v1639 = vpop.f32.mrb[0].mxu0
    %v1640 = vadd.f32 0.0, %v1639
    %v1641 = vpop.f32.mrb[0].mxu0
    %1642 = vdwg.mxu0
    %1644 = vrot.lane.b32.xlu0 %v1640, 64
    %v1645 = vpop.permute.xlu0 %1644
    %v1647 = vadd.f32 %v273, %v1645
    %v1648 = vsub.f32 %v1647, %v1437
    %v1649 = vmul.f32 %v1648, %v1648
    %v1650 = vadd.f32 %v1135, %v1649
    %v1651 = vrot.slane %v1243, 4
    %1652 = vrot.lane.b32.xlu0 %v1651, 96
    %v1653 = vpop.permute.xlu0 %1652
    %v1655 = vsel %vm336, %v1543, %v1653
    %v1657 = vsel %vm630, %v1655, 0
    %1659 = vmatprep.subr.mxu0 0.0
    %1660 = vmatpush1.msra.mxu0 %v313
    %1661 = vmatprep.subr.mxu0 0.0
    %1662 = vmatpush1.msra.mxu0 %v314
    %1663 = vmatprep.subr.mxu0 0.0
    %1664 = vmatpush1.msra.mxu0 %v315
    %1665 = vmatprep.subr.mxu0 0.0
    %1666 = vmatpush1.msra.mxu0 %v316
    %1667 = vmatprep.subr.mxu0 0.0
    %1668 = vmatpush1.msra.mxu0 %v317
    %1669 = vmatprep.subr.mxu0 0.0
    %1670 = vmatpush1.msra.mxu0 %v318
    %1671 = vmatprep.subr.mxu0 0.0
    %1672 = vmatpush1.msra.mxu0 %v319
    %1673 = vmatprep.subr.mxu0 0.0
    %1674 = vmatpush1.msra.mxu0 %v320
    %1675 = vmatprep.subr.mxu0 0.0
    %1676 = vmatpush1.msra.mxu0 0.0
    %1677 = vmatprep.subr.mxu0 0.0
    %1678 = vmatpush1.msra.mxu0 0.0
    %1679 = vmatprep.subr.mxu0 0.0
    %1680 = vmatpush1.msra.mxu0 0.0
    %1681 = vmatprep.subr.mxu0 0.0
    %1682 = vmatpush1.msra.mxu0 0.0
    %1683 = vmatprep.subr.mxu0 0.0
    %1684 = vmatpush1.msra.mxu0 0.0
    %1685 = vmatprep.subr.mxu0 0.0
    %1686 = vmatpush1.msra.mxu0 0.0
    %1687 = vmatprep.subr.mxu0 0.0
    %1688 = vmatpush1.msra.mxu0 0.0
    %1689 = vmatprep.subr.mxu0 0.0
    %1690 = vmatpush1.msra.mxu0 0.0
    %1691 = vmatprep.subr.mxu0 0.0
    %1692 = vmatpush1.msra.mxu0 0.0
    %1693 = vmatprep.subr.mxu0 0.0
    %1694 = vmatpush1.msra.mxu0 0.0
    %1695 = vmatprep.subr.mxu0 0.0
    %1696 = vmatpush1.msra.mxu0 0.0
    %1697 = vmatprep.subr.mxu0 0.0
    %1698 = vmatpush1.msra.mxu0 0.0
    %1699 = vmatprep.subr.mxu0 0.0
    %1700 = vmatpush1.msra.mxu0 0.0
    %1701 = vmatprep.subr.mxu0 0.0
    %1702 = vmatpush1.msra.mxu0 0.0
    %1703 = vmatprep.subr.mxu0 0.0
    %1704 = vmatpush1.msra.mxu0 0.0
    %1705 = vmatprep.subr.mxu0 0.0
    %1706 = vmatpush1.msra.mxu0 0.0
    %1707 = vmatprep.subr.mxu0 0.0
    %1708 = vmatpush1.msra.mxu0 0.0
    %1709 = vmatprep.subr.mxu0 0.0
    %1710 = vmatpush1.msra.mxu0 0.0
    %1711 = vmatprep.subr.mxu0 0.0
    %1712 = vmatpush1.msra.mxu0 0.0
    %1713 = vmatprep.subr.mxu0 0.0
    %1714 = vmatpush1.msra.mxu0 0.0
    %1715 = vmatprep.subr.mxu0 0.0
    %1716 = vmatpush1.msra.mxu0 0.0
    %1717 = vmatprep.subr.mxu0 0.0
    %1718 = vmatpush1.msra.mxu0 0.0
    %1719 = vmatprep.subr.mxu0 0.0
    %1720 = vmatpush1.msra.mxu0 0.0
    %1721 = vmatprep.subr.mxu0 0.0
    %1722 = vmatpush1.msra.mxu0 0.0
    %1723 = vmatprep.mubr.f32.mxu0 0.0
    %1724 = vmatmul.mubr.f32.gmra.mrb[0].mxu0 %v1657
    %v1725 = vpop.f32.mrb[0].mxu0
    %v1726 = vadd.f32 0.0, %v1725
    %v1727 = vpop.f32.mrb[0].mxu0
    %1728 = vdwg.mxu0
    %v1729 = vadd.f32 %v271, %v1726
    %v1730 = vxor.u32 %v1729, 2147483648
    %v1731 = vmul.f32 %v1730, 1.442695
    %v1732 = vpow.pop %v1731
    %v1733 = vadd.f32 %v1732, 1.0
    %v1734 = vrcp.pop %v1733
    %v1735 = vmul.f32 1.0, %v1734
    %v1736 = vtanh.pop %v1729
    %v1738 = vrot.slane %v1237, 4
    %v1740 = vmul.f32 %v1735, %v1738
    %1742 = vrot.lane.b32.xlu0 %v1736, 32
    %v1743 = vpop.permute.xlu0 %1742
    %v1745 = vmul.f32 %v1735, %v1743
    %1747 = vrot.lane.b32.xlu0 %v1745, 32
    %v1748 = vpop.permute.xlu0 %1747
    %v1750 = vadd.f32 %v1740, %v1748
    %v1751 = vtanh.pop %v1750
    %1753 = vrot.lane.b32.xlu0 %v1751, 32
    %v1754 = vpop.permute.xlu0 %1753
    %v1756 = vmul.f32 %v1735, %v1754
    %1758 = vrot.lane.b32.xlu0 %v1756, 64
    %v1759 = vpop.permute.xlu0 %1758
    %1762 = vrot.lane.b32.xlu0 %v1351, 96
    %v1763 = vpop.permute.xlu0 %1762
    %v1765 = vsel %vm336, %v1759, %v1763
    %v1767 = vsel %vm630, %v1765, 0
    %1769 = vmatprep.subr.mxu0 0.0
    %1770 = vmatpush1.msra.mxu0 %v321
    %1771 = vmatprep.subr.mxu0 0.0
    %1772 = vmatpush1.msra.mxu0 %v322
    %1773 = vmatprep.subr.mxu0 0.0
    %1774 = vmatpush1.msra.mxu0 %v323
    %1775 = vmatprep.subr.mxu0 0.0
    %1776 = vmatpush1.msra.mxu0 %v324
    %1777 = vmatprep.subr.mxu0 0.0
    %1778 = vmatpush1.msra.mxu0 %v325
    %1779 = vmatprep.subr.mxu0 0.0
    %1780 = vmatpush1.msra.mxu0 %v326
    %1781 = vmatprep.subr.mxu0 0.0
    %1782 = vmatpush1.msra.mxu0 %v327
    %1783 = vmatprep.subr.mxu0 0.0
    %1784 = vmatpush1.msra.mxu0 %v328
    %1785 = vmatprep.subr.mxu0 0.0
    %1786 = vmatpush1.msra.mxu0 0.0
    %1787 = vmatprep.subr.mxu0 0.0
    %1788 = vmatpush1.msra.mxu0 0.0
    %1789 = vmatprep.subr.mxu0 0.0
    %1790 = vmatpush1.msra.mxu0 0.0
    %1791 = vmatprep.subr.mxu0 0.0
    %1792 = vmatpush1.msra.mxu0 0.0
    %1793 = vmatprep.subr.mxu0 0.0
    %1794 = vmatpush1.msra.mxu0 0.0
    %1795 = vmatprep.subr.mxu0 0.0
    %1796 = vmatpush1.msra.mxu0 0.0
    %1797 = vmatprep.subr.mxu0 0.0
    %1798 = vmatpush1.msra.mxu0 0.0
    %1799 = vmatprep.subr.mxu0 0.0
    %1800 = vmatpush1.msra.mxu0 0.0
    %1801 = vmatprep.subr.mxu0 0.0
    %1802 = vmatpush1.msra.mxu0 0.0
    %1803 = vmatprep.subr.mxu0 0.0
    %1804 = vmatpush1.msra.mxu0 0.0
    %1805 = vmatprep.subr.mxu0 0.0
    %1806 = vmatpush1.msra.mxu0 0.0
    %1807 = vmatprep.subr.mxu0 0.0
    %1808 = vmatpush1.msra.mxu0 0.0
    %1809 = vmatprep.subr.mxu0 0.0
    %1810 = vmatpush1.msra.mxu0 0.0
    %1811 = vmatprep.subr.mxu0 0.0
    %1812 = vmatpush1.msra.mxu0 0.0
    %1813 = vmatprep.subr.mxu0 0.0
    %1814 = vmatpush1.msra.mxu0 0.0
    %1815 = vmatprep.subr.mxu0 0.0
    %1816 = vmatpush1.msra.mxu0 0.0
    %1817 = vmatprep.subr.mxu0 0.0
    %1818 = vmatpush1.msra.mxu0 0.0
    %1819 = vmatprep.subr.mxu0 0.0
    %1820 = vmatpush1.msra.mxu0 0.0
    %1821 = vmatprep.subr.mxu0 0.0
    %1822 = vmatpush1.msra.mxu0 0.0
    %1823 = vmatprep.subr.mxu0 0.0
    %1824 = vmatpush1.msra.mxu0 0.0
    %1825 = vmatprep.subr.mxu0 0.0
    %1826 = vmatpush1.msra.mxu0 0.0
    %1827 = vmatprep.subr.mxu0 0.0
    %1828 = vmatpush1.msra.mxu0 0.0
    %1829 = vmatprep.subr.mxu0 0.0
    %1830 = vmatpush1.msra.mxu0 0.0
    %1831 = vmatprep.subr.mxu0 0.0
    %1832 = vmatpush1.msra.mxu0 0.0
    %1833 = vmatprep.mubr.f32.mxu0 0.0
    %1834 = vmatmul.mubr.f32.gmra.mrb[0].mxu0 %v1767
    %v1835 = vpop.f32.mrb[0].mxu0
    %v1836 = vadd.f32 %v334, %v1835
    %v1837 = vpop.f32.mrb[0].mxu0
    %1838 = vdwg.mxu0
    %v1839 = vxor.u32 %v1836, 2147483648
    %v1840 = vmul.f32 %v1839, 1.442695
    %v1841 = vpow.pop %v1840
    %v1842 = vadd.f32 %v1841, 1.0
    %v1843 = vrcp.pop %v1842
    %v1844 = vmul.f32 1.0, %v1843
    %v1845 = vtanh.pop %v1836
    %v1846 = vmul.f32 %v1844, %v1345
    %1848 = vrot.lane.b32.xlu0 %v1845, 32
    %v1849 = vpop.permute.xlu0 %1848
    %v1851 = vmul.f32 %v1844, %v1849
    %1853 = vrot.lane.b32.xlu0 %v1851, 32
    %v1854 = vpop.permute.xlu0 %1853
    %v1856 = vadd.f32 %v1846, %v1854
    %v1857 = vtanh.pop %v1856
    %1859 = vrot.lane.b32.xlu0 %v1857, 32
    %v1860 = vpop.permute.xlu0 %1859
    %v1862 = vmul.f32 %v1844, %v1860
    %1864 = vrot.lane.b32.xlu0 %v1856, 32
    %v1865 = vpop.permute.xlu0 %1864
    %v1867 = vadd.f32 %v1862, %v1865
    %1869 = vrot.lane.b32.xlu0 %v1867, 64
    %v1870 = vpop.permute.xlu0 %1869
    %v1871 = vsel %vm336, %v1870, 0
    %1873 = vmatprep.subr.mxu0 0.0
    %1874 = vmatpush1.msra.mxu0 %v287
    %1875 = vmatprep.subr.mxu0 0.0
    %1876 = vmatpush1.msra.mxu0 %v288
    %1877 = vmatprep.subr.mxu0 0.0
    %1878 = vmatpush1.msra.mxu0 %v289
    %1879 = vmatprep.subr.mxu0 0.0
    %1880 = vmatpush1.msra.mxu0 %v290
    %1881 = vmatprep.subr.mxu0 0.0
    %1882 = vmatpush1.msra.mxu0 0.0
    %1883 = vmatprep.subr.mxu0 0.0
    %1884 = vmatpush1.msra.mxu0 0.0
    %1885 = vmatprep.subr.mxu0 0.0
    %1886 = vmatpush1.msra.mxu0 0.0
    %1887 = vmatprep.subr.mxu0 0.0
    %1888 = vmatpush1.msra.mxu0 0.0
    %1889 = vmatprep.subr.mxu0 0.0
    %1890 = vmatpush1.msra.mxu0 0.0
    %1891 = vmatprep.subr.mxu0 0.0
    %1892 = vmatpush1.msra.mxu0 0.0
    %1893 = vmatprep.subr.mxu0 0.0
    %1894 = vmatpush1.msra.mxu0 0.0
    %1895 = vmatprep.subr.mxu0 0.0
    %1896 = vmatpush1.msra.mxu0 0.0
    %1897 = vmatprep.subr.mxu0 0.0
    %1898 = vmatpush1.msra.mxu0 0.0
    %1899 = vmatprep.subr.mxu0 0.0
    %1900 = vmatpush1.msra.mxu0 0.0
    %1901 = vmatprep.subr.mxu0 0.0
    %1902 = vmatpush1.msra.mxu0 0.0
    %1903 = vmatprep.subr.mxu0 0.0
    %1904 = vmatpush1.msra.mxu0 0.0
    %1905 = vmatprep.subr.mxu0 0.0
    %1906 = vmatpush1.msra.mxu0 0.0
    %1907 = vmatprep.subr.mxu0 0.0
    %1908 = vmatpush1.msra.mxu0 0.0
    %1909 = vmatprep.subr.mxu0 0.0
    %1910 = vmatpush1.msra.mxu0 0.0
    %1911 = vmatprep.subr.mxu0 0.0
    %1912 = vmatpush1.msra.mxu0 0.0
    %1913 = vmatprep.subr.mxu0 0.0
    %1914 = vmatpush1.msra.mxu0 0.0
    %1915 = vmatprep.subr.mxu0 0.0
    %1916 = vmatpush1.msra.mxu0 0.0
    %1917 = vmatprep.subr.mxu0 0.0
    %1918 = vmatpush1.msra.mxu0 0.0
    %1919 = vmatprep.subr.mxu0 0.0
    %1920 = vmatpush1.msra.mxu0 0.0
    %1921 = vmatprep.subr.mxu0 0.0
    %1922 = vmatpush1.msra.mxu0 0.0
    %1923 = vmatprep.subr.mxu0 0.0
    %1924 = vmatpush1.msra.mxu0 0.0
    %1925 = vmatprep.subr.mxu0 0.0
    %1926 = vmatpush1.msra.mxu0 0.0
    %1927 = vmatprep.subr.mxu0 0.0
    %1928 = vmatpush1.msra.mxu0 0.0
    %1929 = vmatprep.subr.mxu0 0.0
    %1930 = vmatpush1.msra.mxu0 0.0
    %1931 = vmatprep.subr.mxu0 0.0
    %1932 = vmatpush1.msra.mxu0 0.0
    %1933 = vmatprep.subr.mxu0 0.0
    %1934 = vmatpush1.msra.mxu0 0.0
    %1935 = vmatprep.subr.mxu0 0.0
    %1936 = vmatpush1.msra.mxu0 0.0
    %1937 = vmatprep.mubr.f32.mxu0 0.0
    %1938 = vmatmul.mubr.f32.gmra.mrb[0].mxu0 %v1871
    %v1939 = vpop.f32.mrb[0].mxu0
    %v1940 = vadd.f32 %v296, %v1939
    %v1941 = vpop.f32.mrb[0].mxu0
    %1942 = vdwg.mxu0
    %v1943 = vrot.slane %v273, 4
    %1944 = vrot.lane.b32.xlu0 %v1943, 64
    %v1945 = vpop.permute.xlu0 %1944
    %v1947 = vadd.f32 %v1940, %v1945
    %v1948 = vld [vmem:[#allocation2 + $0xc] sm:$0xf]
    %v1949 = vmul.f32 %v1947, 0.5
    %v1950 = vmul.f32 %v1949, 1.442695
    %v1951 = vpow.pop %v1950
    %1953 = vrot.lane.b32.xlu0 %v1948, 64
    %v1954 = vpop.permute.xlu0 %1953
    %v1956 = vmul.f32 %v1951, %v1954
    %1958 = vrot.lane.b32.xlu0 %v1956, 96
    %v1959 = vpop.permute.xlu0 %1958
    %v1961 = vadd.f32 %v1947, %v1959
    %1963 = vrot.lane.b32.xlu0 %v1961, 64
    %v1964 = vpop.permute.xlu0 %1963
    %v1965 = vsel %vm336, %v1964, 0
    %1967 = vmatprep.subr.mxu0 0.0
    %1968 = vmatpush1.msra.mxu0 %v298
    %1969 = vmatprep.subr.mxu0 0.0
    %1970 = vmatpush1.msra.mxu0 %v299
    %1971 = vmatprep.subr.mxu0 0.0
    %1972 = vmatpush1.msra.mxu0 %v300
    %1973 = vmatprep.subr.mxu0 0.0
    %1974 = vmatpush1.msra.mxu0 %v301
    %1975 = vmatprep.subr.mxu0 0.0
    %1976 = vmatpush1.msra.mxu0 0.0
    %1977 = vmatprep.subr.mxu0 0.0
    %1978 = vmatpush1.msra.mxu0 0.0
    %1979 = vmatprep.subr.mxu0 0.0
    %1980 = vmatpush1.msra.mxu0 0.0
    %1981 = vmatprep.subr.mxu0 0.0
    %1982 = vmatpush1.msra.mxu0 0.0
    %1983 = vmatprep.subr.mxu0 0.0
    %1984 = vmatpush1.msra.mxu0 0.0
    %1985 = vmatprep.subr.mxu0 0.0
    %1986 = vmatpush1.msra.mxu0 0.0
    %1987 = vmatprep.subr.mxu0 0.0
    %1988 = vmatpush1.msra.mxu0 0.0
    %1989 = vmatprep.subr.mxu0 0.0
    %1990 = vmatpush1.msra.mxu0 0.0
    %1991 = vmatprep.subr.mxu0 0.0
    %1992 = vmatpush1.msra.mxu0 0.0
    %1993 = vmatprep.subr.mxu0 0.0
    %1994 = vmatpush1.msra.mxu0 0.0
    %1995 = vmatprep.subr.mxu0 0.0
    %1996 = vmatpush1.msra.mxu0 0.0
    %1997 = vmatprep.subr.mxu0 0.0
    %1998 = vmatpush1.msra.mxu0 0.0
    %1999 = vmatprep.subr.mxu0 0.0
    %2000 = vmatpush1.msra.mxu0 0.0
    %2001 = vmatprep.subr.mxu0 0.0
    %2002 = vmatpush1.msra.mxu0 0.0
    %2003 = vmatprep.subr.mxu0 0.0
    %2004 = vmatpush1.msra.mxu0 0.0
    %2005 = vmatprep.subr.mxu0 0.0
    %2006 = vmatpush1.msra.mxu0 0.0
    %2007 = vmatprep.subr.mxu0 0.0
    %2008 = vmatpush1.msra.mxu0 0.0
    %2009 = vmatprep.subr.mxu0 0.0
    %2010 = vmatpush1.msra.mxu0 0.0
    %2011 = vmatprep.subr.mxu0 0.0
    %2012 = vmatpush1.msra.mxu0 0.0
    %2013 = vmatprep.subr.mxu0 0.0
    %2014 = vmatpush1.msra.mxu0 0.0
    %2015 = vmatprep.subr.mxu0 0.0
    %2016 = vmatpush1.msra.mxu0 0.0
    %2017 = vmatprep.subr.mxu0 0.0
    %2018 = vmatpush1.msra.mxu0 0.0
    %2019 = vmatprep.subr.mxu0 0.0
    %2020 = vmatpush1.msra.mxu0 0.0
    %2021 = vmatprep.subr.mxu0 0.0
    %2022 = vmatpush1.msra.mxu0 0.0
    %2023 = vmatprep.subr.mxu0 0.0
    %2024 = vmatpush1.msra.mxu0 0.0
    %2025 = vmatprep.subr.mxu0 0.0
    %2026 = vmatpush1.msra.mxu0 0.0
    %2027 = vmatprep.subr.mxu0 0.0
    %2028 = vmatpush1.msra.mxu0 0.0
    %2029 = vmatprep.subr.mxu0 0.0
    %2030 = vmatpush1.msra.mxu0 0.0
    %2031 = vmatprep.mubr.f32.mxu0 0.0
    %2032 = vmatmul.mubr.f32.gmra.mrb[0].mxu0 %v1965
    %v2033 = vpop.f32.mrb[0].mxu0
    %v2034 = vadd.f32 %v307, %v2033
    %v2035 = vpop.f32.mrb[0].mxu0
    %2036 = vdwg.mxu0
    %v2037 = vmax.f32 %v2034, 0.0
    %vm2038 = vcmp.ne.f32.partialorder %v2034, %v2034
    %v2039 = vadd.f32 %v2034, 0.0
    %v2040 = vand.u32 2147483647, %v2034
    %v2041 = vsub.f32 0.0, %v2040
    %v2042 = vmul.f32 %v2041, 1.442695
    %v2043 = vpow.pop %v2042
    %v2044 = vadd.f32 %v2043, 1.0
    %v2045 = vlog2.pop %v2044
    %v2046 = vmul.f32 %v2045, 0.6931472
    %v2047 = vmul.f32 -0.5, %v2043
    %v2048 = vadd.f32 %v2047, 1.0
    %v2049 = vmul.f32 %v2048, %v2043
    %v2050 = vand.u32 2147483647, %v2043
    %vm2051 = vcmp.lt.f32.partialorder %v2050, 0.0004427343
    %v2052 = vsel %vm2051, %v2049, %v2046
    %v2053 = vadd.f32 %v2037, %v2052
    %v2054 = vsel %vm2038, %v2039, %v2053
    %2056 = vrot.lane.b32.xlu0 %v1940, 64
    %v2057 = vpop.permute.xlu0 %2056
    %v2059 = vsub.f32 %v1947, %v2057
    %v2060 = vmul.f32 %v2059, -0.5
    %v2061 = vmul.f32 %v2059, 1.442695
    %v2062 = vpow.pop %v2061
    %v2063 = vmul.f32 %v2059, %v2059
    %v2064 = vsub.f32 0.0, %v1940
    %v2065 = vmul.f32 %v2064, 1.442695
    %v2066 = vpow.pop %v2065
    %2068 = vrot.lane.b32.xlu0 %v2066, 32
    %v2069 = vpop.permute.xlu0 %2068
    %v2071 = vmul.f32 %v2063, %v2069
    %2073 = vrot.lane.b32.xlu0 %v2071, 32
    %v2074 = vpop.permute.xlu0 %2073
    %v2076 = vadd.f32 %v2062, %v2074
    %v2077 = vmul.f32 %v2076, 0.5
    %v2078 = vadd.f32 %v2060, %v2077
    %v2079 = vsub.f32 %v2078, 0.5
    %v2080 = vadd.f32 %v1569, %v2079
    %v2082 = vsel %vm336, %v2054, 0
    %2084 = vmatprep.subr.mxu0 0.0
    %2085 = vmatpush1.msra.mxu0 %v309
    %2086 = vmatprep.subr.mxu0 0.0
    %2087 = vmatpush1.msra.mxu0 %v310
    %2088 = vmatprep.subr.mxu0 0.0
    %2089 = vmatpush1.msra.mxu0 %v311
    %2090 = vmatprep.subr.mxu0 0.0
    %2091 = vmatpush1.msra.mxu0 %v312
    %2092 = vmatprep.subr.mxu0 0.0
    %2093 = vmatpush1.msra.mxu0 0.0
    %2094 = vmatprep.subr.mxu0 0.0
    %2095 = vmatpush1.msra.mxu0 0.0
    %2096 = vmatprep.subr.mxu0 0.0
    %2097 = vmatpush1.msra.mxu0 0.0
    %2098 = vmatprep.subr.mxu0 0.0
    %2099 = vmatpush1.msra.mxu0 0.0
    %2100 = vmatprep.subr.mxu0 0.0
    %2101 = vmatpush1.msra.mxu0 0.0
    %2102 = vmatprep.subr.mxu0 0.0
    %2103 = vmatpush1.msra.mxu0 0.0
    %2104 = vmatprep.subr.mxu0 0.0
    %2105 = vmatpush1.msra.mxu0 0.0
    %2106 = vmatprep.subr.mxu0 0.0
    %2107 = vmatpush1.msra.mxu0 0.0
    %2108 = vmatprep.subr.mxu0 0.0
    %2109 = vmatpush1.msra.mxu0 0.0
    %2110 = vmatprep.subr.mxu0 0.0
    %2111 = vmatpush1.msra.mxu0 0.0
    %2112 = vmatprep.subr.mxu0 0.0
    %2113 = vmatpush1.msra.mxu0 0.0
    %2114 = vmatprep.subr.mxu0 0.0
    %2115 = vmatpush1.msra.mxu0 0.0
    %2116 = vmatprep.subr.mxu0 0.0
    %2117 = vmatpush1.msra.mxu0 0.0
    %2118 = vmatprep.subr.mxu0 0.0
    %2119 = vmatpush1.msra.mxu0 0.0
    %2120 = vmatprep.subr.mxu0 0.0
    %2121 = vmatpush1.msra.mxu0 0.0
    %2122 = vmatprep.subr.mxu0 0.0
    %2123 = vmatpush1.msra.mxu0 0.0
    %2124 = vmatprep.subr.mxu0 0.0
    %2125 = vmatpush1.msra.mxu0 0.0
    %2126 = vmatprep.subr.mxu0 0.0
    %2127 = vmatpush1.msra.mxu0 0.0
    %2128 = vmatprep.subr.mxu0 0.0
    %2129 = vmatpush1.msra.mxu0 0.0
    %2130 = vmatprep.subr.mxu0 0.0
    %2131 = vmatpush1.msra.mxu0 0.0
    %2132 = vmatprep.subr.mxu0 0.0
    %2133 = vmatpush1.msra.mxu0 0.0
    %2134 = vmatprep.subr.mxu0 0.0
    %2135 = vmatpush1.msra.mxu0 0.0
    %2136 = vmatprep.subr.mxu0 0.0
    %2137 = vmatpush1.msra.mxu0 0.0
    %2138 = vmatprep.subr.mxu0 0.0
    %2139 = vmatpush1.msra.mxu0 0.0
    %2140 = vmatprep.subr.mxu0 0.0
    %2141 = vmatpush1.msra.mxu0 0.0
    %2142 = vmatprep.subr.mxu0 0.0
    %2143 = vmatpush1.msra.mxu0 0.0
    %2144 = vmatprep.subr.mxu0 0.0
    %2145 = vmatpush1.msra.mxu0 0.0
    %2146 = vmatprep.subr.mxu0 0.0
    %2147 = vmatpush1.msra.mxu0 0.0
    %2148 = vmatprep.mubr.f32.mxu0 0.0
    %2149 = vmatmul.mubr.f32.gmra.mrb[0].mxu0 %v2082
    %v2150 = vpop.f32.mrb[0].mxu0
    %v2151 = vadd.f32 0.0, %v2150
    %v2152 = vpop.f32.mrb[0].mxu0
    %2153 = vdwg.mxu0
    %v2155 = vrot.slane %v2151, 4
    %2156 = vrot.lane.b32.xlu0 %v2155, 64
    %v2157 = vpop.permute.xlu0 %2156
    %v2159 = vadd.f32 %v273, %v2157
    %v2160 = vrot.slane %v1948, 4
    %v2162 = vsub.f32 %v2159, %v2160
    %v2163 = vmul.f32 %v2162, %v2162
    %v2165 = vrot.slane %v2163, 4
    %v2167 = vadd.f32 %v1650, %v2165
    %2168 = vrot.lane.b32.xlu0 %v1756, 96
    %v2169 = vpop.permute.xlu0 %2168
    %v2171 = vsel %vm336, %v2054, %v2169
    %v2173 = vsel %vm630, %v2171, 0
    %2175 = vmatprep.subr.mxu0 0.0
    %2176 = vmatpush1.msra.mxu0 %v313
    %2177 = vmatprep.subr.mxu0 0.0
    %2178 = vmatpush1.msra.mxu0 %v314
    %2179 = vmatprep.subr.mxu0 0.0
    %2180 = vmatpush1.msra.mxu0 %v315
    %2181 = vmatprep.subr.mxu0 0.0
    %2182 = vmatpush1.msra.mxu0 %v316
    %2183 = vmatprep.subr.mxu0 0.0
    %2184 = vmatpush1.msra.mxu0 %v317
    %2185 = vmatprep.subr.mxu0 0.0
    %2186 = vmatpush1.msra.mxu0 %v318
    %2187 = vmatprep.subr.mxu0 0.0
    %2188 = vmatpush1.msra.mxu0 %v319
    %2189 = vmatprep.subr.mxu0 0.0
    %2190 = vmatpush1.msra.mxu0 %v320
    %2191 = vmatprep.subr.mxu0 0.0
    %2192 = vmatpush1.msra.mxu0 0.0
    %2193 = vmatprep.subr.mxu0 0.0
    %2194 = vmatpush1.msra.mxu0 0.0
    %2195 = vmatprep.subr.mxu0 0.0
    %2196 = vmatpush1.msra.mxu0 0.0
    %2197 = vmatprep.subr.mxu0 0.0
    %2198 = vmatpush1.msra.mxu0 0.0
    %2199 = vmatprep.subr.mxu0 0.0
    %2200 = vmatpush1.msra.mxu0 0.0
    %2201 = vmatprep.subr.mxu0 0.0
    %2202 = vmatpush1.msra.mxu0 0.0
    %2203 = vmatprep.subr.mxu0 0.0
    %2204 = vmatpush1.msra.mxu0 0.0
    %2205 = vmatprep.subr.mxu0 0.0
    %2206 = vmatpush1.msra.mxu0 0.0
    %2207 = vmatprep.subr.mxu0 0.0
    %2208 = vmatpush1.msra.mxu0 0.0
    %2209 = vmatprep.subr.mxu0 0.0
    %2210 = vmatpush1.msra.mxu0 0.0
    %2211 = vmatprep.subr.mxu0 0.0
    %2212 = vmatpush1.msra.mxu0 0.0
    %2213 = vmatprep.subr.mxu0 0.0
    %2214 = vmatpush1.msra.mxu0 0.0
    %2215 = vmatprep.subr.mxu0 0.0
    %2216 = vmatpush1.msra.mxu0 0.0
    %2217 = vmatprep.subr.mxu0 0.0
    %2218 = vmatpush1.msra.mxu0 0.0
    %2219 = vmatprep.subr.mxu0 0.0
    %2220 = vmatpush1.msra.mxu0 0.0
    %2221 = vmatprep.subr.mxu0 0.0
    %2222 = vmatpush1.msra.mxu0 0.0
    %2223 = vmatprep.subr.mxu0 0.0
    %2224 = vmatpush1.msra.mxu0 0.0
    %2225 = vmatprep.subr.mxu0 0.0
    %2226 = vmatpush1.msra.mxu0 0.0
    %2227 = vmatprep.subr.mxu0 0.0
    %2228 = vmatpush1.msra.mxu0 0.0
    %2229 = vmatprep.subr.mxu0 0.0
    %2230 = vmatpush1.msra.mxu0 0.0
    %2231 = vmatprep.subr.mxu0 0.0
    %2232 = vmatpush1.msra.mxu0 0.0
    %2233 = vmatprep.subr.mxu0 0.0
    %2234 = vmatpush1.msra.mxu0 0.0
    %2235 = vmatprep.subr.mxu0 0.0
    %2236 = vmatpush1.msra.mxu0 0.0
    %2237 = vmatprep.subr.mxu0 0.0
    %2238 = vmatpush1.msra.mxu0 0.0
    %2239 = vmatprep.mubr.f32.mxu0 0.0
    %2240 = vmatmul.mubr.f32.gmra.mrb[0].mxu0 %v2173
    %v2241 = vpop.f32.mrb[0].mxu0
    %v2242 = vadd.f32 0.0, %v2241
    %v2243 = vpop.f32.mrb[0].mxu0
    %2244 = vdwg.mxu0
    %v2246 = vrot.slane %v2242, 4
    %v2248 = vadd.f32 %v271, %v2246
    %v2249 = vxor.u32 %v2248, 2147483648
    %v2250 = vmul.f32 %v2249, 1.442695
    %v2251 = vpow.pop %v2250
    %v2252 = vadd.f32 %v2251, 1.0
    %v2253 = vrcp.pop %v2252
    %v2254 = vmul.f32 1.0, %v2253
    %v2255 = vtanh.pop %v2248
    %v2257 = vrot.slane %v1750, 4
    %v2259 = vmul.f32 %v2254, %v2257
    %2261 = vrot.lane.b32.xlu0 %v2255, 32
    %v2262 = vpop.permute.xlu0 %2261
    %v2264 = vmul.f32 %v2254, %v2262
    %2266 = vrot.lane.b32.xlu0 %v2264, 32
    %v2267 = vpop.permute.xlu0 %2266
    %v2269 = vadd.f32 %v2259, %v2267
    %v2270 = vtanh.pop %v2269
    %2272 = vrot.lane.b32.xlu0 %v2270, 32
    %v2273 = vpop.permute.xlu0 %2272
    %v2275 = vmul.f32 %v2254, %v2273
    %2277 = vrot.lane.b32.xlu0 %v2275, 64
    %v2278 = vpop.permute.xlu0 %2277
    %v2281 = vrot.slane %v1862, 4
    %2282 = vrot.lane.b32.xlu0 %v2281, 96
    %v2283 = vpop.permute.xlu0 %2282
    %v2285 = vsel %vm336, %v2278, %v2283
    %v2287 = vrot.slane %v2285, 4
    %v2288 = vsel %vm630, %v2287, 0
    %2290 = vmatprep.subr.mxu0 0.0
    %2291 = vmatpush1.msra.mxu0 %v321
    %2292 = vmatprep.subr.mxu0 0.0
    %2293 = vmatpush1.msra.mxu0 %v322
    %2294 = vmatprep.subr.mxu0 0.0
    %2295 = vmatpush1.msra.mxu0 %v323
    %2296 = vmatprep.subr.mxu0 0.0
    %2297 = vmatpush1.msra.mxu0 %v324
    %2298 = vmatprep.subr.mxu0 0.0
    %2299 = vmatpush1.msra.mxu0 %v325
    %2300 = vmatprep.subr.mxu0 0.0
    %2301 = vmatpush1.msra.mxu0 %v326
    %2302 = vmatprep.subr.mxu0 0.0
    %2303 = vmatpush1.msra.mxu0 %v327
    %2304 = vmatprep.subr.mxu0 0.0
    %2305 = vmatpush1.msra.mxu0 %v328
    %2306 = vmatprep.subr.mxu0 0.0
    %2307 = vmatpush1.msra.mxu0 0.0
    %2308 = vmatprep.subr.mxu0 0.0
    %2309 = vmatpush1.msra.mxu0 0.0
    %2310 = vmatprep.subr.mxu0 0.0
    %2311 = vmatpush1.msra.mxu0 0.0
    %2312 = vmatprep.subr.mxu0 0.0
    %2313 = vmatpush1.msra.mxu0 0.0
    %2314 = vmatprep.subr.mxu0 0.0
    %2315 = vmatpush1.msra.mxu0 0.0
    %2316 = vmatprep.subr.mxu0 0.0
    %2317 = vmatpush1.msra.mxu0 0.0
    %2318 = vmatprep.subr.mxu0 0.0
    %2319 = vmatpush1.msra.mxu0 0.0
    %2320 = vmatprep.subr.mxu0 0.0
    %2321 = vmatpush1.msra.mxu0 0.0
    %2322 = vmatprep.subr.mxu0 0.0
    %2323 = vmatpush1.msra.mxu0 0.0
    %2324 = vmatprep.subr.mxu0 0.0
    %2325 = vmatpush1.msra.mxu0 0.0
    %2326 = vmatprep.subr.mxu0 0.0
    %2327 = vmatpush1.msra.mxu0 0.0
    %2328 = vmatprep.subr.mxu0 0.0
    %2329 = vmatpush1.msra.mxu0 0.0
    %2330 = vmatprep.subr.mxu0 0.0
    %2331 = vmatpush1.msra.mxu0 0.0
    %2332 = vmatprep.subr.mxu0 0.0
    %2333 = vmatpush1.msra.mxu0 0.0
    %2334 = vmatprep.subr.mxu0 0.0
    %2335 = vmatpush1.msra.mxu0 0.0
    %2336 = vmatprep.subr.mxu0 0.0
    %2337 = vmatpush1.msra.mxu0 0.0
    %2338 = vmatprep.subr.mxu0 0.0
    %2339 = vmatpush1.msra.mxu0 0.0
    %2340 = vmatprep.subr.mxu0 0.0
    %2341 = vmatpush1.msra.mxu0 0.0
    %2342 = vmatprep.subr.mxu0 0.0
    %2343 = vmatpush1.msra.mxu0 0.0
    %2344 = vmatprep.subr.mxu0 0.0
    %2345 = vmatpush1.msra.mxu0 0.0
    %2346 = vmatprep.subr.mxu0 0.0
    %2347 = vmatpush1.msra.mxu0 0.0
    %2348 = vmatprep.subr.mxu0 0.0
    %2349 = vmatpush1.msra.mxu0 0.0
    %2350 = vmatprep.subr.mxu0 0.0
    %2351 = vmatpush1.msra.mxu0 0.0
    %2352 = vmatprep.subr.mxu0 0.0
    %2353 = vmatpush1.msra.mxu0 0.0
    %2354 = vmatprep.mubr.f32.mxu0 0.0
    %2355 = vmatmul.mubr.f32.gmra.mrb[0].mxu0 %v2288
    %v2356 = vpop.f32.mrb[0].mxu0
    %v2357 = vadd.f32 %v334, %v2356
    %v2358 = vpop.f32.mrb[0].mxu0
    %2359 = vdwg.mxu0
    %v2360 = vxor.u32 %v2357, 2147483648
    %v2361 = vmul.f32 %v2360, 1.442695
    %v2362 = vpow.pop %v2361
    %v2363 = vadd.f32 %v2362, 1.0
    %v2364 = vrcp.pop %v2363
    %v2365 = vmul.f32 1.0, %v2364
    %v2366 = vtanh.pop %v2357
    %v2367 = vmul.f32 %v2365, %v1856
    %2369 = vrot.lane.b32.xlu0 %v2366, 32
    %v2370 = vpop.permute.xlu0 %2369
    %v2372 = vmul.f32 %v2365, %v2370
    %2374 = vrot.lane.b32.xlu0 %v2372, 32
    %v2375 = vpop.permute.xlu0 %2374
    %v2377 = vadd.f32 %v2367, %v2375
    %v2378 = vtanh.pop %v2377
    %2380 = vrot.lane.b32.xlu0 %v2378, 32
    %v2381 = vpop.permute.xlu0 %2380
    %v2383 = vmul.f32 %v2365, %v2381
    %2385 = vrot.lane.b32.xlu0 %v2377, 32
    %v2386 = vpop.permute.xlu0 %2385
    %v2388 = vadd.f32 %v2383, %v2386
    %2390 = vrot.lane.b32.xlu0 %v2388, 64
    %v2391 = vpop.permute.xlu0 %2390
    %v2392 = vsel %vm336, %v2391, 0
    %2394 = vmatprep.subr.mxu0 0.0
    %2395 = vmatpush1.msra.mxu0 %v287
    %2396 = vmatprep.subr.mxu0 0.0
    %2397 = vmatpush1.msra.mxu0 %v288
    %2398 = vmatprep.subr.mxu0 0.0
    %2399 = vmatpush1.msra.mxu0 %v289
    %2400 = vmatprep.subr.mxu0 0.0
    %2401 = vmatpush1.msra.mxu0 %v290
    %2402 = vmatprep.subr.mxu0 0.0
    %2403 = vmatpush1.msra.mxu0 0.0
    %2404 = vmatprep.subr.mxu0 0.0
    %2405 = vmatpush1.msra.mxu0 0.0
    %2406 = vmatprep.subr.mxu0 0.0
    %2407 = vmatpush1.msra.mxu0 0.0
    %2408 = vmatprep.subr.mxu0 0.0
    %2409 = vmatpush1.msra.mxu0 0.0
    %2410 = vmatprep.subr.mxu0 0.0
    %2411 = vmatpush1.msra.mxu0 0.0
    %2412 = vmatprep.subr.mxu0 0.0
    %2413 = vmatpush1.msra.mxu0 0.0
    %2414 = vmatprep.subr.mxu0 0.0
    %2415 = vmatpush1.msra.mxu0 0.0
    %2416 = vmatprep.subr.mxu0 0.0
    %2417 = vmatpush1.msra.mxu0 0.0
    %2418 = vmatprep.subr.mxu0 0.0
    %2419 = vmatpush1.msra.mxu0 0.0
    %2420 = vmatprep.subr.mxu0 0.0
    %2421 = vmatpush1.msra.mxu0 0.0
    %2422 = vmatprep.subr.mxu0 0.0
    %2423 = vmatpush1.msra.mxu0 0.0
    %2424 = vmatprep.subr.mxu0 0.0
    %2425 = vmatpush1.msra.mxu0 0.0
    %2426 = vmatprep.subr.mxu0 0.0
    %2427 = vmatpush1.msra.mxu0 0.0
    %2428 = vmatprep.subr.mxu0 0.0
    %2429 = vmatpush1.msra.mxu0 0.0
    %2430 = vmatprep.subr.mxu0 0.0
    %2431 = vmatpush1.msra.mxu0 0.0
    %2432 = vmatprep.subr.mxu0 0.0
    %2433 = vmatpush1.msra.mxu0 0.0
    %2434 = vmatprep.subr.mxu0 0.0
    %2435 = vmatpush1.msra.mxu0 0.0
    %2436 = vmatprep.subr.mxu0 0.0
    %2437 = vmatpush1.msra.mxu0 0.0
    %2438 = vmatprep.subr.mxu0 0.0
    %2439 = vmatpush1.msra.mxu0 0.0
    %2440 = vmatprep.subr.mxu0 0.0
    %2441 = vmatpush1.msra.mxu0 0.0
    %2442 = vmatprep.subr.mxu0 0.0
    %2443 = vmatpush1.msra.mxu0 0.0
    %2444 = vmatprep.subr.mxu0 0.0
    %2445 = vmatpush1.msra.mxu0 0.0
    %2446 = vmatprep.subr.mxu0 0.0
    %2447 = vmatpush1.msra.mxu0 0.0
    %2448 = vmatprep.subr.mxu0 0.0
    %2449 = vmatpush1.msra.mxu0 0.0
    %2450 = vmatprep.subr.mxu0 0.0
    %2451 = vmatpush1.msra.mxu0 0.0
    %2452 = vmatprep.subr.mxu0 0.0
    %2453 = vmatpush1.msra.mxu0 0.0
    %2454 = vmatprep.subr.mxu0 0.0
    %2455 = vmatpush1.msra.mxu0 0.0
    %2456 = vmatprep.subr.mxu0 0.0
    %2457 = vmatpush1.msra.mxu0 0.0
    %2458 = vmatprep.mubr.f32.mxu0 0.0
    %2459 = vmatmul.mubr.f32.gmra.mrb[0].mxu0 %v2392
    %v2460 = vpop.f32.mrb[0].mxu0
    %v2461 = vadd.f32 %v296, %v2460
    %v2462 = vpop.f32.mrb[0].mxu0
    %2463 = vdwg.mxu0
    %2465 = vrot.lane.b32.xlu0 %v279, 64
    %v2466 = vpop.permute.xlu0 %2465
    %v2468 = vadd.f32 %v2461, %v2466
    %v2469 = vld [vmem:[#allocation2 + $0x10] sm:$0xf]
    %v2470 = vmul.f32 %v2468, 0.5
    %v2471 = vmul.f32 %v2470, 1.442695
    %v2472 = vpow.pop %v2471
    %2474 = vrot.lane.b32.xlu0 %v2469, 64
    %v2475 = vpop.permute.xlu0 %2474
    %v2477 = vmul.f32 %v2472, %v2475
    %2479 = vrot.lane.b32.xlu0 %v2477, 96
    %v2480 = vpop.permute.xlu0 %2479
    %v2482 = vadd.f32 %v2468, %v2480
    %2484 = vrot.lane.b32.xlu0 %v2482, 64
    %v2485 = vpop.permute.xlu0 %2484
    %v2486 = vsel %vm336, %v2485, 0
    %2488 = vmatprep.subr.mxu0 0.0
    %2489 = vmatpush1.msra.mxu0 %v298
    %2490 = vmatprep.subr.mxu0 0.0
    %2491 = vmatpush1.msra.mxu0 %v299
    %2492 = vmatprep.subr.mxu0 0.0
    %2493 = vmatpush1.msra.mxu0 %v300
    %2494 = vmatprep.subr.mxu0 0.0
    %2495 = vmatpush1.msra.mxu0 %v301
    %2496 = vmatprep.subr.mxu0 0.0
    %2497 = vmatpush1.msra.mxu0 0.0
    %2498 = vmatprep.subr.mxu0 0.0
    %2499 = vmatpush1.msra.mxu0 0.0
    %2500 = vmatprep.subr.mxu0 0.0
    %2501 = vmatpush1.msra.mxu0 0.0
    %2502 = vmatprep.subr.mxu0 0.0
    %2503 = vmatpush1.msra.mxu0 0.0
    %2504 = vmatprep.subr.mxu0 0.0
    %2505 = vmatpush1.msra.mxu0 0.0
    %2506 = vmatprep.subr.mxu0 0.0
    %2507 = vmatpush1.msra.mxu0 0.0
    %2508 = vmatprep.subr.mxu0 0.0
    %2509 = vmatpush1.msra.mxu0 0.0
    %2510 = vmatprep.subr.mxu0 0.0
    %2511 = vmatpush1.msra.mxu0 0.0
    %2512 = vmatprep.subr.mxu0 0.0
    %2513 = vmatpush1.msra.mxu0 0.0
    %2514 = vmatprep.subr.mxu0 0.0
    %2515 = vmatpush1.msra.mxu0 0.0
    %2516 = vmatprep.subr.mxu0 0.0
    %2517 = vmatpush1.msra.mxu0 0.0
    %2518 = vmatprep.subr.mxu0 0.0
    %2519 = vmatpush1.msra.mxu0 0.0
    %2520 = vmatprep.subr.mxu0 0.0
    %2521 = vmatpush1.msra.mxu0 0.0
    %2522 = vmatprep.subr.mxu0 0.0
    %2523 = vmatpush1.msra.mxu0 0.0
    %2524 = vmatprep.subr.mxu0 0.0
    %2525 = vmatpush1.msra.mxu0 0.0
    %2526 = vmatprep.subr.mxu0 0.0
    %2527 = vmatpush1.msra.mxu0 0.0
    %2528 = vmatprep.subr.mxu0 0.0
    %2529 = vmatpush1.msra.mxu0 0.0
    %2530 = vmatprep.subr.mxu0 0.0
    %2531 = vmatpush1.msra.mxu0 0.0
    %2532 = vmatprep.subr.mxu0 0.0
    %2533 = vmatpush1.msra.mxu0 0.0
    %2534 = vmatprep.subr.mxu0 0.0
    %2535 = vmatpush1.msra.mxu0 0.0
    %2536 = vmatprep.subr.mxu0 0.0
    %2537 = vmatpush1.msra.mxu0 0.0
    %2538 = vmatprep.subr.mxu0 0.0
    %2539 = vmatpush1.msra.mxu0 0.0
    %2540 = vmatprep.subr.mxu0 0.0
    %2541 = vmatpush1.msra.mxu0 0.0
    %2542 = vmatprep.subr.mxu0 0.0
    %2543 = vmatpush1.msra.mxu0 0.0
    %2544 = vmatprep.subr.mxu0 0.0
    %2545 = vmatpush1.msra.mxu0 0.0
    %2546 = vmatprep.subr.mxu0 0.0
    %2547 = vmatpush1.msra.mxu0 0.0
    %2548 = vmatprep.subr.mxu0 0.0
    %2549 = vmatpush1.msra.mxu0 0.0
    %2550 = vmatprep.subr.mxu0 0.0
    %2551 = vmatpush1.msra.mxu0 0.0
    %2552 = vmatprep.mubr.f32.mxu0 0.0
    %2553 = vmatmul.mubr.f32.gmra.mrb[0].mxu0 %v2486
    %v2554 = vpop.f32.mrb[0].mxu0
    %v2555 = vadd.f32 %v307, %v2554
    %v2556 = vpop.f32.mrb[0].mxu0
    %2557 = vdwg.mxu0
    %v2558 = vmax.f32 %v2555, 0.0
    %vm2559 = vcmp.ne.f32.partialorder %v2555, %v2555
    %v2560 = vadd.f32 %v2555, 0.0
    %v2561 = vand.u32 2147483647, %v2555
    %v2562 = vsub.f32 0.0, %v2561
    %v2563 = vmul.f32 %v2562, 1.442695
    %v2564 = vpow.pop %v2563
    %v2565 = vadd.f32 %v2564, 1.0
    %v2566 = vlog2.pop %v2565
    %v2567 = vmul.f32 %v2566, 0.6931472
    %v2568 = vmul.f32 -0.5, %v2564
    %v2569 = vadd.f32 %v2568, 1.0
    %v2570 = vmul.f32 %v2569, %v2564
    %v2571 = vand.u32 2147483647, %v2564
    %vm2572 = vcmp.lt.f32.partialorder %v2571, 0.0004427343
    %v2573 = vsel %vm2572, %v2570, %v2567
    %v2574 = vadd.f32 %v2558, %v2573
    %v2575 = vsel %vm2559, %v2560, %v2574
    %2577 = vrot.lane.b32.xlu0 %v2461, 64
    %v2578 = vpop.permute.xlu0 %2577
    %v2580 = vsub.f32 %v2468, %v2578
    %v2581 = vmul.f32 %v2580, -0.5
    %v2582 = vmul.f32 %v2580, 1.442695
    %v2583 = vpow.pop %v2582
    %v2584 = vmul.f32 %v2580, %v2580
    %v2585 = vsub.f32 0.0, %v2461
    %v2586 = vmul.f32 %v2585, 1.442695
    %v2587 = vpow.pop %v2586
    %2589 = vrot.lane.b32.xlu0 %v2587, 32
    %v2590 = vpop.permute.xlu0 %2589
    %v2592 = vmul.f32 %v2584, %v2590
    %2594 = vrot.lane.b32.xlu0 %v2592, 32
    %v2595 = vpop.permute.xlu0 %2594
    %v2597 = vadd.f32 %v2583, %v2595
    %v2598 = vmul.f32 %v2597, 0.5
    %v2599 = vadd.f32 %v2581, %v2598
    %v2600 = vsub.f32 %v2599, 0.5
    %v2601 = vadd.f32 %v2080, %v2600
    %v2603 = vsel %vm336, %v2575, 0
    %2605 = vmatprep.subr.mxu0 0.0
    %2606 = vmatpush1.msra.mxu0 %v309
    %2607 = vmatprep.subr.mxu0 0.0
    %2608 = vmatpush1.msra.mxu0 %v310
    %2609 = vmatprep.subr.mxu0 0.0
    %2610 = vmatpush1.msra.mxu0 %v311
    %2611 = vmatprep.subr.mxu0 0.0
    %2612 = vmatpush1.msra.mxu0 %v312
    %2613 = vmatprep.subr.mxu0 0.0
    %2614 = vmatpush1.msra.mxu0 0.0
    %2615 = vmatprep.subr.mxu0 0.0
    %2616 = vmatpush1.msra.mxu0 0.0
    %2617 = vmatprep.subr.mxu0 0.0
    %2618 = vmatpush1.msra.mxu0 0.0
    %2619 = vmatprep.subr.mxu0 0.0
    %2620 = vmatpush1.msra.mxu0 0.0
    %2621 = vmatprep.subr.mxu0 0.0
    %2622 = vmatpush1.msra.mxu0 0.0
    %2623 = vmatprep.subr.mxu0 0.0
    %2624 = vmatpush1.msra.mxu0 0.0
    %2625 = vmatprep.subr.mxu0 0.0
    %2626 = vmatpush1.msra.mxu0 0.0
    %2627 = vmatprep.subr.mxu0 0.0
    %2628 = vmatpush1.msra.mxu0 0.0
    %2629 = vmatprep.subr.mxu0 0.0
    %2630 = vmatpush1.msra.mxu0 0.0
    %2631 = vmatprep.subr.mxu0 0.0
    %2632 = vmatpush1.msra.mxu0 0.0
    %2633 = vmatprep.subr.mxu0 0.0
    %2634 = vmatpush1.msra.mxu0 0.0
    %2635 = vmatprep.subr.mxu0 0.0
    %2636 = vmatpush1.msra.mxu0 0.0
    %2637 = vmatprep.subr.mxu0 0.0
    %2638 = vmatpush1.msra.mxu0 0.0
    %2639 = vmatprep.subr.mxu0 0.0
    %2640 = vmatpush1.msra.mxu0 0.0
    %2641 = vmatprep.subr.mxu0 0.0
    %2642 = vmatpush1.msra.mxu0 0.0
    %2643 = vmatprep.subr.mxu0 0.0
    %2644 = vmatpush1.msra.mxu0 0.0
    %2645 = vmatprep.subr.mxu0 0.0
    %2646 = vmatpush1.msra.mxu0 0.0
    %2647 = vmatprep.subr.mxu0 0.0
    %2648 = vmatpush1.msra.mxu0 0.0
    %2649 = vmatprep.subr.mxu0 0.0
    %2650 = vmatpush1.msra.mxu0 0.0
    %2651 = vmatprep.subr.mxu0 0.0
    %2652 = vmatpush1.msra.mxu0 0.0
    %2653 = vmatprep.subr.mxu0 0.0
    %2654 = vmatpush1.msra.mxu0 0.0
    %2655 = vmatprep.subr.mxu0 0.0
    %2656 = vmatpush1.msra.mxu0 0.0
    %2657 = vmatprep.subr.mxu0 0.0
    %2658 = vmatpush1.msra.mxu0 0.0
    %2659 = vmatprep.subr.mxu0 0.0
    %2660 = vmatpush1.msra.mxu0 0.0
    %2661 = vmatprep.subr.mxu0 0.0
    %2662 = vmatpush1.msra.mxu0 0.0
    %2663 = vmatprep.subr.mxu0 0.0
    %2664 = vmatpush1.msra.mxu0 0.0
    %2665 = vmatprep.subr.mxu0 0.0
    %2666 = vmatpush1.msra.mxu0 0.0
    %2667 = vmatprep.subr.mxu0 0.0
    %2668 = vmatpush1.msra.mxu0 0.0
    %2669 = vmatprep.mubr.f32.mxu0 0.0
    %2670 = vmatmul.mubr.f32.gmra.mrb[0].mxu0 %v2603
    %v2671 = vpop.f32.mrb[0].mxu0
    %v2672 = vadd.f32 0.0, %v2671
    %v2673 = vpop.f32.mrb[0].mxu0
    %2674 = vdwg.mxu0
    %2676 = vrot.lane.b32.xlu0 %v2672, 64
    %v2677 = vpop.permute.xlu0 %2676
    %v2679 = vadd.f32 %v279, %v2677
    %v2680 = vsub.f32 %v2679, %v2469
    %v2681 = vmul.f32 %v2680, %v2680
    %v2682 = vadd.f32 %v2167, %v2681
    %v2683 = vrot.slane %v2275, 4
    %2684 = vrot.lane.b32.xlu0 %v2683, 96
    %v2685 = vpop.permute.xlu0 %2684
    %v2687 = vsel %vm336, %v2575, %v2685
    %v2689 = vsel %vm630, %v2687, 0
    %2691 = vmatprep.subr.mxu0 0.0
    %2692 = vmatpush1.msra.mxu0 %v313
    %2693 = vmatprep.subr.mxu0 0.0
    %2694 = vmatpush1.msra.mxu0 %v314
    %2695 = vmatprep.subr.mxu0 0.0
    %2696 = vmatpush1.msra.mxu0 %v315
    %2697 = vmatprep.subr.mxu0 0.0
    %2698 = vmatpush1.msra.mxu0 %v316
    %2699 = vmatprep.subr.mxu0 0.0
    %2700 = vmatpush1.msra.mxu0 %v317
    %2701 = vmatprep.subr.mxu0 0.0
    %2702 = vmatpush1.msra.mxu0 %v318
    %2703 = vmatprep.subr.mxu0 0.0
    %2704 = vmatpush1.msra.mxu0 %v319
    %2705 = vmatprep.subr.mxu0 0.0
    %2706 = vmatpush1.msra.mxu0 %v320
    %2707 = vmatprep.subr.mxu0 0.0
    %2708 = vmatpush1.msra.mxu0 0.0
    %2709 = vmatprep.subr.mxu0 0.0
    %2710 = vmatpush1.msra.mxu0 0.0
    %2711 = vmatprep.subr.mxu0 0.0
    %2712 = vmatpush1.msra.mxu0 0.0
    %2713 = vmatprep.subr.mxu0 0.0
    %2714 = vmatpush1.msra.mxu0 0.0
    %2715 = vmatprep.subr.mxu0 0.0
    %2716 = vmatpush1.msra.mxu0 0.0
    %2717 = vmatprep.subr.mxu0 0.0
    %2718 = vmatpush1.msra.mxu0 0.0
    %2719 = vmatprep.subr.mxu0 0.0
    %2720 = vmatpush1.msra.mxu0 0.0
    %2721 = vmatprep.subr.mxu0 0.0
    %2722 = vmatpush1.msra.mxu0 0.0
    %2723 = vmatprep.subr.mxu0 0.0
    %2724 = vmatpush1.msra.mxu0 0.0
    %2725 = vmatprep.subr.mxu0 0.0
    %2726 = vmatpush1.msra.mxu0 0.0
    %2727 = vmatprep.subr.mxu0 0.0
    %2728 = vmatpush1.msra.mxu0 0.0
    %2729 = vmatprep.subr.mxu0 0.0
    %2730 = vmatpush1.msra.mxu0 0.0
    %2731 = vmatprep.subr.mxu0 0.0
    %2732 = vmatpush1.msra.mxu0 0.0
    %2733 = vmatprep.subr.mxu0 0.0
    %2734 = vmatpush1.msra.mxu0 0.0
    %2735 = vmatprep.subr.mxu0 0.0
    %2736 = vmatpush1.msra.mxu0 0.0
    %2737 = vmatprep.subr.mxu0 0.0
    %2738 = vmatpush1.msra.mxu0 0.0
    %2739 = vmatprep.subr.mxu0 0.0
    %2740 = vmatpush1.msra.mxu0 0.0
    %2741 = vmatprep.subr.mxu0 0.0
    %2742 = vmatpush1.msra.mxu0 0.0
    %2743 = vmatprep.subr.mxu0 0.0
    %2744 = vmatpush1.msra.mxu0 0.0
    %2745 = vmatprep.subr.mxu0 0.0
    %2746 = vmatpush1.msra.mxu0 0.0
    %2747 = vmatprep.subr.mxu0 0.0
    %2748 = vmatpush1.msra.mxu0 0.0
    %2749 = vmatprep.subr.mxu0 0.0
    %2750 = vmatpush1.msra.mxu0 0.0
    %2751 = vmatprep.subr.mxu0 0.0
    %2752 = vmatpush1.msra.mxu0 0.0
    %2753 = vmatprep.subr.mxu0 0.0
    %2754 = vmatpush1.msra.mxu0 0.0
    %2755 = vmatprep.mubr.f32.mxu0 0.0
    %2756 = vmatmul.mubr.f32.gmra.mrb[0].mxu0 %v2689
    %v2757 = vpop.f32.mrb[0].mxu0
    %v2758 = vadd.f32 0.0, %v2757
    %v2759 = vpop.f32.mrb[0].mxu0
    %2760 = vdwg.mxu0
    %v2761 = vadd.f32 %v277, %v2758
    %v2762 = vxor.u32 %v2761, 2147483648
    %v2763 = vmul.f32 %v2762, 1.442695
    %v2764 = vpow.pop %v2763
    %v2765 = vadd.f32 %v2764, 1.0
    %v2766 = vrcp.pop %v2765
    %v2767 = vmul.f32 1.0, %v2766
    %v2768 = vtanh.pop %v2761
    %v2770 = vrot.slane %v2269, 4
    %v2772 = vmul.f32 %v2767, %v2770
    %2774 = vrot.lane.b32.xlu0 %v2768, 32
    %v2775 = vpop.permute.xlu0 %2774
    %v2777 = vmul.f32 %v2767, %v2775
    %2779 = vrot.lane.b32.xlu0 %v2777, 32
    %v2780 = vpop.permute.xlu0 %2779
    %v2782 = vadd.f32 %v2772, %v2780
    %v2783 = vtanh.pop %v2782
    %2785 = vrot.lane.b32.xlu0 %v2783, 32
    %v2786 = vpop.permute.xlu0 %2785
    %v2788 = vmul.f32 %v2767, %v2786
    %2790 = vrot.lane.b32.xlu0 %v2788, 64
    %v2791 = vpop.permute.xlu0 %2790
    %2794 = vrot.lane.b32.xlu0 %v2383, 96
    %v2795 = vpop.permute.xlu0 %2794
    %v2797 = vsel %vm336, %v2791, %v2795
    %v2799 = vsel %vm630, %v2797, 0
    %2801 = vmatprep.subr.mxu0 0.0
    %2802 = vmatpush1.msra.mxu0 %v321
    %2803 = vmatprep.subr.mxu0 0.0
    %2804 = vmatpush1.msra.mxu0 %v322
    %2805 = vmatprep.subr.mxu0 0.0
    %2806 = vmatpush1.msra.mxu0 %v323
    %2807 = vmatprep.subr.mxu0 0.0
    %2808 = vmatpush1.msra.mxu0 %v324
    %2809 = vmatprep.subr.mxu0 0.0
    %2810 = vmatpush1.msra.mxu0 %v325
    %2811 = vmatprep.subr.mxu0 0.0
    %2812 = vmatpush1.msra.mxu0 %v326
    %2813 = vmatprep.subr.mxu0 0.0
    %2814 = vmatpush1.msra.mxu0 %v327
    %2815 = vmatprep.subr.mxu0 0.0
    %2816 = vmatpush1.msra.mxu0 %v328
    %2817 = vmatprep.subr.mxu0 0.0
    %2818 = vmatpush1.msra.mxu0 0.0
    %2819 = vmatprep.subr.mxu0 0.0
    %2820 = vmatpush1.msra.mxu0 0.0
    %2821 = vmatprep.subr.mxu0 0.0
    %2822 = vmatpush1.msra.mxu0 0.0
    %2823 = vmatprep.subr.mxu0 0.0
    %2824 = vmatpush1.msra.mxu0 0.0
    %2825 = vmatprep.subr.mxu0 0.0
    %2826 = vmatpush1.msra.mxu0 0.0
    %2827 = vmatprep.subr.mxu0 0.0
    %2828 = vmatpush1.msra.mxu0 0.0
    %2829 = vmatprep.subr.mxu0 0.0
    %2830 = vmatpush1.msra.mxu0 0.0
    %2831 = vmatprep.subr.mxu0 0.0
    %2832 = vmatpush1.msra.mxu0 0.0
    %2833 = vmatprep.subr.mxu0 0.0
    %2834 = vmatpush1.msra.mxu0 0.0
    %2835 = vmatprep.subr.mxu0 0.0
    %2836 = vmatpush1.msra.mxu0 0.0
    %2837 = vmatprep.subr.mxu0 0.0
    %2838 = vmatpush1.msra.mxu0 0.0
    %2839 = vmatprep.subr.mxu0 0.0
    %2840 = vmatpush1.msra.mxu0 0.0
    %2841 = vmatprep.subr.mxu0 0.0
    %2842 = vmatpush1.msra.mxu0 0.0
    %2843 = vmatprep.subr.mxu0 0.0
    %2844 = vmatpush1.msra.mxu0 0.0
    %2845 = vmatprep.subr.mxu0 0.0
    %2846 = vmatpush1.msra.mxu0 0.0
    %2847 = vmatprep.subr.mxu0 0.0
    %2848 = vmatpush1.msra.mxu0 0.0
    %2849 = vmatprep.subr.mxu0 0.0
    %2850 = vmatpush1.msra.mxu0 0.0
    %2851 = vmatprep.subr.mxu0 0.0
    %2852 = vmatpush1.msra.mxu0 0.0
    %2853 = vmatprep.subr.mxu0 0.0
    %2854 = vmatpush1.msra.mxu0 0.0
    %2855 = vmatprep.subr.mxu0 0.0
    %2856 = vmatpush1.msra.mxu0 0.0
    %2857 = vmatprep.subr.mxu0 0.0
    %2858 = vmatpush1.msra.mxu0 0.0
    %2859 = vmatprep.subr.mxu0 0.0
    %2860 = vmatpush1.msra.mxu0 0.0
    %2861 = vmatprep.subr.mxu0 0.0
    %2862 = vmatpush1.msra.mxu0 0.0
    %2863 = vmatprep.subr.mxu0 0.0
    %2864 = vmatpush1.msra.mxu0 0.0
    %2865 = vmatprep.mubr.f32.mxu0 0.0
    %2866 = vmatmul.mubr.f32.gmra.mrb[0].mxu0 %v2799
    %v2867 = vpop.f32.mrb[0].mxu0
    %v2868 = vadd.f32 %v334, %v2867
    %v2869 = vpop.f32.mrb[0].mxu0
    %2870 = vdwg.mxu0
    %v2871 = vxor.u32 %v2868, 2147483648
    %v2872 = vmul.f32 %v2871, 1.442695
    %v2873 = vpow.pop %v2872
    %v2874 = vadd.f32 %v2873, 1.0
    %v2875 = vrcp.pop %v2874
    %v2876 = vmul.f32 1.0, %v2875
    %v2877 = vtanh.pop %v2868
    %v2878 = vmul.f32 %v2876, %v2377
    %2880 = vrot.lane.b32.xlu0 %v2877, 32
    %v2881 = vpop.permute.xlu0 %2880
    %v2883 = vmul.f32 %v2876, %v2881
    %2885 = vrot.lane.b32.xlu0 %v2883, 32
    %v2886 = vpop.permute.xlu0 %2885
    %v2888 = vadd.f32 %v2878, %v2886
    %v2889 = vtanh.pop %v2888
    %2891 = vrot.lane.b32.xlu0 %v2889, 32
    %v2892 = vpop.permute.xlu0 %2891
    %v2894 = vmul.f32 %v2876, %v2892
    %2896 = vrot.lane.b32.xlu0 %v2888, 32
    %v2897 = vpop.permute.xlu0 %2896
    %v2899 = vadd.f32 %v2894, %v2897
    %2901 = vrot.lane.b32.xlu0 %v2899, 64
    %v2902 = vpop.permute.xlu0 %2901
    %v2903 = vsel %vm336, %v2902, 0
    %2905 = vmatprep.subr.mxu0 0.0
    %2906 = vmatpush1.msra.mxu0 %v287
    %2907 = vmatprep.subr.mxu0 0.0
    %2908 = vmatpush1.msra.mxu0 %v288
    %2909 = vmatprep.subr.mxu0 0.0
    %2910 = vmatpush1.msra.mxu0 %v289
    %2911 = vmatprep.subr.mxu0 0.0
    %2912 = vmatpush1.msra.mxu0 %v290
    %2913 = vmatprep.subr.mxu0 0.0
    %2914 = vmatpush1.msra.mxu0 0.0
    %2915 = vmatprep.subr.mxu0 0.0
    %2916 = vmatpush1.msra.mxu0 0.0
    %2917 = vmatprep.subr.mxu0 0.0
    %2918 = vmatpush1.msra.mxu0 0.0
    %2919 = vmatprep.subr.mxu0 0.0
    %2920 = vmatpush1.msra.mxu0 0.0
    %2921 = vmatprep.subr.mxu0 0.0
    %2922 = vmatpush1.msra.mxu0 0.0
    %2923 = vmatprep.subr.mxu0 0.0
    %2924 = vmatpush1.msra.mxu0 0.0
    %2925 = vmatprep.subr.mxu0 0.0
    %2926 = vmatpush1.msra.mxu0 0.0
    %2927 = vmatprep.subr.mxu0 0.0
    %2928 = vmatpush1.msra.mxu0 0.0
    %2929 = vmatprep.subr.mxu0 0.0
    %2930 = vmatpush1.msra.mxu0 0.0
    %2931 = vmatprep.subr.mxu0 0.0
    %2932 = vmatpush1.msra.mxu0 0.0
    %2933 = vmatprep.subr.mxu0 0.0
    %2934 = vmatpush1.msra.mxu0 0.0
    %2935 = vmatprep.subr.mxu0 0.0
    %2936 = vmatpush1.msra.mxu0 0.0
    %2937 = vmatprep.subr.mxu0 0.0
    %2938 = vmatpush1.msra.mxu0 0.0
    %2939 = vmatprep.subr.mxu0 0.0
    %2940 = vmatpush1.msra.mxu0 0.0
    %2941 = vmatprep.subr.mxu0 0.0
    %2942 = vmatpush1.msra.mxu0 0.0
    %2943 = vmatprep.subr.mxu0 0.0
    %2944 = vmatpush1.msra.mxu0 0.0
    %2945 = vmatprep.subr.mxu0 0.0
    %2946 = vmatpush1.msra.mxu0 0.0
    %2947 = vmatprep.subr.mxu0 0.0
    %2948 = vmatpush1.msra.mxu0 0.0
    %2949 = vmatprep.subr.mxu0 0.0
    %2950 = vmatpush1.msra.mxu0 0.0
    %2951 = vmatprep.subr.mxu0 0.0
    %2952 = vmatpush1.msra.mxu0 0.0
    %2953 = vmatprep.subr.mxu0 0.0
    %2954 = vmatpush1.msra.mxu0 0.0
    %2955 = vmatprep.subr.mxu0 0.0
    %2956 = vmatpush1.msra.mxu0 0.0
    %2957 = vmatprep.subr.mxu0 0.0
    %2958 = vmatpush1.msra.mxu0 0.0
    %2959 = vmatprep.subr.mxu0 0.0
    %2960 = vmatpush1.msra.mxu0 0.0
    %2961 = vmatprep.subr.mxu0 0.0
    %2962 = vmatpush1.msra.mxu0 0.0
    %2963 = vmatprep.subr.mxu0 0.0
    %2964 = vmatpush1.msra.mxu0 0.0
    %2965 = vmatprep.subr.mxu0 0.0
    %2966 = vmatpush1.msra.mxu0 0.0
    %2967 = vmatprep.subr.mxu0 0.0
    %2968 = vmatpush1.msra.mxu0 0.0
    %2969 = vmatprep.mubr.f32.mxu0 0.0
    %2970 = vmatmul.mubr.f32.gmra.mrb[0].mxu0 %v2903
    %v2971 = vpop.f32.mrb[0].mxu0
    %v2972 = vadd.f32 %v296, %v2971
    %v2973 = vpop.f32.mrb[0].mxu0
    %2974 = vdwg.mxu0
    %v2975 = vrot.slane %v279, 4
    %2976 = vrot.lane.b32.xlu0 %v2975, 64
    %v2977 = vpop.permute.xlu0 %2976
    %v2979 = vadd.f32 %v2972, %v2977
    %v2980 = vld [vmem:[#allocation2 + $0x14] sm:$0xf]
    %v2981 = vmul.f32 %v2979, 0.5
    %v2982 = vmul.f32 %v2981, 1.442695
    %v2983 = vpow.pop %v2982
    %2985 = vrot.lane.b32.xlu0 %v2980, 64
    %v2986 = vpop.permute.xlu0 %2985
    %v2988 = vmul.f32 %v2983, %v2986
    %2990 = vrot.lane.b32.xlu0 %v2988, 96
    %v2991 = vpop.permute.xlu0 %2990
    %v2993 = vadd.f32 %v2979, %v2991
    %2995 = vrot.lane.b32.xlu0 %v2993, 64
    %v2996 = vpop.permute.xlu0 %2995
    %v2997 = vsel %vm336, %v2996, 0
    %2999 = vmatprep.subr.mxu0 0.0
    %3000 = vmatpush1.msra.mxu0 %v298
    %3001 = vmatprep.subr.mxu0 0.0
    %3002 = vmatpush1.msra.mxu0 %v299
    %3003 = vmatprep.subr.mxu0 0.0
    %3004 = vmatpush1.msra.mxu0 %v300
    %3005 = vmatprep.subr.mxu0 0.0
    %3006 = vmatpush1.msra.mxu0 %v301
    %3007 = vmatprep.subr.mxu0 0.0
    %3008 = vmatpush1.msra.mxu0 0.0
    %3009 = vmatprep.subr.mxu0 0.0
    %3010 = vmatpush1.msra.mxu0 0.0
    %3011 = vmatprep.subr.mxu0 0.0
    %3012 = vmatpush1.msra.mxu0 0.0
    %3013 = vmatprep.subr.mxu0 0.0
    %3014 = vmatpush1.msra.mxu0 0.0
    %3015 = vmatprep.subr.mxu0 0.0
    %3016 = vmatpush1.msra.mxu0 0.0
    %3017 = vmatprep.subr.mxu0 0.0
    %3018 = vmatpush1.msra.mxu0 0.0
    %3019 = vmatprep.subr.mxu0 0.0
    %3020 = vmatpush1.msra.mxu0 0.0
    %3021 = vmatprep.subr.mxu0 0.0
    %3022 = vmatpush1.msra.mxu0 0.0
    %3023 = vmatprep.subr.mxu0 0.0
    %3024 = vmatpush1.msra.mxu0 0.0
    %3025 = vmatprep.subr.mxu0 0.0
    %3026 = vmatpush1.msra.mxu0 0.0
    %3027 = vmatprep.subr.mxu0 0.0
    %3028 = vmatpush1.msra.mxu0 0.0
    %3029 = vmatprep.subr.mxu0 0.0
    %3030 = vmatpush1.msra.mxu0 0.0
    %3031 = vmatprep.subr.mxu0 0.0
    %3032 = vmatpush1.msra.mxu0 0.0
    %3033 = vmatprep.subr.mxu0 0.0
    %3034 = vmatpush1.msra.mxu0 0.0
    %3035 = vmatprep.subr.mxu0 0.0
    %3036 = vmatpush1.msra.mxu0 0.0
    %3037 = vmatprep.subr.mxu0 0.0
    %3038 = vmatpush1.msra.mxu0 0.0
    %3039 = vmatprep.subr.mxu0 0.0
    %3040 = vmatpush1.msra.mxu0 0.0
    %3041 = vmatprep.subr.mxu0 0.0
    %3042 = vmatpush1.msra.mxu0 0.0
    %3043 = vmatprep.subr.mxu0 0.0
    %3044 = vmatpush1.msra.mxu0 0.0
    %3045 = vmatprep.subr.mxu0 0.0
    %3046 = vmatpush1.msra.mxu0 0.0
    %3047 = vmatprep.subr.mxu0 0.0
    %3048 = vmatpush1.msra.mxu0 0.0
    %3049 = vmatprep.subr.mxu0 0.0
    %3050 = vmatpush1.msra.mxu0 0.0
    %3051 = vmatprep.subr.mxu0 0.0
    %3052 = vmatpush1.msra.mxu0 0.0
    %3053 = vmatprep.subr.mxu0 0.0
    %3054 = vmatpush1.msra.mxu0 0.0
    %3055 = vmatprep.subr.mxu0 0.0
    %3056 = vmatpush1.msra.mxu0 0.0
    %3057 = vmatprep.subr.mxu0 0.0
    %3058 = vmatpush1.msra.mxu0 0.0
    %3059 = vmatprep.subr.mxu0 0.0
    %3060 = vmatpush1.msra.mxu0 0.0
    %3061 = vmatprep.subr.mxu0 0.0
    %3062 = vmatpush1.msra.mxu0 0.0
    %3063 = vmatprep.mubr.f32.mxu0 0.0
    %3064 = vmatmul.mubr.f32.gmra.mrb[0].mxu0 %v2997
    %v3065 = vpop.f32.mrb[0].mxu0
    %v3066 = vadd.f32 %v307, %v3065
    %v3067 = vpop.f32.mrb[0].mxu0
    %3068 = vdwg.mxu0
    %v3069 = vmax.f32 %v3066, 0.0
    %vm3070 = vcmp.ne.f32.partialorder %v3066, %v3066
    %v3071 = vadd.f32 %v3066, 0.0
    %v3072 = vand.u32 2147483647, %v3066
    %v3073 = vsub.f32 0.0, %v3072
    %v3074 = vmul.f32 %v3073, 1.442695
    %v3075 = vpow.pop %v3074
    %v3076 = vadd.f32 %v3075, 1.0
    %v3077 = vlog2.pop %v3076
    %v3078 = vmul.f32 %v3077, 0.6931472
    %v3079 = vmul.f32 -0.5, %v3075
    %v3080 = vadd.f32 %v3079, 1.0
    %v3081 = vmul.f32 %v3080, %v3075
    %v3082 = vand.u32 2147483647, %v3075
    %vm3083 = vcmp.lt.f32.partialorder %v3082, 0.0004427343
    %v3084 = vsel %vm3083, %v3081, %v3078
    %v3085 = vadd.f32 %v3069, %v3084
    %v3086 = vsel %vm3070, %v3071, %v3085
    %3088 = vrot.lane.b32.xlu0 %v2972, 64
    %v3089 = vpop.permute.xlu0 %3088
    %v3091 = vsub.f32 %v2979, %v3089
    %v3092 = vmul.f32 %v3091, -0.5
    %v3093 = vmul.f32 %v3091, 1.442695
    %v3094 = vpow.pop %v3093
    %v3095 = vmul.f32 %v3091, %v3091
    %v3096 = vsub.f32 0.0, %v2972
    %v3097 = vmul.f32 %v3096, 1.442695
    %v3098 = vpow.pop %v3097
    %3100 = vrot.lane.b32.xlu0 %v3098, 32
    %v3101 = vpop.permute.xlu0 %3100
    %v3103 = vmul.f32 %v3095, %v3101
    %3105 = vrot.lane.b32.xlu0 %v3103, 32
    %v3106 = vpop.permute.xlu0 %3105
    %v3108 = vadd.f32 %v3094, %v3106
    %v3109 = vmul.f32 %v3108, 0.5
    %v3110 = vadd.f32 %v3092, %v3109
    %v3111 = vsub.f32 %v3110, 0.5
    %v3112 = vadd.f32 %v2601, %v3111
    %v3114 = vsel %vm336, %v3086, 0
    %3116 = vmatprep.subr.mxu0 0.0
    %3117 = vmatpush1.msra.mxu0 %v309
    %3118 = vmatprep.subr.mxu0 0.0
    %3119 = vmatpush1.msra.mxu0 %v310
    %3120 = vmatprep.subr.mxu0 0.0
    %3121 = vmatpush1.msra.mxu0 %v311
    %3122 = vmatprep.subr.mxu0 0.0
    %3123 = vmatpush1.msra.mxu0 %v312
    %3124 = vmatprep.subr.mxu0 0.0
    %3125 = vmatpush1.msra.mxu0 0.0
    %3126 = vmatprep.subr.mxu0 0.0
    %3127 = vmatpush1.msra.mxu0 0.0
    %3128 = vmatprep.subr.mxu0 0.0
    %3129 = vmatpush1.msra.mxu0 0.0
    %3130 = vmatprep.subr.mxu0 0.0
    %3131 = vmatpush1.msra.mxu0 0.0
    %3132 = vmatprep.subr.mxu0 0.0
    %3133 = vmatpush1.msra.mxu0 0.0
    %3134 = vmatprep.subr.mxu0 0.0
    %3135 = vmatpush1.msra.mxu0 0.0
    %3136 = vmatprep.subr.mxu0 0.0
    %3137 = vmatpush1.msra.mxu0 0.0
    %3138 = vmatprep.subr.mxu0 0.0
    %3139 = vmatpush1.msra.mxu0 0.0
    %3140 = vmatprep.subr.mxu0 0.0
    %3141 = vmatpush1.msra.mxu0 0.0
    %3142 = vmatprep.subr.mxu0 0.0
    %3143 = vmatpush1.msra.mxu0 0.0
    %3144 = vmatprep.subr.mxu0 0.0
    %3145 = vmatpush1.msra.mxu0 0.0
    %3146 = vmatprep.subr.mxu0 0.0
    %3147 = vmatpush1.msra.mxu0 0.0
    %3148 = vmatprep.subr.mxu0 0.0
    %3149 = vmatpush1.msra.mxu0 0.0
    %3150 = vmatprep.subr.mxu0 0.0
    %3151 = vmatpush1.msra.mxu0 0.0
    %3152 = vmatprep.subr.mxu0 0.0
    %3153 = vmatpush1.msra.mxu0 0.0
    %3154 = vmatprep.subr.mxu0 0.0
    %3155 = vmatpush1.msra.mxu0 0.0
    %3156 = vmatprep.subr.mxu0 0.0
    %3157 = vmatpush1.msra.mxu0 0.0
    %3158 = vmatprep.subr.mxu0 0.0
    %3159 = vmatpush1.msra.mxu0 0.0
    %3160 = vmatprep.subr.mxu0 0.0
    %3161 = vmatpush1.msra.mxu0 0.0
    %3162 = vmatprep.subr.mxu0 0.0
    %3163 = vmatpush1.msra.mxu0 0.0
    %3164 = vmatprep.subr.mxu0 0.0
    %3165 = vmatpush1.msra.mxu0 0.0
    %3166 = vmatprep.subr.mxu0 0.0
    %3167 = vmatpush1.msra.mxu0 0.0
    %3168 = vmatprep.subr.mxu0 0.0
    %3169 = vmatpush1.msra.mxu0 0.0
    %3170 = vmatprep.subr.mxu0 0.0
    %3171 = vmatpush1.msra.mxu0 0.0
    %3172 = vmatprep.subr.mxu0 0.0
    %3173 = vmatpush1.msra.mxu0 0.0
    %3174 = vmatprep.subr.mxu0 0.0
    %3175 = vmatpush1.msra.mxu0 0.0
    %3176 = vmatprep.subr.mxu0 0.0
    %3177 = vmatpush1.msra.mxu0 0.0
    %3178 = vmatprep.subr.mxu0 0.0
    %3179 = vmatpush1.msra.mxu0 0.0
    %3180 = vmatprep.mubr.f32.mxu0 0.0
    %3181 = vmatmul.mubr.f32.gmra.mrb[0].mxu0 %v3114
    %v3182 = vpop.f32.mrb[0].mxu0
    %v3183 = vadd.f32 0.0, %v3182
    %v3184 = vpop.f32.mrb[0].mxu0
    %3185 = vdwg.mxu0
    %v3187 = vrot.slane %v3183, 4
    %3188 = vrot.lane.b32.xlu0 %v3187, 64
    %v3189 = vpop.permute.xlu0 %3188
    %v3191 = vadd.f32 %v279, %v3189
    %v3192 = vrot.slane %v2980, 4
    %v3194 = vsub.f32 %v3191, %v3192
    %v3195 = vmul.f32 %v3194, %v3194
    %v3197 = vrot.slane %v3195, 4
    %v3199 = vadd.f32 %v2682, %v3197
    %3200 = vrot.lane.b32.xlu0 %v2788, 96
    %v3201 = vpop.permute.xlu0 %3200
    %v3203 = vsel %vm336, %v3086, %v3201
    %v3205 = vsel %vm630, %v3203, 0
    %3207 = vmatprep.subr.mxu0 0.0
    %3208 = vmatpush1.msra.mxu0 %v313
    %3209 = vmatprep.subr.mxu0 0.0
    %3210 = vmatpush1.msra.mxu0 %v314
    %3211 = vmatprep.subr.mxu0 0.0
    %3212 = vmatpush1.msra.mxu0 %v315
    %3213 = vmatprep.subr.mxu0 0.0
    %3214 = vmatpush1.msra.mxu0 %v316
    %3215 = vmatprep.subr.mxu0 0.0
    %3216 = vmatpush1.msra.mxu0 %v317
    %3217 = vmatprep.subr.mxu0 0.0
    %3218 = vmatpush1.msra.mxu0 %v318
    %3219 = vmatprep.subr.mxu0 0.0
    %3220 = vmatpush1.msra.mxu0 %v319
    %3221 = vmatprep.subr.mxu0 0.0
    %3222 = vmatpush1.msra.mxu0 %v320
    %3223 = vmatprep.subr.mxu0 0.0
    %3224 = vmatpush1.msra.mxu0 0.0
    %3225 = vmatprep.subr.mxu0 0.0
    %3226 = vmatpush1.msra.mxu0 0.0
    %3227 = vmatprep.subr.mxu0 0.0
    %3228 = vmatpush1.msra.mxu0 0.0
    %3229 = vmatprep.subr.mxu0 0.0
    %3230 = vmatpush1.msra.mxu0 0.0
    %3231 = vmatprep.subr.mxu0 0.0
    %3232 = vmatpush1.msra.mxu0 0.0
    %3233 = vmatprep.subr.mxu0 0.0
    %3234 = vmatpush1.msra.mxu0 0.0
    %3235 = vmatprep.subr.mxu0 0.0
    %3236 = vmatpush1.msra.mxu0 0.0
    %3237 = vmatprep.subr.mxu0 0.0
    %3238 = vmatpush1.msra.mxu0 0.0
    %3239 = vmatprep.subr.mxu0 0.0
    %3240 = vmatpush1.msra.mxu0 0.0
    %3241 = vmatprep.subr.mxu0 0.0
    %3242 = vmatpush1.msra.mxu0 0.0
    %3243 = vmatprep.subr.mxu0 0.0
    %3244 = vmatpush1.msra.mxu0 0.0
    %3245 = vmatprep.subr.mxu0 0.0
    %3246 = vmatpush1.msra.mxu0 0.0
    %3247 = vmatprep.subr.mxu0 0.0
    %3248 = vmatpush1.msra.mxu0 0.0
    %3249 = vmatprep.subr.mxu0 0.0
    %3250 = vmatpush1.msra.mxu0 0.0
    %3251 = vmatprep.subr.mxu0 0.0
    %3252 = vmatpush1.msra.mxu0 0.0
    %3253 = vmatprep.subr.mxu0 0.0
    %3254 = vmatpush1.msra.mxu0 0.0
    %3255 = vmatprep.subr.mxu0 0.0
    %3256 = vmatpush1.msra.mxu0 0.0
    %3257 = vmatprep.subr.mxu0 0.0
    %3258 = vmatpush1.msra.mxu0 0.0
    %3259 = vmatprep.subr.mxu0 0.0
    %3260 = vmatpush1.msra.mxu0 0.0
    %3261 = vmatprep.subr.mxu0 0.0
    %3262 = vmatpush1.msra.mxu0 0.0
    %3263 = vmatprep.subr.mxu0 0.0
    %3264 = vmatpush1.msra.mxu0 0.0
    %3265 = vmatprep.subr.mxu0 0.0
    %3266 = vmatpush1.msra.mxu0 0.0
    %3267 = vmatprep.subr.mxu0 0.0
    %3268 = vmatpush1.msra.mxu0 0.0
    %3269 = vmatprep.subr.mxu0 0.0
    %3270 = vmatpush1.msra.mxu0 0.0
    %3271 = vmatprep.mubr.f32.mxu0 0.0
    %3272 = vmatmul.mubr.f32.gmra.mrb[0].mxu0 %v3205
    %v3273 = vpop.f32.mrb[0].mxu0
    %v3274 = vadd.f32 0.0, %v3273
    %v3275 = vpop.f32.mrb[0].mxu0
    %3276 = vdwg.mxu0
    %v3278 = vrot.slane %v3274, 4
    %v3280 = vadd.f32 %v277, %v3278
    %v3281 = vxor.u32 %v3280, 2147483648
    %v3282 = vmul.f32 %v3281, 1.442695
    %v3283 = vpow.pop %v3282
    %v3284 = vadd.f32 %v3283, 1.0
    %v3285 = vrcp.pop %v3284
    %v3286 = vmul.f32 1.0, %v3285
    %v3287 = vtanh.pop %v3280
    %v3289 = vrot.slane %v2782, 4
    %v3291 = vmul.f32 %v3286, %v3289
    %3293 = vrot.lane.b32.xlu0 %v3287, 32
    %v3294 = vpop.permute.xlu0 %3293
    %v3296 = vmul.f32 %v3286, %v3294
    %3298 = vrot.lane.b32.xlu0 %v3296, 32
    %v3299 = vpop.permute.xlu0 %3298
    %v3301 = vadd.f32 %v3291, %v3299
    %v3302 = vtanh.pop %v3301
    %3304 = vrot.lane.b32.xlu0 %v3302, 32
    %v3305 = vpop.permute.xlu0 %3304
    %v3307 = vmul.f32 %v3286, %v3305
    %3309 = vrot.lane.b32.xlu0 %v3307, 64
    %v3310 = vpop.permute.xlu0 %3309
    %v3313 = vrot.slane %v2894, 4
    %3314 = vrot.lane.b32.xlu0 %v3313, 96
    %v3315 = vpop.permute.xlu0 %3314
    %v3317 = vsel %vm336, %v3310, %v3315
    %v3319 = vrot.slane %v3317, 4
    %v3320 = vsel %vm630, %v3319, 0
    %3322 = vmatprep.subr.mxu0 0.0
    %3323 = vmatpush1.msra.mxu0 %v321
    %3324 = vmatprep.subr.mxu0 0.0
    %3325 = vmatpush1.msra.mxu0 %v322
    %3326 = vmatprep.subr.mxu0 0.0
    %3327 = vmatpush1.msra.mxu0 %v323
    %3328 = vmatprep.subr.mxu0 0.0
    %3329 = vmatpush1.msra.mxu0 %v324
    %3330 = vmatprep.subr.mxu0 0.0
    %3331 = vmatpush1.msra.mxu0 %v325
    %3332 = vmatprep.subr.mxu0 0.0
    %3333 = vmatpush1.msra.mxu0 %v326
    %3334 = vmatprep.subr.mxu0 0.0
    %3335 = vmatpush1.msra.mxu0 %v327
    %3336 = vmatprep.subr.mxu0 0.0
    %3337 = vmatpush1.msra.mxu0 %v328
    %3338 = vmatprep.subr.mxu0 0.0
    %3339 = vmatpush1.msra.mxu0 0.0
    %3340 = vmatprep.subr.mxu0 0.0
    %3341 = vmatpush1.msra.mxu0 0.0
    %3342 = vmatprep.subr.mxu0 0.0
    %3343 = vmatpush1.msra.mxu0 0.0
    %3344 = vmatprep.subr.mxu0 0.0
    %3345 = vmatpush1.msra.mxu0 0.0
    %3346 = vmatprep.subr.mxu0 0.0
    %3347 = vmatpush1.msra.mxu0 0.0
    %3348 = vmatprep.subr.mxu0 0.0
    %3349 = vmatpush1.msra.mxu0 0.0
    %3350 = vmatprep.subr.mxu0 0.0
    %3351 = vmatpush1.msra.mxu0 0.0
    %3352 = vmatprep.subr.mxu0 0.0
    %3353 = vmatpush1.msra.mxu0 0.0
    %3354 = vmatprep.subr.mxu0 0.0
    %3355 = vmatpush1.msra.mxu0 0.0
    %3356 = vmatprep.subr.mxu0 0.0
    %3357 = vmatpush1.msra.mxu0 0.0
    %3358 = vmatprep.subr.mxu0 0.0
    %3359 = vmatpush1.msra.mxu0 0.0
    %3360 = vmatprep.subr.mxu0 0.0
    %3361 = vmatpush1.msra.mxu0 0.0
    %3362 = vmatprep.subr.mxu0 0.0
    %3363 = vmatpush1.msra.mxu0 0.0
    %3364 = vmatprep.subr.mxu0 0.0
    %3365 = vmatpush1.msra.mxu0 0.0
    %3366 = vmatprep.subr.mxu0 0.0
    %3367 = vmatpush1.msra.mxu0 0.0
    %3368 = vmatprep.subr.mxu0 0.0
    %3369 = vmatpush1.msra.mxu0 0.0
    %3370 = vmatprep.subr.mxu0 0.0
    %3371 = vmatpush1.msra.mxu0 0.0
    %3372 = vmatprep.subr.mxu0 0.0
    %3373 = vmatpush1.msra.mxu0 0.0
    %3374 = vmatprep.subr.mxu0 0.0
    %3375 = vmatpush1.msra.mxu0 0.0
    %3376 = vmatprep.subr.mxu0 0.0
    %3377 = vmatpush1.msra.mxu0 0.0
    %3378 = vmatprep.subr.mxu0 0.0
    %3379 = vmatpush1.msra.mxu0 0.0
    %3380 = vmatprep.subr.mxu0 0.0
    %3381 = vmatpush1.msra.mxu0 0.0
    %3382 = vmatprep.subr.mxu0 0.0
    %3383 = vmatpush1.msra.mxu0 0.0
    %3384 = vmatprep.subr.mxu0 0.0
    %3385 = vmatpush1.msra.mxu0 0.0
    %3386 = vmatprep.mubr.f32.mxu0 0.0
    %3387 = vmatmul.mubr.f32.gmra.mrb[0].mxu0 %v3320
    %v3388 = vpop.f32.mrb[0].mxu0
    %v3389 = vadd.f32 %v334, %v3388
    %v3390 = vpop.f32.mrb[0].mxu0
    %3391 = vdwg.mxu0
    %v3392 = vxor.u32 %v3389, 2147483648
    %v3393 = vmul.f32 %v3392, 1.442695
    %v3394 = vpow.pop %v3393
    %v3395 = vadd.f32 %v3394, 1.0
    %v3396 = vrcp.pop %v3395
    %v3397 = vmul.f32 1.0, %v3396
    %v3398 = vtanh.pop %v3389
    %v3399 = vmul.f32 %v3397, %v2888
    %3401 = vrot.lane.b32.xlu0 %v3398, 32
    %v3402 = vpop.permute.xlu0 %3401
    %v3404 = vmul.f32 %v3397, %v3402
    %3406 = vrot.lane.b32.xlu0 %v3404, 32
    %v3407 = vpop.permute.xlu0 %3406
    %v3409 = vadd.f32 %v3399, %v3407
    %v3410 = vtanh.pop %v3409
    %3412 = vrot.lane.b32.xlu0 %v3410, 32
    %v3413 = vpop.permute.xlu0 %3412
    %v3415 = vmul.f32 %v3397, %v3413
    %3417 = vrot.lane.b32.xlu0 %v3409, 32
    %v3418 = vpop.permute.xlu0 %3417
    %v3420 = vadd.f32 %v3415, %v3418
    %3422 = vrot.lane.b32.xlu0 %v3420, 64
    %v3423 = vpop.permute.xlu0 %3422
    %v3424 = vsel %vm336, %v3423, 0
    %3426 = vmatprep.subr.mxu0 0.0
    %3427 = vmatpush1.msra.mxu0 %v287
    %3428 = vmatprep.subr.mxu0 0.0
    %3429 = vmatpush1.msra.mxu0 %v288
    %3430 = vmatprep.subr.mxu0 0.0
    %3431 = vmatpush1.msra.mxu0 %v289
    %3432 = vmatprep.subr.mxu0 0.0
    %3433 = vmatpush1.msra.mxu0 %v290
    %3434 = vmatprep.subr.mxu0 0.0
    %3435 = vmatpush1.msra.mxu0 0.0
    %3436 = vmatprep.subr.mxu0 0.0
    %3437 = vmatpush1.msra.mxu0 0.0
    %3438 = vmatprep.subr.mxu0 0.0
    %3439 = vmatpush1.msra.mxu0 0.0
    %3440 = vmatprep.subr.mxu0 0.0
    %3441 = vmatpush1.msra.mxu0 0.0
    %3442 = vmatprep.subr.mxu0 0.0
    %3443 = vmatpush1.msra.mxu0 0.0
    %3444 = vmatprep.subr.mxu0 0.0
    %3445 = vmatpush1.msra.mxu0 0.0
    %3446 = vmatprep.subr.mxu0 0.0
    %3447 = vmatpush1.msra.mxu0 0.0
    %3448 = vmatprep.subr.mxu0 0.0
    %3449 = vmatpush1.msra.mxu0 0.0
    %3450 = vmatprep.subr.mxu0 0.0
    %3451 = vmatpush1.msra.mxu0 0.0
    %3452 = vmatprep.subr.mxu0 0.0
    %3453 = vmatpush1.msra.mxu0 0.0
    %3454 = vmatprep.subr.mxu0 0.0
    %3455 = vmatpush1.msra.mxu0 0.0
    %3456 = vmatprep.subr.mxu0 0.0
    %3457 = vmatpush1.msra.mxu0 0.0
    %3458 = vmatprep.subr.mxu0 0.0
    %3459 = vmatpush1.msra.mxu0 0.0
    %3460 = vmatprep.subr.mxu0 0.0
    %3461 = vmatpush1.msra.mxu0 0.0
    %3462 = vmatprep.subr.mxu0 0.0
    %3463 = vmatpush1.msra.mxu0 0.0
    %3464 = vmatprep.subr.mxu0 0.0
    %3465 = vmatpush1.msra.mxu0 0.0
    %3466 = vmatprep.subr.mxu0 0.0
    %3467 = vmatpush1.msra.mxu0 0.0
    %3468 = vmatprep.subr.mxu0 0.0
    %3469 = vmatpush1.msra.mxu0 0.0
    %3470 = vmatprep.subr.mxu0 0.0
    %3471 = vmatpush1.msra.mxu0 0.0
    %3472 = vmatprep.subr.mxu0 0.0
    %3473 = vmatpush1.msra.mxu0 0.0
    %3474 = vmatprep.subr.mxu0 0.0
    %3475 = vmatpush1.msra.mxu0 0.0
    %3476 = vmatprep.subr.mxu0 0.0
    %3477 = vmatpush1.msra.mxu0 0.0
    %3478 = vmatprep.subr.mxu0 0.0
    %3479 = vmatpush1.msra.mxu0 0.0
    %3480 = vmatprep.subr.mxu0 0.0
    %3481 = vmatpush1.msra.mxu0 0.0
    %3482 = vmatprep.subr.mxu0 0.0
    %3483 = vmatpush1.msra.mxu0 0.0
    %3484 = vmatprep.subr.mxu0 0.0
    %3485 = vmatpush1.msra.mxu0 0.0
    %3486 = vmatprep.subr.mxu0 0.0
    %3487 = vmatpush1.msra.mxu0 0.0
    %3488 = vmatprep.subr.mxu0 0.0
    %3489 = vmatpush1.msra.mxu0 0.0
    %3490 = vmatprep.mubr.f32.mxu0 0.0
    %3491 = vmatmul.mubr.f32.gmra.mrb[0].mxu0 %v3424
    %v3492 = vpop.f32.mrb[0].mxu0
    %v3493 = vadd.f32 %v296, %v3492
    %v3494 = vpop.f32.mrb[0].mxu0
    %3495 = vdwg.mxu0
    %3497 = vrot.lane.b32.xlu0 %v285, 64
    %v3498 = vpop.permute.xlu0 %3497
    %v3500 = vadd.f32 %v3493, %v3498
    %v3501 = vld [vmem:[#allocation2 + $0x18] sm:$0xf]
    %v3502 = vmul.f32 %v3500, 0.5
    %v3503 = vmul.f32 %v3502, 1.442695
    %v3504 = vpow.pop %v3503
    %3506 = vrot.lane.b32.xlu0 %v3501, 64
    %v3507 = vpop.permute.xlu0 %3506
    %v3509 = vmul.f32 %v3504, %v3507
    %3511 = vrot.lane.b32.xlu0 %v3509, 96
    %v3512 = vpop.permute.xlu0 %3511
    %v3514 = vadd.f32 %v3500, %v3512
    %3516 = vrot.lane.b32.xlu0 %v3514, 64
    %v3517 = vpop.permute.xlu0 %3516
    %v3518 = vsel %vm336, %v3517, 0
    %3520 = vmatprep.subr.mxu0 0.0
    %3521 = vmatpush1.msra.mxu0 %v298
    %3522 = vmatprep.subr.mxu0 0.0
    %3523 = vmatpush1.msra.mxu0 %v299
    %3524 = vmatprep.subr.mxu0 0.0
    %3525 = vmatpush1.msra.mxu0 %v300
    %3526 = vmatprep.subr.mxu0 0.0
    %3527 = vmatpush1.msra.mxu0 %v301
    %3528 = vmatprep.subr.mxu0 0.0
    %3529 = vmatpush1.msra.mxu0 0.0
    %3530 = vmatprep.subr.mxu0 0.0
    %3531 = vmatpush1.msra.mxu0 0.0
    %3532 = vmatprep.subr.mxu0 0.0
    %3533 = vmatpush1.msra.mxu0 0.0
    %3534 = vmatprep.subr.mxu0 0.0
    %3535 = vmatpush1.msra.mxu0 0.0
    %3536 = vmatprep.subr.mxu0 0.0
    %3537 = vmatpush1.msra.mxu0 0.0
    %3538 = vmatprep.subr.mxu0 0.0
    %3539 = vmatpush1.msra.mxu0 0.0
    %3540 = vmatprep.subr.mxu0 0.0
    %3541 = vmatpush1.msra.mxu0 0.0
    %3542 = vmatprep.subr.mxu0 0.0
    %3543 = vmatpush1.msra.mxu0 0.0
    %3544 = vmatprep.subr.mxu0 0.0
    %3545 = vmatpush1.msra.mxu0 0.0
    %3546 = vmatprep.subr.mxu0 0.0
    %3547 = vmatpush1.msra.mxu0 0.0
    %3548 = vmatprep.subr.mxu0 0.0
    %3549 = vmatpush1.msra.mxu0 0.0
    %3550 = vmatprep.subr.mxu0 0.0
    %3551 = vmatpush1.msra.mxu0 0.0
    %3552 = vmatprep.subr.mxu0 0.0
    %3553 = vmatpush1.msra.mxu0 0.0
    %3554 = vmatprep.subr.mxu0 0.0
    %3555 = vmatpush1.msra.mxu0 0.0
    %3556 = vmatprep.subr.mxu0 0.0
    %3557 = vmatpush1.msra.mxu0 0.0
    %3558 = vmatprep.subr.mxu0 0.0
    %3559 = vmatpush1.msra.mxu0 0.0
    %3560 = vmatprep.subr.mxu0 0.0
    %3561 = vmatpush1.msra.mxu0 0.0
    %3562 = vmatprep.subr.mxu0 0.0
    %3563 = vmatpush1.msra.mxu0 0.0
    %3564 = vmatprep.subr.mxu0 0.0
    %3565 = vmatpush1.msra.mxu0 0.0
    %3566 = vmatprep.subr.mxu0 0.0
    %3567 = vmatpush1.msra.mxu0 0.0
    %3568 = vmatprep.subr.mxu0 0.0
    %3569 = vmatpush1.msra.mxu0 0.0
    %3570 = vmatprep.subr.mxu0 0.0
    %3571 = vmatpush1.msra.mxu0 0.0
    %3572 = vmatprep.subr.mxu0 0.0
    %3573 = vmatpush1.msra.mxu0 0.0
    %3574 = vmatprep.subr.mxu0 0.0
    %3575 = vmatpush1.msra.mxu0 0.0
    %3576 = vmatprep.subr.mxu0 0.0
    %3577 = vmatpush1.msra.mxu0 0.0
    %3578 = vmatprep.subr.mxu0 0.0
    %3579 = vmatpush1.msra.mxu0 0.0
    %3580 = vmatprep.subr.mxu0 0.0
    %3581 = vmatpush1.msra.mxu0 0.0
    %3582 = vmatprep.subr.mxu0 0.0
    %3583 = vmatpush1.msra.mxu0 0.0
    %3584 = vmatprep.mubr.f32.mxu0 0.0
    %3585 = vmatmul.mubr.f32.gmra.mrb[0].mxu0 %v3518
    %v3586 = vpop.f32.mrb[0].mxu0
    %v3587 = vadd.f32 %v307, %v3586
    %v3588 = vpop.f32.mrb[0].mxu0
    %3589 = vdwg.mxu0
    %v3590 = vmax.f32 %v3587, 0.0
    %vm3591 = vcmp.ne.f32.partialorder %v3587, %v3587
    %v3592 = vadd.f32 %v3587, 0.0
    %v3593 = vand.u32 2147483647, %v3587
    %v3594 = vsub.f32 0.0, %v3593
    %v3595 = vmul.f32 %v3594, 1.442695
    %v3596 = vpow.pop %v3595
    %v3597 = vadd.f32 %v3596, 1.0
    %v3598 = vlog2.pop %v3597
    %v3599 = vmul.f32 %v3598, 0.6931472
    %v3600 = vmul.f32 -0.5, %v3596
    %v3601 = vadd.f32 %v3600, 1.0
    %v3602 = vmul.f32 %v3601, %v3596
    %v3603 = vand.u32 2147483647, %v3596
    %vm3604 = vcmp.lt.f32.partialorder %v3603, 0.0004427343
    %v3605 = vsel %vm3604, %v3602, %v3599
    %v3606 = vadd.f32 %v3590, %v3605
    %v3607 = vsel %vm3591, %v3592, %v3606
    %3609 = vrot.lane.b32.xlu0 %v3493, 64
    %v3610 = vpop.permute.xlu0 %3609
    %v3612 = vsub.f32 %v3500, %v3610
    %v3613 = vmul.f32 %v3612, -0.5
    %v3614 = vmul.f32 %v3612, 1.442695
    %v3615 = vpow.pop %v3614
    %v3616 = vmul.f32 %v3612, %v3612
    %v3617 = vsub.f32 0.0, %v3493
    %v3618 = vmul.f32 %v3617, 1.442695
    %v3619 = vpow.pop %v3618
    %3621 = vrot.lane.b32.xlu0 %v3619, 32
    %v3622 = vpop.permute.xlu0 %3621
    %v3624 = vmul.f32 %v3616, %v3622
    %3626 = vrot.lane.b32.xlu0 %v3624, 32
    %v3627 = vpop.permute.xlu0 %3626
    %v3629 = vadd.f32 %v3615, %v3627
    %v3630 = vmul.f32 %v3629, 0.5
    %v3631 = vadd.f32 %v3613, %v3630
    %v3632 = vsub.f32 %v3631, 0.5
    %v3633 = vadd.f32 %v3112, %v3632
    %v3635 = vsel %vm336, %v3607, 0
    %3637 = vmatprep.subr.mxu0 0.0
    %3638 = vmatpush1.msra.mxu0 %v309
    %3639 = vmatprep.subr.mxu0 0.0
    %3640 = vmatpush1.msra.mxu0 %v310
    %3641 = vmatprep.subr.mxu0 0.0
    %3642 = vmatpush1.msra.mxu0 %v311
    %3643 = vmatprep.subr.mxu0 0.0
    %3644 = vmatpush1.msra.mxu0 %v312
    %3645 = vmatprep.subr.mxu0 0.0
    %3646 = vmatpush1.msra.mxu0 0.0
    %3647 = vmatprep.subr.mxu0 0.0
    %3648 = vmatpush1.msra.mxu0 0.0
    %3649 = vmatprep.subr.mxu0 0.0
    %3650 = vmatpush1.msra.mxu0 0.0
    %3651 = vmatprep.subr.mxu0 0.0
    %3652 = vmatpush1.msra.mxu0 0.0
    %3653 = vmatprep.subr.mxu0 0.0
    %3654 = vmatpush1.msra.mxu0 0.0
    %3655 = vmatprep.subr.mxu0 0.0
    %3656 = vmatpush1.msra.mxu0 0.0
    %3657 = vmatprep.subr.mxu0 0.0
    %3658 = vmatpush1.msra.mxu0 0.0
    %3659 = vmatprep.subr.mxu0 0.0
    %3660 = vmatpush1.msra.mxu0 0.0
    %3661 = vmatprep.subr.mxu0 0.0
    %3662 = vmatpush1.msra.mxu0 0.0
    %3663 = vmatprep.subr.mxu0 0.0
    %3664 = vmatpush1.msra.mxu0 0.0
    %3665 = vmatprep.subr.mxu0 0.0
    %3666 = vmatpush1.msra.mxu0 0.0
    %3667 = vmatprep.subr.mxu0 0.0
    %3668 = vmatpush1.msra.mxu0 0.0
    %3669 = vmatprep.subr.mxu0 0.0
    %3670 = vmatpush1.msra.mxu0 0.0
    %3671 = vmatprep.subr.mxu0 0.0
    %3672 = vmatpush1.msra.mxu0 0.0
    %3673 = vmatprep.subr.mxu0 0.0
    %3674 = vmatpush1.msra.mxu0 0.0
    %3675 = vmatprep.subr.mxu0 0.0
    %3676 = vmatpush1.msra.mxu0 0.0
    %3677 = vmatprep.subr.mxu0 0.0
    %3678 = vmatpush1.msra.mxu0 0.0
    %3679 = vmatprep.subr.mxu0 0.0
    %3680 = vmatpush1.msra.mxu0 0.0
    %3681 = vmatprep.subr.mxu0 0.0
    %3682 = vmatpush1.msra.mxu0 0.0
    %3683 = vmatprep.subr.mxu0 0.0
    %3684 = vmatpush1.msra.mxu0 0.0
    %3685 = vmatprep.subr.mxu0 0.0
    %3686 = vmatpush1.msra.mxu0 0.0
    %3687 = vmatprep.subr.mxu0 0.0
    %3688 = vmatpush1.msra.mxu0 0.0
    %3689 = vmatprep.subr.mxu0 0.0
    %3690 = vmatpush1.msra.mxu0 0.0
    %3691 = vmatprep.subr.mxu0 0.0
    %3692 = vmatpush1.msra.mxu0 0.0
    %3693 = vmatprep.subr.mxu0 0.0
    %3694 = vmatpush1.msra.mxu0 0.0
    %3695 = vmatprep.subr.mxu0 0.0
    %3696 = vmatpush1.msra.mxu0 0.0
    %3697 = vmatprep.subr.mxu0 0.0
    %3698 = vmatpush1.msra.mxu0 0.0
    %3699 = vmatprep.subr.mxu0 0.0
    %3700 = vmatpush1.msra.mxu0 0.0
    %3701 = vmatprep.mubr.f32.mxu0 0.0
    %3702 = vmatmul.mubr.f32.gmra.mrb[0].mxu0 %v3635
    %v3703 = vpop.f32.mrb[0].mxu0
    %v3704 = vadd.f32 0.0, %v3703
    %v3705 = vpop.f32.mrb[0].mxu0
    %3706 = vdwg.mxu0
    %3708 = vrot.lane.b32.xlu0 %v3704, 64
    %v3709 = vpop.permute.xlu0 %3708
    %v3711 = vadd.f32 %v285, %v3709
    %v3712 = vsub.f32 %v3711, %v3501
    %v3713 = vmul.f32 %v3712, %v3712
    %v3714 = vadd.f32 %v3199, %v3713
    %v3715 = vrot.slane %v3307, 4
    %3716 = vrot.lane.b32.xlu0 %v3715, 96
    %v3717 = vpop.permute.xlu0 %3716
    %v3719 = vsel %vm336, %v3607, %v3717
    %v3721 = vsel %vm630, %v3719, 0
    %3723 = vmatprep.subr.mxu0 0.0
    %3724 = vmatpush1.msra.mxu0 %v313
    %3725 = vmatprep.subr.mxu0 0.0
    %3726 = vmatpush1.msra.mxu0 %v314
    %3727 = vmatprep.subr.mxu0 0.0
    %3728 = vmatpush1.msra.mxu0 %v315
    %3729 = vmatprep.subr.mxu0 0.0
    %3730 = vmatpush1.msra.mxu0 %v316
    %3731 = vmatprep.subr.mxu0 0.0
    %3732 = vmatpush1.msra.mxu0 %v317
    %3733 = vmatprep.subr.mxu0 0.0
    %3734 = vmatpush1.msra.mxu0 %v318
    %3735 = vmatprep.subr.mxu0 0.0
    %3736 = vmatpush1.msra.mxu0 %v319
    %3737 = vmatprep.subr.mxu0 0.0
    %3738 = vmatpush1.msra.mxu0 %v320
    %3739 = vmatprep.subr.mxu0 0.0
    %3740 = vmatpush1.msra.mxu0 0.0
    %3741 = vmatprep.subr.mxu0 0.0
    %3742 = vmatpush1.msra.mxu0 0.0
    %3743 = vmatprep.subr.mxu0 0.0
    %3744 = vmatpush1.msra.mxu0 0.0
    %3745 = vmatprep.subr.mxu0 0.0
    %3746 = vmatpush1.msra.mxu0 0.0
    %3747 = vmatprep.subr.mxu0 0.0
    %3748 = vmatpush1.msra.mxu0 0.0
    %3749 = vmatprep.subr.mxu0 0.0
    %3750 = vmatpush1.msra.mxu0 0.0
    %3751 = vmatprep.subr.mxu0 0.0
    %3752 = vmatpush1.msra.mxu0 0.0
    %3753 = vmatprep.subr.mxu0 0.0
    %3754 = vmatpush1.msra.mxu0 0.0
    %3755 = vmatprep.subr.mxu0 0.0
    %3756 = vmatpush1.msra.mxu0 0.0
    %3757 = vmatprep.subr.mxu0 0.0
    %3758 = vmatpush1.msra.mxu0 0.0
    %3759 = vmatprep.subr.mxu0 0.0
    %3760 = vmatpush1.msra.mxu0 0.0
    %3761 = vmatprep.subr.mxu0 0.0
    %3762 = vmatpush1.msra.mxu0 0.0
    %3763 = vmatprep.subr.mxu0 0.0
    %3764 = vmatpush1.msra.mxu0 0.0
    %3765 = vmatprep.subr.mxu0 0.0
    %3766 = vmatpush1.msra.mxu0 0.0
    %3767 = vmatprep.subr.mxu0 0.0
    %3768 = vmatpush1.msra.mxu0 0.0
    %3769 = vmatprep.subr.mxu0 0.0
    %3770 = vmatpush1.msra.mxu0 0.0
    %3771 = vmatprep.subr.mxu0 0.0
    %3772 = vmatpush1.msra.mxu0 0.0
    %3773 = vmatprep.subr.mxu0 0.0
    %3774 = vmatpush1.msra.mxu0 0.0
    %3775 = vmatprep.subr.mxu0 0.0
    %3776 = vmatpush1.msra.mxu0 0.0
    %3777 = vmatprep.subr.mxu0 0.0
    %3778 = vmatpush1.msra.mxu0 0.0
    %3779 = vmatprep.subr.mxu0 0.0
    %3780 = vmatpush1.msra.mxu0 0.0
    %3781 = vmatprep.subr.mxu0 0.0
    %3782 = vmatpush1.msra.mxu0 0.0
    %3783 = vmatprep.subr.mxu0 0.0
    %3784 = vmatpush1.msra.mxu0 0.0
    %3785 = vmatprep.subr.mxu0 0.0
    %3786 = vmatpush1.msra.mxu0 0.0
    %3787 = vmatprep.mubr.f32.mxu0 0.0
    %3788 = vmatmul.mubr.f32.gmra.mrb[0].mxu0 %v3721
    %v3789 = vpop.f32.mrb[0].mxu0
    %v3790 = vadd.f32 0.0, %v3789
    %v3791 = vpop.f32.mrb[0].mxu0
    %3792 = vdwg.mxu0
    %v3793 = vadd.f32 %v283, %v3790
    %v3794 = vxor.u32 %v3793, 2147483648
    %v3795 = vmul.f32 %v3794, 1.442695
    %v3796 = vpow.pop %v3795
    %v3797 = vadd.f32 %v3796, 1.0
    %v3798 = vrcp.pop %v3797
    %v3799 = vmul.f32 1.0, %v3798
    %v3800 = vtanh.pop %v3793
    %v3802 = vrot.slane %v3301, 4
    %v3804 = vmul.f32 %v3799, %v3802
    %3806 = vrot.lane.b32.xlu0 %v3800, 32
    %v3807 = vpop.permute.xlu0 %3806
    %v3809 = vmul.f32 %v3799, %v3807
    %3811 = vrot.lane.b32.xlu0 %v3809, 32
    %v3812 = vpop.permute.xlu0 %3811
    %v3814 = vadd.f32 %v3804, %v3812
    %v3815 = vtanh.pop %v3814
    %3817 = vrot.lane.b32.xlu0 %v3815, 32
    %v3818 = vpop.permute.xlu0 %3817
    %v3820 = vmul.f32 %v3799, %v3818
    %3822 = vrot.lane.b32.xlu0 %v3820, 64
    %v3823 = vpop.permute.xlu0 %3822
    %3826 = vrot.lane.b32.xlu0 %v3415, 96
    %v3827 = vpop.permute.xlu0 %3826
    %v3829 = vsel %vm336, %v3823, %v3827
    %v3831 = vsel %vm630, %v3829, 0
    %3833 = vmatprep.subr.mxu0 0.0
    %3834 = vmatpush1.msra.mxu0 %v321
    %3835 = vmatprep.subr.mxu0 0.0
    %3836 = vmatpush1.msra.mxu0 %v322
    %3837 = vmatprep.subr.mxu0 0.0
    %3838 = vmatpush1.msra.mxu0 %v323
    %3839 = vmatprep.subr.mxu0 0.0
    %3840 = vmatpush1.msra.mxu0 %v324
    %3841 = vmatprep.subr.mxu0 0.0
    %3842 = vmatpush1.msra.mxu0 %v325
    %3843 = vmatprep.subr.mxu0 0.0
    %3844 = vmatpush1.msra.mxu0 %v326
    %3845 = vmatprep.subr.mxu0 0.0
    %3846 = vmatpush1.msra.mxu0 %v327
    %3847 = vmatprep.subr.mxu0 0.0
    %3848 = vmatpush1.msra.mxu0 %v328
    %3849 = vmatprep.subr.mxu0 0.0
    %3850 = vmatpush1.msra.mxu0 0.0
    %3851 = vmatprep.subr.mxu0 0.0
    %3852 = vmatpush1.msra.mxu0 0.0
    %3853 = vmatprep.subr.mxu0 0.0
    %3854 = vmatpush1.msra.mxu0 0.0
    %3855 = vmatprep.subr.mxu0 0.0
    %3856 = vmatpush1.msra.mxu0 0.0
    %3857 = vmatprep.subr.mxu0 0.0
    %3858 = vmatpush1.msra.mxu0 0.0
    %3859 = vmatprep.subr.mxu0 0.0
    %3860 = vmatpush1.msra.mxu0 0.0
    %3861 = vmatprep.subr.mxu0 0.0
    %3862 = vmatpush1.msra.mxu0 0.0
    %3863 = vmatprep.subr.mxu0 0.0
    %3864 = vmatpush1.msra.mxu0 0.0
    %3865 = vmatprep.subr.mxu0 0.0
    %3866 = vmatpush1.msra.mxu0 0.0
    %3867 = vmatprep.subr.mxu0 0.0
    %3868 = vmatpush1.msra.mxu0 0.0
    %3869 = vmatprep.subr.mxu0 0.0
    %3870 = vmatpush1.msra.mxu0 0.0
    %3871 = vmatprep.subr.mxu0 0.0
    %3872 = vmatpush1.msra.mxu0 0.0
    %3873 = vmatprep.subr.mxu0 0.0
    %3874 = vmatpush1.msra.mxu0 0.0
    %3875 = vmatprep.subr.mxu0 0.0
    %3876 = vmatpush1.msra.mxu0 0.0
    %3877 = vmatprep.subr.mxu0 0.0
    %3878 = vmatpush1.msra.mxu0 0.0
    %3879 = vmatprep.subr.mxu0 0.0
    %3880 = vmatpush1.msra.mxu0 0.0
    %3881 = vmatprep.subr.mxu0 0.0
    %3882 = vmatpush1.msra.mxu0 0.0
    %3883 = vmatprep.subr.mxu0 0.0
    %3884 = vmatpush1.msra.mxu0 0.0
    %3885 = vmatprep.subr.mxu0 0.0
    %3886 = vmatpush1.msra.mxu0 0.0
    %3887 = vmatprep.subr.mxu0 0.0
    %3888 = vmatpush1.msra.mxu0 0.0
    %3889 = vmatprep.subr.mxu0 0.0
    %3890 = vmatpush1.msra.mxu0 0.0
    %3891 = vmatprep.subr.mxu0 0.0
    %3892 = vmatpush1.msra.mxu0 0.0
    %3893 = vmatprep.subr.mxu0 0.0
    %3894 = vmatpush1.msra.mxu0 0.0
    %3895 = vmatprep.subr.mxu0 0.0
    %3896 = vmatpush1.msra.mxu0 0.0
    %3897 = vmatprep.mubr.f32.mxu0 0.0
    %3898 = vmatmul.mubr.f32.gmra.mrb[0].mxu0 %v3831
    %v3899 = vpop.f32.mrb[0].mxu0
    %v3900 = vadd.f32 %v334, %v3899
    %v3901 = vpop.f32.mrb[0].mxu0
    %3902 = vdwg.mxu0
    %v3903 = vxor.u32 %v3900, 2147483648
    %v3904 = vmul.f32 %v3903, 1.442695
    %v3905 = vpow.pop %v3904
    %v3906 = vadd.f32 %v3905, 1.0
    %v3907 = vrcp.pop %v3906
    %v3908 = vmul.f32 1.0, %v3907
    %v3909 = vtanh.pop %v3900
    %v3910 = vmul.f32 %v3908, %v3409
    %3912 = vrot.lane.b32.xlu0 %v3909, 32
    %v3913 = vpop.permute.xlu0 %3912
    %v3915 = vmul.f32 %v3908, %v3913
    %3917 = vrot.lane.b32.xlu0 %v3915, 32
    %v3918 = vpop.permute.xlu0 %3917
    %v3920 = vadd.f32 %v3910, %v3918
    %v3921 = vtanh.pop %v3920
    %3923 = vrot.lane.b32.xlu0 %v3921, 32
    %v3924 = vpop.permute.xlu0 %3923
    %v3926 = vmul.f32 %v3908, %v3924
    %3928 = vrot.lane.b32.xlu0 %v3920, 32
    %v3929 = vpop.permute.xlu0 %3928
    %v3931 = vadd.f32 %v3926, %v3929
    %3933 = vrot.lane.b32.xlu0 %v3931, 64
    %v3934 = vpop.permute.xlu0 %3933
    %v3935 = vsel %vm336, %v3934, 0
    %3937 = vmatprep.subr.mxu0 0.0
    %3938 = vmatpush1.msra.mxu0 %v287
    %3939 = vmatprep.subr.mxu0 0.0
    %3940 = vmatpush1.msra.mxu0 %v288
    %3941 = vmatprep.subr.mxu0 0.0
    %3942 = vmatpush1.msra.mxu0 %v289
    %3943 = vmatprep.subr.mxu0 0.0
    %3944 = vmatpush1.msra.mxu0 %v290
    %3945 = vmatprep.subr.mxu0 0.0
    %3946 = vmatpush1.msra.mxu0 0.0
    %3947 = vmatprep.subr.mxu0 0.0
    %3948 = vmatpush1.msra.mxu0 0.0
    %3949 = vmatprep.subr.mxu0 0.0
    %3950 = vmatpush1.msra.mxu0 0.0
    %3951 = vmatprep.subr.mxu0 0.0
    %3952 = vmatpush1.msra.mxu0 0.0
    %3953 = vmatprep.subr.mxu0 0.0
    %3954 = vmatpush1.msra.mxu0 0.0
    %3955 = vmatprep.subr.mxu0 0.0
    %3956 = vmatpush1.msra.mxu0 0.0
    %3957 = vmatprep.subr.mxu0 0.0
    %3958 = vmatpush1.msra.mxu0 0.0
    %3959 = vmatprep.subr.mxu0 0.0
    %3960 = vmatpush1.msra.mxu0 0.0
    %3961 = vmatprep.subr.mxu0 0.0
    %3962 = vmatpush1.msra.mxu0 0.0
    %3963 = vmatprep.subr.mxu0 0.0
    %3964 = vmatpush1.msra.mxu0 0.0
    %3965 = vmatprep.subr.mxu0 0.0
    %3966 = vmatpush1.msra.mxu0 0.0
    %3967 = vmatprep.subr.mxu0 0.0
    %3968 = vmatpush1.msra.mxu0 0.0
    %3969 = vmatprep.subr.mxu0 0.0
    %3970 = vmatpush1.msra.mxu0 0.0
    %3971 = vmatprep.subr.mxu0 0.0
    %3972 = vmatpush1.msra.mxu0 0.0
    %3973 = vmatprep.subr.mxu0 0.0
    %3974 = vmatpush1.msra.mxu0 0.0
    %3975 = vmatprep.subr.mxu0 0.0
    %3976 = vmatpush1.msra.mxu0 0.0
    %3977 = vmatprep.subr.mxu0 0.0
    %3978 = vmatpush1.msra.mxu0 0.0
    %3979 = vmatprep.subr.mxu0 0.0
    %3980 = vmatpush1.msra.mxu0 0.0
    %3981 = vmatprep.subr.mxu0 0.0
    %3982 = vmatpush1.msra.mxu0 0.0
    %3983 = vmatprep.subr.mxu0 0.0
    %3984 = vmatpush1.msra.mxu0 0.0
    %3985 = vmatprep.subr.mxu0 0.0
    %3986 = vmatpush1.msra.mxu0 0.0
    %3987 = vmatprep.subr.mxu0 0.0
    %3988 = vmatpush1.msra.mxu0 0.0
    %3989 = vmatprep.subr.mxu0 0.0
    %3990 = vmatpush1.msra.mxu0 0.0
    %3991 = vmatprep.subr.mxu0 0.0
    %3992 = vmatpush1.msra.mxu0 0.0
    %3993 = vmatprep.subr.mxu0 0.0
    %3994 = vmatpush1.msra.mxu0 0.0
    %3995 = vmatprep.subr.mxu0 0.0
    %3996 = vmatpush1.msra.mxu0 0.0
    %3997 = vmatprep.subr.mxu0 0.0
    %3998 = vmatpush1.msra.mxu0 0.0
    %3999 = vmatprep.subr.mxu0 0.0
    %4000 = vmatpush1.msra.mxu0 0.0
    %4001 = vmatprep.mubr.f32.mxu0 0.0
    %4002 = vmatmul.mubr.f32.gmra.mrb[0].mxu0 %v3935
    %v4003 = vpop.f32.mrb[0].mxu0
    %v4004 = vadd.f32 %v296, %v4003
    %v4005 = vpop.f32.mrb[0].mxu0
    %4006 = vdwg.mxu0
    %v4007 = vrot.slane %v285, 4
    %4008 = vrot.lane.b32.xlu0 %v4007, 64
    %v4009 = vpop.permute.xlu0 %4008
    %v4011 = vadd.f32 %v4004, %v4009
    %v4012 = vld [vmem:[#allocation2 + $0x1c] sm:$0xf]
    %v4013 = vmul.f32 %v4011, 0.5
    %v4014 = vmul.f32 %v4013, 1.442695
    %v4015 = vpow.pop %v4014
    %4017 = vrot.lane.b32.xlu0 %v4012, 64
    %v4018 = vpop.permute.xlu0 %4017
    %v4020 = vmul.f32 %v4015, %v4018
    %4022 = vrot.lane.b32.xlu0 %v4020, 96
    %v4023 = vpop.permute.xlu0 %4022
    %v4025 = vadd.f32 %v4011, %v4023
    %4027 = vrot.lane.b32.xlu0 %v4025, 64
    %v4028 = vpop.permute.xlu0 %4027
    %v4029 = vsel %vm336, %v4028, 0
    %4031 = vmatprep.subr.mxu0 0.0
    %4032 = vmatpush1.msra.mxu0 %v298
    %4033 = vmatprep.subr.mxu0 0.0
    %4034 = vmatpush1.msra.mxu0 %v299
    %4035 = vmatprep.subr.mxu0 0.0
    %4036 = vmatpush1.msra.mxu0 %v300
    %4037 = vmatprep.subr.mxu0 0.0
    %4038 = vmatpush1.msra.mxu0 %v301
    %4039 = vmatprep.subr.mxu0 0.0
    %4040 = vmatpush1.msra.mxu0 0.0
    %4041 = vmatprep.subr.mxu0 0.0
    %4042 = vmatpush1.msra.mxu0 0.0
    %4043 = vmatprep.subr.mxu0 0.0
    %4044 = vmatpush1.msra.mxu0 0.0
    %4045 = vmatprep.subr.mxu0 0.0
    %4046 = vmatpush1.msra.mxu0 0.0
    %4047 = vmatprep.subr.mxu0 0.0
    %4048 = vmatpush1.msra.mxu0 0.0
    %4049 = vmatprep.subr.mxu0 0.0
    %4050 = vmatpush1.msra.mxu0 0.0
    %4051 = vmatprep.subr.mxu0 0.0
    %4052 = vmatpush1.msra.mxu0 0.0
    %4053 = vmatprep.subr.mxu0 0.0
    %4054 = vmatpush1.msra.mxu0 0.0
    %4055 = vmatprep.subr.mxu0 0.0
    %4056 = vmatpush1.msra.mxu0 0.0
    %4057 = vmatprep.subr.mxu0 0.0
    %4058 = vmatpush1.msra.mxu0 0.0
    %4059 = vmatprep.subr.mxu0 0.0
    %4060 = vmatpush1.msra.mxu0 0.0
    %4061 = vmatprep.subr.mxu0 0.0
    %4062 = vmatpush1.msra.mxu0 0.0
    %4063 = vmatprep.subr.mxu0 0.0
    %4064 = vmatpush1.msra.mxu0 0.0
    %4065 = vmatprep.subr.mxu0 0.0
    %4066 = vmatpush1.msra.mxu0 0.0
    %4067 = vmatprep.subr.mxu0 0.0
    %4068 = vmatpush1.msra.mxu0 0.0
    %4069 = vmatprep.subr.mxu0 0.0
    %4070 = vmatpush1.msra.mxu0 0.0
    %4071 = vmatprep.subr.mxu0 0.0
    %4072 = vmatpush1.msra.mxu0 0.0
    %4073 = vmatprep.subr.mxu0 0.0
    %4074 = vmatpush1.msra.mxu0 0.0
    %4075 = vmatprep.subr.mxu0 0.0
    %4076 = vmatpush1.msra.mxu0 0.0
    %4077 = vmatprep.subr.mxu0 0.0
    %4078 = vmatpush1.msra.mxu0 0.0
    %4079 = vmatprep.subr.mxu0 0.0
    %4080 = vmatpush1.msra.mxu0 0.0
    %4081 = vmatprep.subr.mxu0 0.0
    %4082 = vmatpush1.msra.mxu0 0.0
    %4083 = vmatprep.subr.mxu0 0.0
    %4084 = vmatpush1.msra.mxu0 0.0
    %4085 = vmatprep.subr.mxu0 0.0
    %4086 = vmatpush1.msra.mxu0 0.0
    %4087 = vmatprep.subr.mxu0 0.0
    %4088 = vmatpush1.msra.mxu0 0.0
    %4089 = vmatprep.subr.mxu0 0.0
    %4090 = vmatpush1.msra.mxu0 0.0
    %4091 = vmatprep.subr.mxu0 0.0
    %4092 = vmatpush1.msra.mxu0 0.0
    %4093 = vmatprep.subr.mxu0 0.0
    %4094 = vmatpush1.msra.mxu0 0.0
    %4095 = vmatprep.mubr.f32.mxu0 0.0
    %4096 = vmatmul.mubr.f32.gmra.mrb[0].mxu0 %v4029
    %v4097 = vpop.f32.mrb[0].mxu0
    %v4098 = vadd.f32 %v307, %v4097
    %v4099 = vpop.f32.mrb[0].mxu0
    %4100 = vdwg.mxu0
    %v4101 = vmax.f32 %v4098, 0.0
    %vm4102 = vcmp.ne.f32.partialorder %v4098, %v4098
    %v4103 = vadd.f32 %v4098, 0.0
    %v4104 = vand.u32 2147483647, %v4098
    %v4105 = vsub.f32 0.0, %v4104
    %v4106 = vmul.f32 %v4105, 1.442695
    %v4107 = vpow.pop %v4106
    %v4108 = vadd.f32 %v4107, 1.0
    %v4109 = vlog2.pop %v4108
    %v4110 = vmul.f32 %v4109, 0.6931472
    %v4111 = vmul.f32 -0.5, %v4107
    %v4112 = vadd.f32 %v4111, 1.0
    %v4113 = vmul.f32 %v4112, %v4107
    %v4114 = vand.u32 2147483647, %v4107
    %vm4115 = vcmp.lt.f32.partialorder %v4114, 0.0004427343
    %v4116 = vsel %vm4115, %v4113, %v4110
    %v4117 = vadd.f32 %v4101, %v4116
    %v4118 = vsel %vm4102, %v4103, %v4117
    %4120 = vrot.lane.b32.xlu0 %v4004, 64
    %v4121 = vpop.permute.xlu0 %4120
    %v4123 = vsub.f32 %v4011, %v4121
    %v4124 = vmul.f32 %v4123, -0.5
    %v4125 = vmul.f32 %v4123, 1.442695
    %v4126 = vpow.pop %v4125
    %v4127 = vmul.f32 %v4123, %v4123
    %v4128 = vsub.f32 0.0, %v4004
    %v4129 = vmul.f32 %v4128, 1.442695
    %v4130 = vpow.pop %v4129
    %4132 = vrot.lane.b32.xlu0 %v4130, 32
    %v4133 = vpop.permute.xlu0 %4132
    %v4135 = vmul.f32 %v4127, %v4133
    %4137 = vrot.lane.b32.xlu0 %v4135, 32
    %v4138 = vpop.permute.xlu0 %4137
    %v4140 = vadd.f32 %v4126, %v4138
    %v4141 = vmul.f32 %v4140, 0.5
    %v4142 = vadd.f32 %v4124, %v4141
    %v4143 = vsub.f32 %v4142, 0.5
    %v4144 = vadd.f32 %v3633, %v4143
    %v4146 = vsel %vm336, %v4118, 0
    %4148 = vmatprep.subr.mxu0 0.0
    %4149 = vmatpush1.msra.mxu0 %v309
    %4150 = vmatprep.subr.mxu0 0.0
    %4151 = vmatpush1.msra.mxu0 %v310
    %4152 = vmatprep.subr.mxu0 0.0
    %4153 = vmatpush1.msra.mxu0 %v311
    %4154 = vmatprep.subr.mxu0 0.0
    %4155 = vmatpush1.msra.mxu0 %v312
    %4156 = vmatprep.subr.mxu0 0.0
    %4157 = vmatpush1.msra.mxu0 0.0
    %4158 = vmatprep.subr.mxu0 0.0
    %4159 = vmatpush1.msra.mxu0 0.0
    %4160 = vmatprep.subr.mxu0 0.0
    %4161 = vmatpush1.msra.mxu0 0.0
    %4162 = vmatprep.subr.mxu0 0.0
    %4163 = vmatpush1.msra.mxu0 0.0
    %4164 = vmatprep.subr.mxu0 0.0
    %4165 = vmatpush1.msra.mxu0 0.0
    %4166 = vmatprep.subr.mxu0 0.0
    %4167 = vmatpush1.msra.mxu0 0.0
    %4168 = vmatprep.subr.mxu0 0.0
    %4169 = vmatpush1.msra.mxu0 0.0
    %4170 = vmatprep.subr.mxu0 0.0
    %4171 = vmatpush1.msra.mxu0 0.0
    %4172 = vmatprep.subr.mxu0 0.0
    %4173 = vmatpush1.msra.mxu0 0.0
    %4174 = vmatprep.subr.mxu0 0.0
    %4175 = vmatpush1.msra.mxu0 0.0
    %4176 = vmatprep.subr.mxu0 0.0
    %4177 = vmatpush1.msra.mxu0 0.0
    %4178 = vmatprep.subr.mxu0 0.0
    %4179 = vmatpush1.msra.mxu0 0.0
    %4180 = vmatprep.subr.mxu0 0.0
    %4181 = vmatpush1.msra.mxu0 0.0
    %4182 = vmatprep.subr.mxu0 0.0
    %4183 = vmatpush1.msra.mxu0 0.0
    %4184 = vmatprep.subr.mxu0 0.0
    %4185 = vmatpush1.msra.mxu0 0.0
    %4186 = vmatprep.subr.mxu0 0.0
    %4187 = vmatpush1.msra.mxu0 0.0
    %4188 = vmatprep.subr.mxu0 0.0
    %4189 = vmatpush1.msra.mxu0 0.0
    %4190 = vmatprep.subr.mxu0 0.0
    %4191 = vmatpush1.msra.mxu0 0.0
    %4192 = vmatprep.subr.mxu0 0.0
    %4193 = vmatpush1.msra.mxu0 0.0
    %4194 = vmatprep.subr.mxu0 0.0
    %4195 = vmatpush1.msra.mxu0 0.0
    %4196 = vmatprep.subr.mxu0 0.0
    %4197 = vmatpush1.msra.mxu0 0.0
    %4198 = vmatprep.subr.mxu0 0.0
    %4199 = vmatpush1.msra.mxu0 0.0
    %4200 = vmatprep.subr.mxu0 0.0
    %4201 = vmatpush1.msra.mxu0 0.0
    %4202 = vmatprep.subr.mxu0 0.0
    %4203 = vmatpush1.msra.mxu0 0.0
    %4204 = vmatprep.subr.mxu0 0.0
    %4205 = vmatpush1.msra.mxu0 0.0
    %4206 = vmatprep.subr.mxu0 0.0
    %4207 = vmatpush1.msra.mxu0 0.0
    %4208 = vmatprep.subr.mxu0 0.0
    %4209 = vmatpush1.msra.mxu0 0.0
    %4210 = vmatprep.subr.mxu0 0.0
    %4211 = vmatpush1.msra.mxu0 0.0
    %4212 = vmatprep.mubr.f32.mxu0 0.0
    %4213 = vmatmul.mubr.f32.gmra.mrb[0].mxu0 %v4146
    %v4214 = vpop.f32.mrb[0].mxu0
    %v4215 = vadd.f32 0.0, %v4214
    %v4216 = vpop.f32.mrb[0].mxu0
    %4217 = vdwg.mxu0
    %v4219 = vrot.slane %v4215, 4
    %4220 = vrot.lane.b32.xlu0 %v4219, 64
    %v4221 = vpop.permute.xlu0 %4220
    %v4223 = vadd.f32 %v285, %v4221
    %v4224 = vrot.slane %v4012, 4
    %v4226 = vsub.f32 %v4223, %v4224
    %v4227 = vmul.f32 %v4226, %v4226
    %v4229 = vrot.slane %v4227, 4
    %v4231 = vadd.f32 %v3714, %v4229
    %s4232 = sld [smem:[#allocation15]]
    %s4233 = sld [smem:[#allocation15 + $0x1]]
    %4235 = vrot.lane.b32.xlu0 %v4144, 32
    %v4236 = vpop.permute.xlu0 %4235
    %vm4238 = vcmask 257024
    %v4239 = vsel %vm4238, %v4236, 0.0
    %4240 = vadd.xlane.f32.xlu0 %v4239
    %v4241 = vpop.xlane.xlu0 %4240
    %v4242 = vrot.slane %v4241, 4
    %v4243 = vadd.f32 %v4241, %v4242
    %v4244 = vrot.slane %v4243, 2
    %v4245 = vadd.f32 %v4243, %v4244
    %v4246 = vrot.slane %v4245, 1
    %v4247 = vadd.f32 %v4245, %v4246
    %s4248 = vtos %v4247
    %s4249 = smul.f32 %s4248, 0.0078125
    %4251 = vrot.lane.b32.xlu0 %v4231, 64
    %v4252 = vpop.permute.xlu0 %4251
    %vm4254 = vcmask 27648
    %v4255 = vsel %vm4254, %v4252, 0.0
    %4256 = vadd.xlane.f32.xlu0 %v4255
    %v4257 = vpop.xlane.xlu0 %4256
    %v4258 = vrot.slane %v4257, 4
    %v4259 = vadd.f32 %v4257, %v4258
    %v4260 = vrot.slane %v4259, 2
    %v4261 = vadd.f32 %v4259, %v4260
    %v4262 = vrot.slane %v4261, 1
    %v4263 = vadd.f32 %v4261, %v4262
    %s4264 = vtos %v4263
    %s4265 = smul.f32 %s4264, 0.0625
    %s4266 = smul.f32 %s4249, %s4232
    %s4267 = smul.f32 %s4265, %s4233
    %s4268 = sadd.f32 %s4266, %s4267
    %s4269 = smul.f32 %s4268, 0.125
    %v4270 = vstv %s4269
    %v4271 = vadd.f32 %v4270, 0.0
    %vm4272 = vcmask 0
    %4273 = vst.msk [vmem:[#allocation16] sm:$0x1] %vm4272, %v4271
    %v4274 = vstv %s4249
    %v4275 = vadd.f32 %v4274, 0.0
    %4276 = vst.msk [vmem:[#allocation17] sm:$0x1] %vm4272, %v4275
    %v4277 = vstv %s4265
    %v4278 = vadd.f32 %v4277, 0.0
    %4279 = vst.msk [vmem:[#allocation19] sm:$0x1] %vm4272, %v4278
    // Predicated region
    $region82: #{tpu_custom_call.1} parent=1 // pred_check
      _
    $region83: #{tpu_custom_call.1} parent=1 // pred_check_branch
      %4281 = sbr.rel (0) target = $region85
    $region84: #{tpu_custom_call.1} parent=1 // pred_region
      %s4283 = ssub.s32 16, 16
      %4284 = vsyncadd [#allocation4], %s4283
      %s4286 = sshll.u32 [#allocation16], 4
      %s4287 = int_to_ptr.vmem [resolvable:$true] %s4286
      %4289 = dma.vmem_to_hbm [thread:$0]  %s4287, 16, %s12, [#allocation4]
    $region85: #{tpu_custom_call.1} parent=1 // pred_fallthru
      _
    // Predicated region
    $region86: #{tpu_custom_call.1} parent=1 // pred_check
      _
    $region87: #{tpu_custom_call.1} parent=1 // pred_check_branch
      %4291 = sbr.rel (0) target = $region89
    $region88: #{tpu_custom_call.1} parent=1 // pred_region
      %s4293 = ssub.s32 16, 16
      %4294 = vsyncadd [#allocation18], %s4293
      %s4296 = sshll.u32 [#allocation17], 4
      %s4297 = int_to_ptr.vmem [resolvable:$true] %s4296
      %4299 = dma.vmem_to_hbm [thread:$0]  %s4297, 16, %s13, [#allocation18]
    $region89: #{tpu_custom_call.1} parent=1 // pred_fallthru
      _
    // Predicated region
    $region90: #{tpu_custom_call.1} parent=1 // pred_check
      _
    $region91: #{tpu_custom_call.1} parent=1 // pred_check_branch
      %4301 = sbr.rel (0) target = $region93
    $region92: #{tpu_custom_call.1} parent=1 // pred_region
      %s4303 = ssub.s32 16, 16
      %4304 = vsyncadd [#allocation18], %s4303
      %s4306 = sshll.u32 [#allocation19], 4
      %s4307 = int_to_ptr.vmem [resolvable:$true] %s4306
      %4309 = dma.vmem_to_hbm [thread:$0]  %s4307, 16, %s14, [#allocation18]
    $region93: #{tpu_custom_call.1} parent=1 // pred_fallthru
      _
    // Predicated region
    $region94: #{tpu_custom_call.1} parent=1 // pred_check
      _
    $region95: #{tpu_custom_call.1} parent=1 // pred_check_branch
      %4311 = sbr.rel (0) target = $region97
    $region96: #{tpu_custom_call.1} parent=1 // pred_region
      %4312 = dma.done [#allocation4], 16
    $region97: #{tpu_custom_call.1} parent=1 // pred_fallthru
      _
    // Predicated region
    $region98: #{tpu_custom_call.1} parent=1 // pred_check
      _
    $region99: #{tpu_custom_call.1} parent=1 // pred_check_branch
      %4314 = sbr.rel (0) target = $region101
    $region100: #{tpu_custom_call.1} parent=1 // pred_region
      %4315 = dma.done [#allocation18], 16
    $region101: #{tpu_custom_call.1} parent=1 // pred_fallthru
      _
    // Predicated region
    $region102: #{tpu_custom_call.1} parent=1 // pred_check
      _
    $region103: #{tpu_custom_call.1} parent=1 // pred_check_branch
      %4317 = sbr.rel (0) target = $region105
    $region104: #{tpu_custom_call.1} parent=1 // pred_region
      %4318 = dma.done [#allocation18], 16
    $region105: #{tpu_custom_call.1} parent=1 // pred_fallthru
      _
    %4319 = vsyncpa [#allocation3], 1
    %4320 = vsyncpa [#allocation7], 1
    %4321 = vsyncpa [#allocation10], 1
    %4322 = vsyncpa [#allocation13], 1
    %4323 = vsyncpa [#allocation4], 1
    %4324 = vsyncpa [#allocation18], 1
    %4325 = vsyncpa [#allocation5], 1

</llo_original>
